<compile_context>
chip_gen: v7x
topology: tpu7x:2x2x1
jax: 0.10.0
libtpu: 0.0.40
codegen_flags: <defaults>
</compile_context>

<pallas_src>
import math

import jax
import jax.numpy as jnp
from jax.experimental import pallas as pl
from jax.experimental.pallas import tpu as pltpu


# ---------------------------------------------------------------------------
# In-kernel GRU layer (VMEM/vreg-resident values; fully unrolled time loop).
# ---------------------------------------------------------------------------
def _gru_layer_unrolled(x_all, T, BP, wih_rz, wih_n, whh, b_rz, b_in, b_hn,
                        out_scr=None):
    """One GRU layer (h0 = 0) over a time-major, batch-padded, flattened sequence.

    x_all  : (T*BP, In)  rows [t*BP:(t+1)*BP] are the (padded) batch at time t.
    wih_rz : (In, 2H)    W_ih^T columns for the r,z gates (PyTorch order r|z).
    wih_n  : (In, H)     W_ih^T columns for the n gate.
    whh    : (H, 3H)     fused W_hh^T, gate order (r, z, n)  -> one MXU push/step.
    b_rz   : (1, 2H)     b_ih[r,z] + b_hh[r,z]  (hh bias foldable only for r,z).
    b_in   : (1, H)      b_ih[n].
    b_hn   : (1, H)      b_hh[n]   (must stay inside r * (...)).
    out_scr: optional VMEM scratch ref (T*BP, H); per-step hidden states stored there.
    Returns the final hidden state (BP, H).
    """
    H = whh.shape[0]

    # Hoisted input projections: off the serial path, one MXU call per slab, and
    # per-step accesses below are pure sublane slices (no in-loop lane slicing).
    gi_rz = jnp.dot(x_all, wih_rz, preferred_element_type=jnp.float32) + b_rz
    gi_n = jnp.dot(x_all, wih_n, preferred_element_type=jnp.float32) + b_in

    h = jnp.zeros((BP, H), jnp.float32)
    for t in range(T):                       # fully unrolled; T is tiny and static
        lo = t * BP                          # multiple of 8 -> sublane-tile aligned
        gh = jnp.dot(h, whh, preferred_element_type=jnp.float32)     # (BP, 3H)
        rz = jax.nn.sigmoid(gi_rz[lo:lo + BP, :] + gh[:, :2 * H])    # r & z together
        r = rz[:, :H]
        z = rz[:, H:]
        n = jnp.tanh(gi_n[lo:lo + BP, :] + r * (gh[:, 2 * H:] + b_hn))
        h = (1.0 - z) * n + z * h
        if out_scr is not None:
            out_scr[lo:lo + BP, :] = h       # bounds live ranges; no concatenate
    return h


# ---------------------------------------------------------------------------
# Host-side parameter prep (one-time weight transforms; plain-JAX glue).
# ---------------------------------------------------------------------------
def _prep_gru_layer(w_ih, w_hh, b_ih, b_hh):
    """PyTorch GRU layer params -> slab-split, bias-folded, transposed kernel inputs."""
    H = w_hh.shape[1]
    wih_t = jnp.transpose(w_ih).astype(jnp.float32)          # (In, 3H), order r|z|n
    whh_t = jnp.transpose(w_hh).astype(jnp.float32)          # (H, 3H), fused
    wih_rz = wih_t[:, :2 * H]                                 # (In, 2H)
    wih_n = wih_t[:, 2 * H:]                                  # (In, H)
    b_rz = (b_ih[:2 * H] + b_hh[:2 * H]).reshape(1, 2 * H).astype(jnp.float32)
    b_in = b_ih[2 * H:].reshape(1, H).astype(jnp.float32)
    b_hn = b_hh[2 * H:].reshape(1, H).astype(jnp.float32)
    return (wih_rz, wih_n, whh_t, b_rz, b_in, b_hn)


def _pool_matrix(B, BP):
    """(BP, BP) matrix A s.t. A @ h == AvgPool2d((2,1),(2,1))(cat([h, flip(h, batch)], 1))
    on the real batch rows; padded rows map to zero.  At B=2 this is one tiny MXU push
    per word layer.  NOTE: if the batch ever gets tiled across a grid axis, do NOT grow
    this with BP — express the pool as an add + sublane permute per tile instead."""
    eye = jnp.eye(B, dtype=jnp.float32)
    M = jnp.concatenate([eye, jnp.flip(eye, axis=0)], axis=0)   # rows of cat (2B, B)
    A = 0.5 * (M[0::2, :] + M[1::2, :])                         # (B, B)
    return jnp.zeros((BP, BP), jnp.float32).at[:B, :B].set(A)


# ---------------------------------------------------------------------------
# Full SumRNN forward: one fused pallas_call.
# ---------------------------------------------------------------------------
def sum_rnn_forward(x, params):
    """x: (B, T, input_size) — PyTorch batch_first layout. Returns (B, num_classes)."""
    B, T, In = x.shape
    word = [_prep_gru_layer(*p) for p in params["word"]]
    sent = [_prep_gru_layer(*p) for p in params["sent"]]
    n_word, n_sent = len(word), len(sent)
    n_layers = n_word + n_sent
    H = params["word"][0][1].shape[1]                 # hidden size
    C = params["w_out"].shape[0]
    BP = ((B + 7) // 8) * 8                           # pad batch to 8-sublane tile
    CP = ((C + 127) // 128) * 128                     # lane-dense output width

    # Lane-dense output projection (padded columns are zero; sliced off outside).
    w_out_pad = jnp.zeros((H, CP), jnp.float32).at[:, :C].set(
        jnp.transpose(params["w_out"]).astype(jnp.float32))
    b_out_pad = jnp.zeros((1, CP), jnp.float32).at[0, :C].set(
        params["b_out"].astype(jnp.float32))
    a_pool = _pool_matrix(B, BP)                      # (BP, BP)

    # time-major, batch-padded, flattened input (plain-JAX layout glue)
    x_tb = jnp.transpose(x, (1, 0, 2)).astype(jnp.float32)        # (T, B, In)
    x2d = jnp.pad(x_tb, ((0, 0), (0, BP - B), (0, 0))).reshape(T * BP, In)

    flat_inputs = []
    for layer in word + sent:
        flat_inputs.extend(layer)                                 # 6 arrays / layer
    flat_inputs.extend([a_pool, w_out_pad, b_out_pad, x2d])
    n_in = len(flat_inputs)

    def kernel(*refs):
        in_refs = refs[:n_in]
        out_ref = refs[n_in]
        scr = refs[n_in + 1:]
        word_scr = scr[:n_word - 1]                   # per-step outs, word layers
        sent_in_scr = scr[n_word - 1]                 # pooled word-level sequence
        sent_scr = scr[n_word:n_word + n_sent - 1]    # per-step outs, sentence layers

        vals = [r[...] for r in in_refs]
        layers = [tuple(vals[6 * i:6 * (i + 1)]) for i in range(n_layers)]
        a_v, wout_v, bout_v, x_v = vals[6 * n_layers:]

        # ---- word-level GRU stack (forward pass only; backward == batch flip) ----
        seq = x_v
        h_finals = []
        for l in range(n_word):
            o_scr = word_scr[l] if l < n_word - 1 else None   # top layer seq unused
            h_last = _gru_layer_unrolled(seq, T, BP, *layers[l], out_scr=o_scr)
            h_finals.append(h_last)
            if o_scr is not None:
                seq = o_scr[...]

        # ---- cat(h_fwd, batch-flipped h_bwd) + AvgPool2d((2,1)) == a_v @ h ----
        for l, hf in enumerate(h_finals):
            sent_in_scr[l * BP:(l + 1) * BP, :] = jnp.dot(
                a_v, hf, preferred_element_type=jnp.float32)

        # ---- sentence-level GRU over the n_word "time steps" ----
        seq = sent_in_scr[...]
        h_last = None
        for l in range(n_sent):
            o_scr = sent_scr[l] if l < n_sent - 1 else None
            h_last = _gru_layer_unrolled(seq, n_word, BP, *layers[n_word + l],
                                         out_scr=o_scr)
            if o_scr is not None:
                seq = o_scr[...]

        # output.permute(1,0,2)[:, -1, :] == final hidden of the top sentence layer
        out_ref[...] = jnp.dot(h_last, wout_v,
                               preferred_element_type=jnp.float32) + bout_v

    scratch_shapes = (
        [pltpu.VMEM((T * BP, H), jnp.float32) for _ in range(n_word - 1)]
        + [pltpu.VMEM((n_word * BP, H), jnp.float32)]
        + [pltpu.VMEM((n_word * BP, H), jnp.float32) for _ in range(n_sent - 1)])

    # TODO(synk): if B is ever scaled up, add a batch-tiled grid axis with
    # dimension_semantics=("parallel",) (2 TCs on v7x) and re-derive the tile
    # against 64 MiB VMEM; at B=2 the grid-less single-TC form is strictly cheaper.
    out_padded = pl.pallas_call(
        kernel,
        out_shape=jax.ShapeDtypeStruct((BP, CP), jnp.float32),
        scratch_shapes=scratch_shapes,
    )(*flat_inputs)
    return out_padded[:B, :C]


# ---------------------------------------------------------------------------
# Deterministic parameter init (PyTorch GRU shapes, U(-1/sqrt(H), 1/sqrt(H))).
# ---------------------------------------------------------------------------
def init_params(key, input_size, hidden_size, num_layers=2, num_classes=2):
    H = hidden_size
    bound = 1.0 / math.sqrt(H)
    keys = iter(jax.random.split(key, 8 * num_layers + 2))

    def u(shape):
        return jax.random.uniform(next(keys), shape, jnp.float32, -bound, bound)

    word = []
    for l in range(num_layers):
        in_l = input_size if l == 0 else H
        word.append((u((3 * H, in_l)), u((3 * H, H)), u((3 * H,)), u((3 * H,))))
    sent = []
    for _ in range(num_layers):
        sent.append((u((3 * H, H)), u((3 * H, H)), u((3 * H,)), u((3 * H,))))
    w_out = u((num_classes, H))
    b_out = u((num_classes,))
    return {"word": word, "sent": sent, "w_out": w_out, "b_out": b_out}


if __name__ == "__main__":
    B, T, input_size, hidden_size, num_classes = 2, 8, 16, 32, 2

    key = jax.random.PRNGKey(0)
    pkey, xkey = jax.random.split(key)
    params = init_params(pkey, input_size, hidden_size, num_layers=2,
                         num_classes=num_classes)
    x = jax.random.normal(xkey, (B, T, input_size), jnp.float32)

    out = jax.jit(sum_rnn_forward)(x, params)
    out = jax.block_until_ready(out)
    assert out.shape == (B, num_classes) and out.dtype == jnp.float32
    print("KERNEL_OK")
</pallas_src>

<mosaic_0001>
module attributes {stable_mosaic.version = 11 : i64} {
  func.func @kernel(%arg0: memref<16x64xf32, #tpu.memory_space<vmem>>, %arg1: memref<16x32xf32, #tpu.memory_space<vmem>>, %arg2: memref<32x96xf32, #tpu.memory_space<vmem>>, %arg3: memref<1x64xf32, #tpu.memory_space<vmem>>, %arg4: memref<1x32xf32, #tpu.memory_space<vmem>>, %arg5: memref<1x32xf32, #tpu.memory_space<vmem>>, %arg6: memref<32x64xf32, #tpu.memory_space<vmem>>, %arg7: memref<32x32xf32, #tpu.memory_space<vmem>>, %arg8: memref<32x96xf32, #tpu.memory_space<vmem>>, %arg9: memref<1x64xf32, #tpu.memory_space<vmem>>, %arg10: memref<1x32xf32, #tpu.memory_space<vmem>>, %arg11: memref<1x32xf32, #tpu.memory_space<vmem>>, %arg12: memref<32x64xf32, #tpu.memory_space<vmem>>, %arg13: memref<32x32xf32, #tpu.memory_space<vmem>>, %arg14: memref<32x96xf32, #tpu.memory_space<vmem>>, %arg15: memref<1x64xf32, #tpu.memory_space<vmem>>, %arg16: memref<1x32xf32, #tpu.memory_space<vmem>>, %arg17: memref<1x32xf32, #tpu.memory_space<vmem>>, %arg18: memref<32x64xf32, #tpu.memory_space<vmem>>, %arg19: memref<32x32xf32, #tpu.memory_space<vmem>>, %arg20: memref<32x96xf32, #tpu.memory_space<vmem>>, %arg21: memref<1x64xf32, #tpu.memory_space<vmem>>, %arg22: memref<1x32xf32, #tpu.memory_space<vmem>>, %arg23: memref<1x32xf32, #tpu.memory_space<vmem>>, %arg24: memref<8x8xf32, #tpu.memory_space<vmem>>, %arg25: memref<32x128xf32, #tpu.memory_space<vmem>>, %arg26: memref<1x128xf32, #tpu.memory_space<vmem>>, %arg27: memref<64x16xf32, #tpu.memory_space<vmem>>, %arg28: memref<8x128xf32, #tpu.memory_space<vmem>>, %arg29: memref<64x32xf32, #tpu.memory_space<vmem>>, %arg30: memref<16x32xf32, #tpu.memory_space<vmem>>, %arg31: memref<16x32xf32, #tpu.memory_space<vmem>>) attributes {dimension_semantics = [], scalar_prefetch = 0 : i64, scratch_operands = 3 : i64, tpu.core_type = #tpu.core_type<tc>} {
    %c0 = arith.constant 0 : index
    %c0_0 = arith.constant 0 : index
    %0 = vector.load %arg0[%c0, %c0_0] : memref<16x64xf32, #tpu.memory_space<vmem>>, vector<16x64xf32>
    %c0_1 = arith.constant 0 : index
    %c0_2 = arith.constant 0 : index
    %1 = vector.load %arg1[%c0_1, %c0_2] : memref<16x32xf32, #tpu.memory_space<vmem>>, vector<16x32xf32>
    %c0_3 = arith.constant 0 : index
    %c0_4 = arith.constant 0 : index
    %2 = vector.load %arg2[%c0_3, %c0_4] : memref<32x96xf32, #tpu.memory_space<vmem>>, vector<32x96xf32>
    %c0_5 = arith.constant 0 : index
    %c0_6 = arith.constant 0 : index
    %3 = vector.load %arg3[%c0_5, %c0_6] : memref<1x64xf32, #tpu.memory_space<vmem>>, vector<1x64xf32>
    %c0_7 = arith.constant 0 : index
    %c0_8 = arith.constant 0 : index
    %4 = vector.load %arg4[%c0_7, %c0_8] : memref<1x32xf32, #tpu.memory_space<vmem>>, vector<1x32xf32>
    %c0_9 = arith.constant 0 : index
    %c0_10 = arith.constant 0 : index
    %5 = vector.load %arg5[%c0_9, %c0_10] : memref<1x32xf32, #tpu.memory_space<vmem>>, vector<1x32xf32>
    %c0_11 = arith.constant 0 : index
    %c0_12 = arith.constant 0 : index
    %6 = vector.load %arg6[%c0_11, %c0_12] : memref<32x64xf32, #tpu.memory_space<vmem>>, vector<32x64xf32>
    %c0_13 = arith.constant 0 : index
    %c0_14 = arith.constant 0 : index
    %7 = vector.load %arg7[%c0_13, %c0_14] : memref<32x32xf32, #tpu.memory_space<vmem>>, vector<32x32xf32>
    %c0_15 = arith.constant 0 : index
    %c0_16 = arith.constant 0 : index
    %8 = vector.load %arg8[%c0_15, %c0_16] : memref<32x96xf32, #tpu.memory_space<vmem>>, vector<32x96xf32>
    %c0_17 = arith.constant 0 : index
    %c0_18 = arith.constant 0 : index
    %9 = vector.load %arg9[%c0_17, %c0_18] : memref<1x64xf32, #tpu.memory_space<vmem>>, vector<1x64xf32>
    %c0_19 = arith.constant 0 : index
    %c0_20 = arith.constant 0 : index
    %10 = vector.load %arg10[%c0_19, %c0_20] : memref<1x32xf32, #tpu.memory_space<vmem>>, vector<1x32xf32>
    %c0_21 = arith.constant 0 : index
    %c0_22 = arith.constant 0 : index
    %11 = vector.load %arg11[%c0_21, %c0_22] : memref<1x32xf32, #tpu.memory_space<vmem>>, vector<1x32xf32>
    %c0_23 = arith.constant 0 : index
    %c0_24 = arith.constant 0 : index
    %12 = vector.load %arg12[%c0_23, %c0_24] : memref<32x64xf32, #tpu.memory_space<vmem>>, vector<32x64xf32>
    %c0_25 = arith.constant 0 : index
    %c0_26 = arith.constant 0 : index
    %13 = vector.load %arg13[%c0_25, %c0_26] : memref<32x32xf32, #tpu.memory_space<vmem>>, vector<32x32xf32>
    %c0_27 = arith.constant 0 : index
    %c0_28 = arith.constant 0 : index
    %14 = vector.load %arg14[%c0_27, %c0_28] : memref<32x96xf32, #tpu.memory_space<vmem>>, vector<32x96xf32>
    %c0_29 = arith.constant 0 : index
    %c0_30 = arith.constant 0 : index
    %15 = vector.load %arg15[%c0_29, %c0_30] : memref<1x64xf32, #tpu.memory_space<vmem>>, vector<1x64xf32>
    %c0_31 = arith.constant 0 : index
    %c0_32 = arith.constant 0 : index
    %16 = vector.load %arg16[%c0_31, %c0_32] : memref<1x32xf32, #tpu.memory_space<vmem>>, vector<1x32xf32>
    %c0_33 = arith.constant 0 : index
    %c0_34 = arith.constant 0 : index
    %17 = vector.load %arg17[%c0_33, %c0_34] : memref<1x32xf32, #tpu.memory_space<vmem>>, vector<1x32xf32>
    %c0_35 = arith.constant 0 : index
    %c0_36 = arith.constant 0 : index
    %18 = vector.load %arg18[%c0_35, %c0_36] : memref<32x64xf32, #tpu.memory_space<vmem>>, vector<32x64xf32>
    %c0_37 = arith.constant 0 : index
    %c0_38 = arith.constant 0 : index
    %19 = vector.load %arg19[%c0_37, %c0_38] : memref<32x32xf32, #tpu.memory_space<vmem>>, vector<32x32xf32>
    %c0_39 = arith.constant 0 : index
    %c0_40 = arith.constant 0 : index
    %20 = vector.load %arg20[%c0_39, %c0_40] : memref<32x96xf32, #tpu.memory_space<vmem>>, vector<32x96xf32>
    %c0_41 = arith.constant 0 : index
    %c0_42 = arith.constant 0 : index
    %21 = vector.load %arg21[%c0_41, %c0_42] : memref<1x64xf32, #tpu.memory_space<vmem>>, vector<1x64xf32>
    %c0_43 = arith.constant 0 : index
    %c0_44 = arith.constant 0 : index
    %22 = vector.load %arg22[%c0_43, %c0_44] : memref<1x32xf32, #tpu.memory_space<vmem>>, vector<1x32xf32>
    %c0_45 = arith.constant 0 : index
    %c0_46 = arith.constant 0 : index
    %23 = vector.load %arg23[%c0_45, %c0_46] : memref<1x32xf32, #tpu.memory_space<vmem>>, vector<1x32xf32>
    %c0_47 = arith.constant 0 : index
    %c0_48 = arith.constant 0 : index
    %24 = vector.load %arg24[%c0_47, %c0_48] : memref<8x8xf32, #tpu.memory_space<vmem>>, vector<8x8xf32>
    %c0_49 = arith.constant 0 : index
    %c0_50 = arith.constant 0 : index
    %25 = vector.load %arg25[%c0_49, %c0_50] : memref<32x128xf32, #tpu.memory_space<vmem>>, vector<32x128xf32>
    %c0_51 = arith.constant 0 : index
    %c0_52 = arith.constant 0 : index
    %26 = vector.load %arg26[%c0_51, %c0_52] : memref<1x128xf32, #tpu.memory_space<vmem>>, vector<1x128xf32>
    %c0_53 = arith.constant 0 : index
    %c0_54 = arith.constant 0 : index
    %27 = vector.load %arg27[%c0_53, %c0_54] : memref<64x16xf32, #tpu.memory_space<vmem>>, vector<64x16xf32>
    %cst = arith.constant dense<0.000000e+00> : vector<64x64xf32>
    %28 = tpu.matmul %27, %0, %cst {dimension_numbers = #tpu.dot_dimension_numbers<[1], [0], [0], [1], [0, 0, 1, 1], [], []>} : vector<64x16xf32>, vector<16x64xf32>, vector<64x64xf32> -> vector<64x64xf32>
    %29 = vector.broadcast %3 : vector<1x64xf32> to vector<64x64xf32>
    %30 = arith.addf %28, %29 : vector<64x64xf32>
    %cst_55 = arith.constant dense<0.000000e+00> : vector<64x32xf32>
    %31 = tpu.matmul %27, %1, %cst_55 {dimension_numbers = #tpu.dot_dimension_numbers<[1], [0], [0], [1], [0, 0, 1, 1], [], []>} : vector<64x16xf32>, vector<16x32xf32>, vector<64x32xf32> -> vector<64x32xf32>
    %32 = vector.broadcast %4 : vector<1x32xf32> to vector<64x32xf32>
    %33 = arith.addf %31, %32 : vector<64x32xf32>
    %cst_56 = arith.constant 0.000000e+00 : f32
    %34 = vector.broadcast %cst_56 : f32 to vector<8x32xf32>
    %cst_57 = arith.constant dense<0.000000e+00> : vector<8x96xf32>
    %35 = tpu.matmul %34, %2, %cst_57 {dimension_numbers = #tpu.dot_dimension_numbers<[1], [0], [0], [1], [0, 0, 1, 1], [], []>} : vector<8x32xf32>, vector<32x96xf32>, vector<8x96xf32> -> vector<8x96xf32>
    %36 = vector.extract_strided_slice %30 {offsets = [0, 0], sizes = [8, 64], strides = [1, 1]} : vector<64x64xf32> to vector<8x64xf32>
    %37 = vector.extract_strided_slice %35 {offsets = [0, 0], sizes = [8, 64], strides = [1, 1]} : vector<8x96xf32> to vector<8x64xf32>
    %38 = arith.addf %36, %37 : vector<8x64xf32>
    %39 = arith.negf %38 : vector<8x64xf32>
    %40 = math.exp %39 : vector<8x64xf32>
    %cst_58 = arith.constant 1.000000e+00 : f32
    %41 = vector.broadcast %cst_58 : f32 to vector<8x64xf32>
    %42 = arith.addf %41, %40 : vector<8x64xf32>
    %43 = arith.divf %41, %42 : vector<8x64xf32>
    %44 = vector.extract_strided_slice %43 {offsets = [0, 0], sizes = [8, 32], strides = [1, 1]} : vector<8x64xf32> to vector<8x32xf32>
    %45 = vector.extract_strided_slice %43 {offsets = [0, 32], sizes = [8, 32], strides = [1, 1]} : vector<8x64xf32> to vector<8x32xf32>
    %46 = vector.extract_strided_slice %33 {offsets = [0, 0], sizes = [8, 32], strides = [1, 1]} : vector<64x32xf32> to vector<8x32xf32>
    %47 = vector.extract_strided_slice %35 {offsets = [0, 64], sizes = [8, 32], strides = [1, 1]} : vector<8x96xf32> to vector<8x32xf32>
    %48 = vector.broadcast %5 : vector<1x32xf32> to vector<8x32xf32>
    %49 = arith.addf %47, %48 : vector<8x32xf32>
    %50 = arith.mulf %44, %49 : vector<8x32xf32>
    %51 = arith.addf %46, %50 : vector<8x32xf32>
    %52 = math.tanh %51 : vector<8x32xf32>
    %cst_59 = arith.constant 1.000000e+00 : f32
    %53 = vector.broadcast %cst_59 : f32 to vector<8x32xf32>
    %54 = arith.subf %53, %45 : vector<8x32xf32>
    %55 = arith.mulf %54, %52 : vector<8x32xf32>
    %56 = arith.mulf %45, %34 : vector<8x32xf32>
    %57 = arith.addf %55, %56 : vector<8x32xf32>
    %c0_60 = arith.constant 0 : index
    %c0_61 = arith.constant 0 : index
    %58 = vector.load %arg29[%c0_60, %c0_61] : memref<64x32xf32, #tpu.memory_space<vmem>>, vector<8x32xf32>
    tpu.vector_store %arg29[%c0_60, %c0_61], %57 {strides = array<i32>} : memref<64x32xf32, #tpu.memory_space<vmem>>, vector<8x32xf32>,
    %cst_62 = arith.constant dense<0.000000e+00> : vector<8x96xf32>
    %59 = tpu.matmul %57, %2, %cst_62 {dimension_numbers = #tpu.dot_dimension_numbers<[1], [0], [0], [1], [0, 0, 1, 1], [], []>} : vector<8x32xf32>, vector<32x96xf32>, vector<8x96xf32> -> vector<8x96xf32>
    %60 = vector.extract_strided_slice %30 {offsets = [8, 0], sizes = [8, 64], strides = [1, 1]} : vector<64x64xf32> to vector<8x64xf32>
    %61 = vector.extract_strided_slice %59 {offsets = [0, 0], sizes = [8, 64], strides = [1, 1]} : vector<8x96xf32> to vector<8x64xf32>
    %62 = arith.addf %60, %61 : vector<8x64xf32>
    %63 = arith.negf %62 : vector<8x64xf32>
    %64 = math.exp %63 : vector<8x64xf32>
    %cst_63 = arith.constant 1.000000e+00 : f32
    %65 = vector.broadcast %cst_63 : f32 to vector<8x64xf32>
    %66 = arith.addf %65, %64 : vector<8x64xf32>
    %67 = arith.divf %65, %66 : vector<8x64xf32>
    %68 = vector.extract_strided_slice %67 {offsets = [0, 0], sizes = [8, 32], strides = [1, 1]} : vector<8x64xf32> to vector<8x32xf32>
    %69 = vector.extract_strided_slice %67 {offsets = [0, 32], sizes = [8, 32], strides = [1, 1]} : vector<8x64xf32> to vector<8x32xf32>
    %70 = vector.extract_strided_slice %33 {offsets = [8, 0], sizes = [8, 32], strides = [1, 1]} : vector<64x32xf32> to vector<8x32xf32>
    %71 = vector.extract_strided_slice %59 {offsets = [0, 64], sizes = [8, 32], strides = [1, 1]} : vector<8x96xf32> to vector<8x32xf32>
    %72 = vector.broadcast %5 : vector<1x32xf32> to vector<8x32xf32>
    %73 = arith.addf %71, %72 : vector<8x32xf32>
    %74 = arith.mulf %68, %73 : vector<8x32xf32>
    %75 = arith.addf %70, %74 : vector<8x32xf32>
    %76 = math.tanh %75 : vector<8x32xf32>
    %cst_64 = arith.constant 1.000000e+00 : f32
    %77 = vector.broadcast %cst_64 : f32 to vector<8x32xf32>
    %78 = arith.subf %77, %69 : vector<8x32xf32>
    %79 = arith.mulf %78, %76 : vector<8x32xf32>
    %80 = arith.mulf %69, %57 : vector<8x32xf32>
    %81 = arith.addf %79, %80 : vector<8x32xf32>
    %c8 = arith.constant 8 : index
    %c0_65 = arith.constant 0 : index
    %82 = vector.load %arg29[%c8, %c0_65] : memref<64x32xf32, #tpu.memory_space<vmem>>, vector<8x32xf32>
    tpu.vector_store %arg29[%c8, %c0_65], %81 {strides = array<i32>} : memref<64x32xf32, #tpu.memory_space<vmem>>, vector<8x32xf32>,
    %cst_66 = arith.constant dense<0.000000e+00> : vector<8x96xf32>
    %83 = tpu.matmul %81, %2, %cst_66 {dimension_numbers = #tpu.dot_dimension_numbers<[1], [0], [0], [1], [0, 0, 1, 1], [], []>} : vector<8x32xf32>, vector<32x96xf32>, vector<8x96xf32> -> vector<8x96xf32>
    %84 = vector.extract_strided_slice %30 {offsets = [16, 0], sizes = [8, 64], strides = [1, 1]} : vector<64x64xf32> to vector<8x64xf32>
    %85 = vector.extract_strided_slice %83 {offsets = [0, 0], sizes = [8, 64], strides = [1, 1]} : vector<8x96xf32> to vector<8x64xf32>
    %86 = arith.addf %84, %85 : vector<8x64xf32>
    %87 = arith.negf %86 : vector<8x64xf32>
    %88 = math.exp %87 : vector<8x64xf32>
    %cst_67 = arith.constant 1.000000e+00 : f32
    %89 = vector.broadcast %cst_67 : f32 to vector<8x64xf32>
    %90 = arith.addf %89, %88 : vector<8x64xf32>
    %91 = arith.divf %89, %90 : vector<8x64xf32>
    %92 = vector.extract_strided_slice %91 {offsets = [0, 0], sizes = [8, 32], strides = [1, 1]} : vector<8x64xf32> to vector<8x32xf32>
    %93 = vector.extract_strided_slice %91 {offsets = [0, 32], sizes = [8, 32], strides = [1, 1]} : vector<8x64xf32> to vector<8x32xf32>
    %94 = vector.extract_strided_slice %33 {offsets = [16, 0], sizes = [8, 32], strides = [1, 1]} : vector<64x32xf32> to vector<8x32xf32>
    %95 = vector.extract_strided_slice %83 {offsets = [0, 64], sizes = [8, 32], strides = [1, 1]} : vector<8x96xf32> to vector<8x32xf32>
    %96 = vector.broadcast %5 : vector<1x32xf32> to vector<8x32xf32>
    %97 = arith.addf %95, %96 : vector<8x32xf32>
    %98 = arith.mulf %92, %97 : vector<8x32xf32>
    %99 = arith.addf %94, %98 : vector<8x32xf32>
    %100 = math.tanh %99 : vector<8x32xf32>
    %cst_68 = arith.constant 1.000000e+00 : f32
    %101 = vector.broadcast %cst_68 : f32 to vector<8x32xf32>
    %102 = arith.subf %101, %93 : vector<8x32xf32>
    %103 = arith.mulf %102, %100 : vector<8x32xf32>
    %104 = arith.mulf %93, %81 : vector<8x32xf32>
    %105 = arith.addf %103, %104 : vector<8x32xf32>
    %c16 = arith.constant 16 : index
    %c0_69 = arith.constant 0 : index
    %106 = vector.load %arg29[%c16, %c0_69] : memref<64x32xf32, #tpu.memory_space<vmem>>, vector<8x32xf32>
    tpu.vector_store %arg29[%c16, %c0_69], %105 {strides = array<i32>} : memref<64x32xf32, #tpu.memory_space<vmem>>, vector<8x32xf32>,
    %cst_70 = arith.constant dense<0.000000e+00> : vector<8x96xf32>
    %107 = tpu.matmul %105, %2, %cst_70 {dimension_numbers = #tpu.dot_dimension_numbers<[1], [0], [0], [1], [0, 0, 1, 1], [], []>} : vector<8x32xf32>, vector<32x96xf32>, vector<8x96xf32> -> vector<8x96xf32>
    %108 = vector.extract_strided_slice %30 {offsets = [24, 0], sizes = [8, 64], strides = [1, 1]} : vector<64x64xf32> to vector<8x64xf32>
    %109 = vector.extract_strided_slice %107 {offsets = [0, 0], sizes = [8, 64], strides = [1, 1]} : vector<8x96xf32> to vector<8x64xf32>
    %110 = arith.addf %108, %109 : vector<8x64xf32>
    %111 = arith.negf %110 : vector<8x64xf32>
    %112 = math.exp %111 : vector<8x64xf32>
    %cst_71 = arith.constant 1.000000e+00 : f32
    %113 = vector.broadcast %cst_71 : f32 to vector<8x64xf32>
    %114 = arith.addf %113, %112 : vector<8x64xf32>
    %115 = arith.divf %113, %114 : vector<8x64xf32>
    %116 = vector.extract_strided_slice %115 {offsets = [0, 0], sizes = [8, 32], strides = [1, 1]} : vector<8x64xf32> to vector<8x32xf32>
    %117 = vector.extract_strided_slice %115 {offsets = [0, 32], sizes = [8, 32], strides = [1, 1]} : vector<8x64xf32> to vector<8x32xf32>
    %118 = vector.extract_strided_slice %33 {offsets = [24, 0], sizes = [8, 32], strides = [1, 1]} : vector<64x32xf32> to vector<8x32xf32>
    %119 = vector.extract_strided_slice %107 {offsets = [0, 64], sizes = [8, 32], strides = [1, 1]} : vector<8x96xf32> to vector<8x32xf32>
    %120 = vector.broadcast %5 : vector<1x32xf32> to vector<8x32xf32>
    %121 = arith.addf %119, %120 : vector<8x32xf32>
    %122 = arith.mulf %116, %121 : vector<8x32xf32>
    %123 = arith.addf %118, %122 : vector<8x32xf32>
    %124 = math.tanh %123 : vector<8x32xf32>
    %cst_72 = arith.constant 1.000000e+00 : f32
    %125 = vector.broadcast %cst_72 : f32 to vector<8x32xf32>
    %126 = arith.subf %125, %117 : vector<8x32xf32>
    %127 = arith.mulf %126, %124 : vector<8x32xf32>
    %128 = arith.mulf %117, %105 : vector<8x32xf32>
    %129 = arith.addf %127, %128 : vector<8x32xf32>
    %c24 = arith.constant 24 : index
    %c0_73 = arith.constant 0 : index
    %130 = vector.load %arg29[%c24, %c0_73] : memref<64x32xf32, #tpu.memory_space<vmem>>, vector<8x32xf32>
    tpu.vector_store %arg29[%c24, %c0_73], %129 {strides = array<i32>} : memref<64x32xf32, #tpu.memory_space<vmem>>, vector<8x32xf32>,
    %cst_74 = arith.constant dense<0.000000e+00> : vector<8x96xf32>
    %131 = tpu.matmul %129, %2, %cst_74 {dimension_numbers = #tpu.dot_dimension_numbers<[1], [0], [0], [1], [0, 0, 1, 1], [], []>} : vector<8x32xf32>, vector<32x96xf32>, vector<8x96xf32> -> vector<8x96xf32>
    %132 = vector.extract_strided_slice %30 {offsets = [32, 0], sizes = [8, 64], strides = [1, 1]} : vector<64x64xf32> to vector<8x64xf32>
    %133 = vector.extract_strided_slice %131 {offsets = [0, 0], sizes = [8, 64], strides = [1, 1]} : vector<8x96xf32> to vector<8x64xf32>
    %134 = arith.addf %132, %133 : vector<8x64xf32>
    %135 = arith.negf %134 : vector<8x64xf32>
    %136 = math.exp %135 : vector<8x64xf32>
    %cst_75 = arith.constant 1.000000e+00 : f32
    %137 = vector.broadcast %cst_75 : f32 to vector<8x64xf32>
    %138 = arith.addf %137, %136 : vector<8x64xf32>
    %139 = arith.divf %137, %138 : vector<8x64xf32>
    %140 = vector.extract_strided_slice %139 {offsets = [0, 0], sizes = [8, 32], strides = [1, 1]} : vector<8x64xf32> to vector<8x32xf32>
    %141 = vector.extract_strided_slice %139 {offsets = [0, 32], sizes = [8, 32], strides = [1, 1]} : vector<8x64xf32> to vector<8x32xf32>
    %142 = vector.extract_strided_slice %33 {offsets = [32, 0], sizes = [8, 32], strides = [1, 1]} : vector<64x32xf32> to vector<8x32xf32>
    %143 = vector.extract_strided_slice %131 {offsets = [0, 64], sizes = [8, 32], strides = [1, 1]} : vector<8x96xf32> to vector<8x32xf32>
    %144 = vector.broadcast %5 : vector<1x32xf32> to vector<8x32xf32>
    %145 = arith.addf %143, %144 : vector<8x32xf32>
    %146 = arith.mulf %140, %145 : vector<8x32xf32>
    %147 = arith.addf %142, %146 : vector<8x32xf32>
    %148 = math.tanh %147 : vector<8x32xf32>
    %cst_76 = arith.constant 1.000000e+00 : f32
    %149 = vector.broadcast %cst_76 : f32 to vector<8x32xf32>
    %150 = arith.subf %149, %141 : vector<8x32xf32>
    %151 = arith.mulf %150, %148 : vector<8x32xf32>
    %152 = arith.mulf %141, %129 : vector<8x32xf32>
    %153 = arith.addf %151, %152 : vector<8x32xf32>
    %c32 = arith.constant 32 : index
    %c0_77 = arith.constant 0 : index
    %154 = vector.load %arg29[%c32, %c0_77] : memref<64x32xf32, #tpu.memory_space<vmem>>, vector<8x32xf32>
    tpu.vector_store %arg29[%c32, %c0_77], %153 {strides = array<i32>} : memref<64x32xf32, #tpu.memory_space<vmem>>, vector<8x32xf32>,
    %cst_78 = arith.constant dense<0.000000e+00> : vector<8x96xf32>
    %155 = tpu.matmul %153, %2, %cst_78 {dimension_numbers = #tpu.dot_dimension_numbers<[1], [0], [0], [1], [0, 0, 1, 1], [], []>} : vector<8x32xf32>, vector<32x96xf32>, vector<8x96xf32> -> vector<8x96xf32>
    %156 = vector.extract_strided_slice %30 {offsets = [40, 0], sizes = [8, 64], strides = [1, 1]} : vector<64x64xf32> to vector<8x64xf32>
    %157 = vector.extract_strided_slice %155 {offsets = [0, 0], sizes = [8, 64], strides = [1, 1]} : vector<8x96xf32> to vector<8x64xf32>
    %158 = arith.addf %156, %157 : vector<8x64xf32>
    %159 = arith.negf %158 : vector<8x64xf32>
    %160 = math.exp %159 : vector<8x64xf32>
    %cst_79 = arith.constant 1.000000e+00 : f32
    %161 = vector.broadcast %cst_79 : f32 to vector<8x64xf32>
    %162 = arith.addf %161, %160 : vector<8x64xf32>
    %163 = arith.divf %161, %162 : vector<8x64xf32>
    %164 = vector.extract_strided_slice %163 {offsets = [0, 0], sizes = [8, 32], strides = [1, 1]} : vector<8x64xf32> to vector<8x32xf32>
    %165 = vector.extract_strided_slice %163 {offsets = [0, 32], sizes = [8, 32], strides = [1, 1]} : vector<8x64xf32> to vector<8x32xf32>
    %166 = vector.extract_strided_slice %33 {offsets = [40, 0], sizes = [8, 32], strides = [1, 1]} : vector<64x32xf32> to vector<8x32xf32>
    %167 = vector.extract_strided_slice %155 {offsets = [0, 64], sizes = [8, 32], strides = [1, 1]} : vector<8x96xf32> to vector<8x32xf32>
    %168 = vector.broadcast %5 : vector<1x32xf32> to vector<8x32xf32>
    %169 = arith.addf %167, %168 : vector<8x32xf32>
    %170 = arith.mulf %164, %169 : vector<8x32xf32>
    %171 = arith.addf %166, %170 : vector<8x32xf32>
    %172 = math.tanh %171 : vector<8x32xf32>
    %cst_80 = arith.constant 1.000000e+00 : f32
    %173 = vector.broadcast %cst_80 : f32 to vector<8x32xf32>
    %174 = arith.subf %173, %165 : vector<8x32xf32>
    %175 = arith.mulf %174, %172 : vector<8x32xf32>
    %176 = arith.mulf %165, %153 : vector<8x32xf32>
    %177 = arith.addf %175, %176 : vector<8x32xf32>
    %c40 = arith.constant 40 : index
    %c0_81 = arith.constant 0 : index
    %178 = vector.load %arg29[%c40, %c0_81] : memref<64x32xf32, #tpu.memory_space<vmem>>, vector<8x32xf32>
    tpu.vector_store %arg29[%c40, %c0_81], %177 {strides = array<i32>} : memref<64x32xf32, #tpu.memory_space<vmem>>, vector<8x32xf32>,
    %cst_82 = arith.constant dense<0.000000e+00> : vector<8x96xf32>
    %179 = tpu.matmul %177, %2, %cst_82 {dimension_numbers = #tpu.dot_dimension_numbers<[1], [0], [0], [1], [0, 0, 1, 1], [], []>} : vector<8x32xf32>, vector<32x96xf32>, vector<8x96xf32> -> vector<8x96xf32>
    %180 = vector.extract_strided_slice %30 {offsets = [48, 0], sizes = [8, 64], strides = [1, 1]} : vector<64x64xf32> to vector<8x64xf32>
    %181 = vector.extract_strided_slice %179 {offsets = [0, 0], sizes = [8, 64], strides = [1, 1]} : vector<8x96xf32> to vector<8x64xf32>
    %182 = arith.addf %180, %181 : vector<8x64xf32>
    %183 = arith.negf %182 : vector<8x64xf32>
    %184 = math.exp %183 : vector<8x64xf32>
    %cst_83 = arith.constant 1.000000e+00 : f32
    %185 = vector.broadcast %cst_83 : f32 to vector<8x64xf32>
    %186 = arith.addf %185, %184 : vector<8x64xf32>
    %187 = arith.divf %185, %186 : vector<8x64xf32>
    %188 = vector.extract_strided_slice %187 {offsets = [0, 0], sizes = [8, 32], strides = [1, 1]} : vector<8x64xf32> to vector<8x32xf32>
    %189 = vector.extract_strided_slice %187 {offsets = [0, 32], sizes = [8, 32], strides = [1, 1]} : vector<8x64xf32> to vector<8x32xf32>
    %190 = vector.extract_strided_slice %33 {offsets = [48, 0], sizes = [8, 32], strides = [1, 1]} : vector<64x32xf32> to vector<8x32xf32>
    %191 = vector.extract_strided_slice %179 {offsets = [0, 64], sizes = [8, 32], strides = [1, 1]} : vector<8x96xf32> to vector<8x32xf32>
    %192 = vector.broadcast %5 : vector<1x32xf32> to vector<8x32xf32>
    %193 = arith.addf %191, %192 : vector<8x32xf32>
    %194 = arith.mulf %188, %193 : vector<8x32xf32>
    %195 = arith.addf %190, %194 : vector<8x32xf32>
    %196 = math.tanh %195 : vector<8x32xf32>
    %cst_84 = arith.constant 1.000000e+00 : f32
    %197 = vector.broadcast %cst_84 : f32 to vector<8x32xf32>
    %198 = arith.subf %197, %189 : vector<8x32xf32>
    %199 = arith.mulf %198, %196 : vector<8x32xf32>
    %200 = arith.mulf %189, %177 : vector<8x32xf32>
    %201 = arith.addf %199, %200 : vector<8x32xf32>
    %c48 = arith.constant 48 : index
    %c0_85 = arith.constant 0 : index
    %202 = vector.load %arg29[%c48, %c0_85] : memref<64x32xf32, #tpu.memory_space<vmem>>, vector<8x32xf32>
    tpu.vector_store %arg29[%c48, %c0_85], %201 {strides = array<i32>} : memref<64x32xf32, #tpu.memory_space<vmem>>, vector<8x32xf32>,
    %cst_86 = arith.constant dense<0.000000e+00> : vector<8x96xf32>
    %203 = tpu.matmul %201, %2, %cst_86 {dimension_numbers = #tpu.dot_dimension_numbers<[1], [0], [0], [1], [0, 0, 1, 1], [], []>} : vector<8x32xf32>, vector<32x96xf32>, vector<8x96xf32> -> vector<8x96xf32>
    %204 = vector.extract_strided_slice %30 {offsets = [56, 0], sizes = [8, 64], strides = [1, 1]} : vector<64x64xf32> to vector<8x64xf32>
    %205 = vector.extract_strided_slice %203 {offsets = [0, 0], sizes = [8, 64], strides = [1, 1]} : vector<8x96xf32> to vector<8x64xf32>
    %206 = arith.addf %204, %205 : vector<8x64xf32>
    %207 = arith.negf %206 : vector<8x64xf32>
    %208 = math.exp %207 : vector<8x64xf32>
    %cst_87 = arith.constant 1.000000e+00 : f32
    %209 = vector.broadcast %cst_87 : f32 to vector<8x64xf32>
    %210 = arith.addf %209, %208 : vector<8x64xf32>
    %211 = arith.divf %209, %210 : vector<8x64xf32>
    %212 = vector.extract_strided_slice %211 {offsets = [0, 0], sizes = [8, 32], strides = [1, 1]} : vector<8x64xf32> to vector<8x32xf32>
    %213 = vector.extract_strided_slice %211 {offsets = [0, 32], sizes = [8, 32], strides = [1, 1]} : vector<8x64xf32> to vector<8x32xf32>
    %214 = vector.extract_strided_slice %33 {offsets = [56, 0], sizes = [8, 32], strides = [1, 1]} : vector<64x32xf32> to vector<8x32xf32>
    %215 = vector.extract_strided_slice %203 {offsets = [0, 64], sizes = [8, 32], strides = [1, 1]} : vector<8x96xf32> to vector<8x32xf32>
    %216 = vector.broadcast %5 : vector<1x32xf32> to vector<8x32xf32>
    %217 = arith.addf %215, %216 : vector<8x32xf32>
    %218 = arith.mulf %212, %217 : vector<8x32xf32>
    %219 = arith.addf %214, %218 : vector<8x32xf32>
    %220 = math.tanh %219 : vector<8x32xf32>
    %cst_88 = arith.constant 1.000000e+00 : f32
    %221 = vector.broadcast %cst_88 : f32 to vector<8x32xf32>
    %222 = arith.subf %221, %213 : vector<8x32xf32>
    %223 = arith.mulf %222, %220 : vector<8x32xf32>
    %224 = arith.mulf %213, %201 : vector<8x32xf32>
    %225 = arith.addf %223, %224 : vector<8x32xf32>
    %c56 = arith.constant 56 : index
    %c0_89 = arith.constant 0 : index
    %226 = vector.load %arg29[%c56, %c0_89] : memref<64x32xf32, #tpu.memory_space<vmem>>, vector<8x32xf32>
    tpu.vector_store %arg29[%c56, %c0_89], %225 {strides = array<i32>} : memref<64x32xf32, #tpu.memory_space<vmem>>, vector<8x32xf32>,
    %c0_90 = arith.constant 0 : index
    %c0_91 = arith.constant 0 : index
    %227 = vector.load %arg29[%c0_90, %c0_91] : memref<64x32xf32, #tpu.memory_space<vmem>>, vector<64x32xf32>
    %cst_92 = arith.constant dense<0.000000e+00> : vector<64x64xf32>
    %228 = tpu.matmul %227, %6, %cst_92 {dimension_numbers = #tpu.dot_dimension_numbers<[1], [0], [0], [1], [0, 0, 1, 1], [], []>} : vector<64x32xf32>, vector<32x64xf32>, vector<64x64xf32> -> vector<64x64xf32>
    %229 = vector.broadcast %9 : vector<1x64xf32> to vector<64x64xf32>
    %230 = arith.addf %228, %229 : vector<64x64xf32>
    %cst_93 = arith.constant dense<0.000000e+00> : vector<64x32xf32>
    %231 = tpu.matmul %227, %7, %cst_93 {dimension_numbers = #tpu.dot_dimension_numbers<[1], [0], [0], [1], [0, 0, 1, 1], [], []>} : vector<64x32xf32>, vector<32x32xf32>, vector<64x32xf32> -> vector<64x32xf32>
    %232 = vector.broadcast %10 : vector<1x32xf32> to vector<64x32xf32>
    %233 = arith.addf %231, %232 : vector<64x32xf32>
    %cst_94 = arith.constant 0.000000e+00 : f32
    %234 = vector.broadcast %cst_94 : f32 to vector<8x32xf32>
    %cst_95 = arith.constant dense<0.000000e+00> : vector<8x96xf32>
    %235 = tpu.matmul %234, %8, %cst_95 {dimension_numbers = #tpu.dot_dimension_numbers<[1], [0], [0], [1], [0, 0, 1, 1], [], []>} : vector<8x32xf32>, vector<32x96xf32>, vector<8x96xf32> -> vector<8x96xf32>
    %236 = vector.extract_strided_slice %230 {offsets = [0, 0], sizes = [8, 64], strides = [1, 1]} : vector<64x64xf32> to vector<8x64xf32>
    %237 = vector.extract_strided_slice %235 {offsets = [0, 0], sizes = [8, 64], strides = [1, 1]} : vector<8x96xf32> to vector<8x64xf32>
    %238 = arith.addf %236, %237 : vector<8x64xf32>
    %239 = arith.negf %238 : vector<8x64xf32>
    %240 = math.exp %239 : vector<8x64xf32>
    %cst_96 = arith.constant 1.000000e+00 : f32
    %241 = vector.broadcast %cst_96 : f32 to vector<8x64xf32>
    %242 = arith.addf %241, %240 : vector<8x64xf32>
    %243 = arith.divf %241, %242 : vector<8x64xf32>
    %244 = vector.extract_strided_slice %243 {offsets = [0, 0], sizes = [8, 32], strides = [1, 1]} : vector<8x64xf32> to vector<8x32xf32>
    %245 = vector.extract_strided_slice %243 {offsets = [0, 32], sizes = [8, 32], strides = [1, 1]} : vector<8x64xf32> to vector<8x32xf32>
    %246 = vector.extract_strided_slice %233 {offsets = [0, 0], sizes = [8, 32], strides = [1, 1]} : vector<64x32xf32> to vector<8x32xf32>
    %247 = vector.extract_strided_slice %235 {offsets = [0, 64], sizes = [8, 32], strides = [1, 1]} : vector<8x96xf32> to vector<8x32xf32>
    %248 = vector.broadcast %11 : vector<1x32xf32> to vector<8x32xf32>
    %249 = arith.addf %247, %248 : vector<8x32xf32>
    %250 = arith.mulf %244, %249 : vector<8x32xf32>
    %251 = arith.addf %246, %250 : vector<8x32xf32>
    %252 = math.tanh %251 : vector<8x32xf32>
    %cst_97 = arith.constant 1.000000e+00 : f32
    %253 = vector.broadcast %cst_97 : f32 to vector<8x32xf32>
    %254 = arith.subf %253, %245 : vector<8x32xf32>
    %255 = arith.mulf %254, %252 : vector<8x32xf32>
    %256 = arith.mulf %245, %234 : vector<8x32xf32>
    %257 = arith.addf %255, %256 : vector<8x32xf32>
    %cst_98 = arith.constant dense<0.000000e+00> : vector<8x96xf32>
    %258 = tpu.matmul %257, %8, %cst_98 {dimension_numbers = #tpu.dot_dimension_numbers<[1], [0], [0], [1], [0, 0, 1, 1], [], []>} : vector<8x32xf32>, vector<32x96xf32>, vector<8x96xf32> -> vector<8x96xf32>
    %259 = vector.extract_strided_slice %230 {offsets = [8, 0], sizes = [8, 64], strides = [1, 1]} : vector<64x64xf32> to vector<8x64xf32>
    %260 = vector.extract_strided_slice %258 {offsets = [0, 0], sizes = [8, 64], strides = [1, 1]} : vector<8x96xf32> to vector<8x64xf32>
    %261 = arith.addf %259, %260 : vector<8x64xf32>
    %262 = arith.negf %261 : vector<8x64xf32>
    %263 = math.exp %262 : vector<8x64xf32>
    %cst_99 = arith.constant 1.000000e+00 : f32
    %264 = vector.broadcast %cst_99 : f32 to vector<8x64xf32>
    %265 = arith.addf %264, %263 : vector<8x64xf32>
    %266 = arith.divf %264, %265 : vector<8x64xf32>
    %267 = vector.extract_strided_slice %266 {offsets = [0, 0], sizes = [8, 32], strides = [1, 1]} : vector<8x64xf32> to vector<8x32xf32>
    %268 = vector.extract_strided_slice %266 {offsets = [0, 32], sizes = [8, 32], strides = [1, 1]} : vector<8x64xf32> to vector<8x32xf32>
    %269 = vector.extract_strided_slice %233 {offsets = [8, 0], sizes = [8, 32], strides = [1, 1]} : vector<64x32xf32> to vector<8x32xf32>
    %270 = vector.extract_strided_slice %258 {offsets = [0, 64], sizes = [8, 32], strides = [1, 1]} : vector<8x96xf32> to vector<8x32xf32>
    %271 = vector.broadcast %11 : vector<1x32xf32> to vector<8x32xf32>
    %272 = arith.addf %270, %271 : vector<8x32xf32>
    %273 = arith.mulf %267, %272 : vector<8x32xf32>
    %274 = arith.addf %269, %273 : vector<8x32xf32>
    %275 = math.tanh %274 : vector<8x32xf32>
    %cst_100 = arith.constant 1.000000e+00 : f32
    %276 = vector.broadcast %cst_100 : f32 to vector<8x32xf32>
    %277 = arith.subf %276, %268 : vector<8x32xf32>
    %278 = arith.mulf %277, %275 : vector<8x32xf32>
    %279 = arith.mulf %268, %257 : vector<8x32xf32>
    %280 = arith.addf %278, %279 : vector<8x32xf32>
    %cst_101 = arith.constant dense<0.000000e+00> : vector<8x96xf32>
    %281 = tpu.matmul %280, %8, %cst_101 {dimension_numbers = #tpu.dot_dimension_numbers<[1], [0], [0], [1], [0, 0, 1, 1], [], []>} : vector<8x32xf32>, vector<32x96xf32>, vector<8x96xf32> -> vector<8x96xf32>
    %282 = vector.extract_strided_slice %230 {offsets = [16, 0], sizes = [8, 64], strides = [1, 1]} : vector<64x64xf32> to vector<8x64xf32>
    %283 = vector.extract_strided_slice %281 {offsets = [0, 0], sizes = [8, 64], strides = [1, 1]} : vector<8x96xf32> to vector<8x64xf32>
    %284 = arith.addf %282, %283 : vector<8x64xf32>
    %285 = arith.negf %284 : vector<8x64xf32>
    %286 = math.exp %285 : vector<8x64xf32>
    %cst_102 = arith.constant 1.000000e+00 : f32
    %287 = vector.broadcast %cst_102 : f32 to vector<8x64xf32>
    %288 = arith.addf %287, %286 : vector<8x64xf32>
    %289 = arith.divf %287, %288 : vector<8x64xf32>
    %290 = vector.extract_strided_slice %289 {offsets = [0, 0], sizes = [8, 32], strides = [1, 1]} : vector<8x64xf32> to vector<8x32xf32>
    %291 = vector.extract_strided_slice %289 {offsets = [0, 32], sizes = [8, 32], strides = [1, 1]} : vector<8x64xf32> to vector<8x32xf32>
    %292 = vector.extract_strided_slice %233 {offsets = [16, 0], sizes = [8, 32], strides = [1, 1]} : vector<64x32xf32> to vector<8x32xf32>
    %293 = vector.extract_strided_slice %281 {offsets = [0, 64], sizes = [8, 32], strides = [1, 1]} : vector<8x96xf32> to vector<8x32xf32>
    %294 = vector.broadcast %11 : vector<1x32xf32> to vector<8x32xf32>
    %295 = arith.addf %293, %294 : vector<8x32xf32>
    %296 = arith.mulf %290, %295 : vector<8x32xf32>
    %297 = arith.addf %292, %296 : vector<8x32xf32>
    %298 = math.tanh %297 : vector<8x32xf32>
    %cst_103 = arith.constant 1.000000e+00 : f32
    %299 = vector.broadcast %cst_103 : f32 to vector<8x32xf32>
    %300 = arith.subf %299, %291 : vector<8x32xf32>
    %301 = arith.mulf %300, %298 : vector<8x32xf32>
    %302 = arith.mulf %291, %280 : vector<8x32xf32>
    %303 = arith.addf %301, %302 : vector<8x32xf32>
    %cst_104 = arith.constant dense<0.000000e+00> : vector<8x96xf32>
    %304 = tpu.matmul %303, %8, %cst_104 {dimension_numbers = #tpu.dot_dimension_numbers<[1], [0], [0], [1], [0, 0, 1, 1], [], []>} : vector<8x32xf32>, vector<32x96xf32>, vector<8x96xf32> -> vector<8x96xf32>
    %305 = vector.extract_strided_slice %230 {offsets = [24, 0], sizes = [8, 64], strides = [1, 1]} : vector<64x64xf32> to vector<8x64xf32>
    %306 = vector.extract_strided_slice %304 {offsets = [0, 0], sizes = [8, 64], strides = [1, 1]} : vector<8x96xf32> to vector<8x64xf32>
    %307 = arith.addf %305, %306 : vector<8x64xf32>
    %308 = arith.negf %307 : vector<8x64xf32>
    %309 = math.exp %308 : vector<8x64xf32>
    %cst_105 = arith.constant 1.000000e+00 : f32
    %310 = vector.broadcast %cst_105 : f32 to vector<8x64xf32>
    %311 = arith.addf %310, %309 : vector<8x64xf32>
    %312 = arith.divf %310, %311 : vector<8x64xf32>
    %313 = vector.extract_strided_slice %312 {offsets = [0, 0], sizes = [8, 32], strides = [1, 1]} : vector<8x64xf32> to vector<8x32xf32>
    %314 = vector.extract_strided_slice %312 {offsets = [0, 32], sizes = [8, 32], strides = [1, 1]} : vector<8x64xf32> to vector<8x32xf32>
    %315 = vector.extract_strided_slice %233 {offsets = [24, 0], sizes = [8, 32], strides = [1, 1]} : vector<64x32xf32> to vector<8x32xf32>
    %316 = vector.extract_strided_slice %304 {offsets = [0, 64], sizes = [8, 32], strides = [1, 1]} : vector<8x96xf32> to vector<8x32xf32>
    %317 = vector.broadcast %11 : vector<1x32xf32> to vector<8x32xf32>
    %318 = arith.addf %316, %317 : vector<8x32xf32>
    %319 = arith.mulf %313, %318 : vector<8x32xf32>
    %320 = arith.addf %315, %319 : vector<8x32xf32>
    %321 = math.tanh %320 : vector<8x32xf32>
    %cst_106 = arith.constant 1.000000e+00 : f32
    %322 = vector.broadcast %cst_106 : f32 to vector<8x32xf32>
    %323 = arith.subf %322, %314 : vector<8x32xf32>
    %324 = arith.mulf %323, %321 : vector<8x32xf32>
    %325 = arith.mulf %314, %303 : vector<8x32xf32>
    %326 = arith.addf %324, %325 : vector<8x32xf32>
    %cst_107 = arith.constant dense<0.000000e+00> : vector<8x96xf32>
    %327 = tpu.matmul %326, %8, %cst_107 {dimension_numbers = #tpu.dot_dimension_numbers<[1], [0], [0], [1], [0, 0, 1, 1], [], []>} : vector<8x32xf32>, vector<32x96xf32>, vector<8x96xf32> -> vector<8x96xf32>
    %328 = vector.extract_strided_slice %230 {offsets = [32, 0], sizes = [8, 64], strides = [1, 1]} : vector<64x64xf32> to vector<8x64xf32>
    %329 = vector.extract_strided_slice %327 {offsets = [0, 0], sizes = [8, 64], strides = [1, 1]} : vector<8x96xf32> to vector<8x64xf32>
    %330 = arith.addf %328, %329 : vector<8x64xf32>
    %331 = arith.negf %330 : vector<8x64xf32>
    %332 = math.exp %331 : vector<8x64xf32>
    %cst_108 = arith.constant 1.000000e+00 : f32
    %333 = vector.broadcast %cst_108 : f32 to vector<8x64xf32>
    %334 = arith.addf %333, %332 : vector<8x64xf32>
    %335 = arith.divf %333, %334 : vector<8x64xf32>
    %336 = vector.extract_strided_slice %335 {offsets = [0, 0], sizes = [8, 32], strides = [1, 1]} : vector<8x64xf32> to vector<8x32xf32>
    %337 = vector.extract_strided_slice %335 {offsets = [0, 32], sizes = [8, 32], strides = [1, 1]} : vector<8x64xf32> to vector<8x32xf32>
    %338 = vector.extract_strided_slice %233 {offsets = [32, 0], sizes = [8, 32], strides = [1, 1]} : vector<64x32xf32> to vector<8x32xf32>
    %339 = vector.extract_strided_slice %327 {offsets = [0, 64], sizes = [8, 32], strides = [1, 1]} : vector<8x96xf32> to vector<8x32xf32>
    %340 = vector.broadcast %11 : vector<1x32xf32> to vector<8x32xf32>
    %341 = arith.addf %339, %340 : vector<8x32xf32>
    %342 = arith.mulf %336, %341 : vector<8x32xf32>
    %343 = arith.addf %338, %342 : vector<8x32xf32>
    %344 = math.tanh %343 : vector<8x32xf32>
    %cst_109 = arith.constant 1.000000e+00 : f32
    %345 = vector.broadcast %cst_109 : f32 to vector<8x32xf32>
    %346 = arith.subf %345, %337 : vector<8x32xf32>
    %347 = arith.mulf %346, %344 : vector<8x32xf32>
    %348 = arith.mulf %337, %326 : vector<8x32xf32>
    %349 = arith.addf %347, %348 : vector<8x32xf32>
    %cst_110 = arith.constant dense<0.000000e+00> : vector<8x96xf32>
    %350 = tpu.matmul %349, %8, %cst_110 {dimension_numbers = #tpu.dot_dimension_numbers<[1], [0], [0], [1], [0, 0, 1, 1], [], []>} : vector<8x32xf32>, vector<32x96xf32>, vector<8x96xf32> -> vector<8x96xf32>
    %351 = vector.extract_strided_slice %230 {offsets = [40, 0], sizes = [8, 64], strides = [1, 1]} : vector<64x64xf32> to vector<8x64xf32>
    %352 = vector.extract_strided_slice %350 {offsets = [0, 0], sizes = [8, 64], strides = [1, 1]} : vector<8x96xf32> to vector<8x64xf32>
    %353 = arith.addf %351, %352 : vector<8x64xf32>
    %354 = arith.negf %353 : vector<8x64xf32>
    %355 = math.exp %354 : vector<8x64xf32>
    %cst_111 = arith.constant 1.000000e+00 : f32
    %356 = vector.broadcast %cst_111 : f32 to vector<8x64xf32>
    %357 = arith.addf %356, %355 : vector<8x64xf32>
    %358 = arith.divf %356, %357 : vector<8x64xf32>
    %359 = vector.extract_strided_slice %358 {offsets = [0, 0], sizes = [8, 32], strides = [1, 1]} : vector<8x64xf32> to vector<8x32xf32>
    %360 = vector.extract_strided_slice %358 {offsets = [0, 32], sizes = [8, 32], strides = [1, 1]} : vector<8x64xf32> to vector<8x32xf32>
    %361 = vector.extract_strided_slice %233 {offsets = [40, 0], sizes = [8, 32], strides = [1, 1]} : vector<64x32xf32> to vector<8x32xf32>
    %362 = vector.extract_strided_slice %350 {offsets = [0, 64], sizes = [8, 32], strides = [1, 1]} : vector<8x96xf32> to vector<8x32xf32>
    %363 = vector.broadcast %11 : vector<1x32xf32> to vector<8x32xf32>
    %364 = arith.addf %362, %363 : vector<8x32xf32>
    %365 = arith.mulf %359, %364 : vector<8x32xf32>
    %366 = arith.addf %361, %365 : vector<8x32xf32>
    %367 = math.tanh %366 : vector<8x32xf32>
    %cst_112 = arith.constant 1.000000e+00 : f32
    %368 = vector.broadcast %cst_112 : f32 to vector<8x32xf32>
    %369 = arith.subf %368, %360 : vector<8x32xf32>
    %370 = arith.mulf %369, %367 : vector<8x32xf32>
    %371 = arith.mulf %360, %349 : vector<8x32xf32>
    %372 = arith.addf %370, %371 : vector<8x32xf32>
    %cst_113 = arith.constant dense<0.000000e+00> : vector<8x96xf32>
    %373 = tpu.matmul %372, %8, %cst_113 {dimension_numbers = #tpu.dot_dimension_numbers<[1], [0], [0], [1], [0, 0, 1, 1], [], []>} : vector<8x32xf32>, vector<32x96xf32>, vector<8x96xf32> -> vector<8x96xf32>
    %374 = vector.extract_strided_slice %230 {offsets = [48, 0], sizes = [8, 64], strides = [1, 1]} : vector<64x64xf32> to vector<8x64xf32>
    %375 = vector.extract_strided_slice %373 {offsets = [0, 0], sizes = [8, 64], strides = [1, 1]} : vector<8x96xf32> to vector<8x64xf32>
    %376 = arith.addf %374, %375 : vector<8x64xf32>
    %377 = arith.negf %376 : vector<8x64xf32>
    %378 = math.exp %377 : vector<8x64xf32>
    %cst_114 = arith.constant 1.000000e+00 : f32
    %379 = vector.broadcast %cst_114 : f32 to vector<8x64xf32>
    %380 = arith.addf %379, %378 : vector<8x64xf32>
    %381 = arith.divf %379, %380 : vector<8x64xf32>
    %382 = vector.extract_strided_slice %381 {offsets = [0, 0], sizes = [8, 32], strides = [1, 1]} : vector<8x64xf32> to vector<8x32xf32>
    %383 = vector.extract_strided_slice %381 {offsets = [0, 32], sizes = [8, 32], strides = [1, 1]} : vector<8x64xf32> to vector<8x32xf32>
    %384 = vector.extract_strided_slice %233 {offsets = [48, 0], sizes = [8, 32], strides = [1, 1]} : vector<64x32xf32> to vector<8x32xf32>
    %385 = vector.extract_strided_slice %373 {offsets = [0, 64], sizes = [8, 32], strides = [1, 1]} : vector<8x96xf32> to vector<8x32xf32>
    %386 = vector.broadcast %11 : vector<1x32xf32> to vector<8x32xf32>
    %387 = arith.addf %385, %386 : vector<8x32xf32>
    %388 = arith.mulf %382, %387 : vector<8x32xf32>
    %389 = arith.addf %384, %388 : vector<8x32xf32>
    %390 = math.tanh %389 : vector<8x32xf32>
    %cst_115 = arith.constant 1.000000e+00 : f32
    %391 = vector.broadcast %cst_115 : f32 to vector<8x32xf32>
    %392 = arith.subf %391, %383 : vector<8x32xf32>
    %393 = arith.mulf %392, %390 : vector<8x32xf32>
    %394 = arith.mulf %383, %372 : vector<8x32xf32>
    %395 = arith.addf %393, %394 : vector<8x32xf32>
    %cst_116 = arith.constant dense<0.000000e+00> : vector<8x96xf32>
    %396 = tpu.matmul %395, %8, %cst_116 {dimension_numbers = #tpu.dot_dimension_numbers<[1], [0], [0], [1], [0, 0, 1, 1], [], []>} : vector<8x32xf32>, vector<32x96xf32>, vector<8x96xf32> -> vector<8x96xf32>
    %397 = vector.extract_strided_slice %230 {offsets = [56, 0], sizes = [8, 64], strides = [1, 1]} : vector<64x64xf32> to vector<8x64xf32>
    %398 = vector.extract_strided_slice %396 {offsets = [0, 0], sizes = [8, 64], strides = [1, 1]} : vector<8x96xf32> to vector<8x64xf32>
    %399 = arith.addf %397, %398 : vector<8x64xf32>
    %400 = arith.negf %399 : vector<8x64xf32>
    %401 = math.exp %400 : vector<8x64xf32>
    %cst_117 = arith.constant 1.000000e+00 : f32
    %402 = vector.broadcast %cst_117 : f32 to vector<8x64xf32>
    %403 = arith.addf %402, %401 : vector<8x64xf32>
    %404 = arith.divf %402, %403 : vector<8x64xf32>
    %405 = vector.extract_strided_slice %404 {offsets = [0, 0], sizes = [8, 32], strides = [1, 1]} : vector<8x64xf32> to vector<8x32xf32>
    %406 = vector.extract_strided_slice %404 {offsets = [0, 32], sizes = [8, 32], strides = [1, 1]} : vector<8x64xf32> to vector<8x32xf32>
    %407 = vector.extract_strided_slice %233 {offsets = [56, 0], sizes = [8, 32], strides = [1, 1]} : vector<64x32xf32> to vector<8x32xf32>
    %408 = vector.extract_strided_slice %396 {offsets = [0, 64], sizes = [8, 32], strides = [1, 1]} : vector<8x96xf32> to vector<8x32xf32>
    %409 = vector.broadcast %11 : vector<1x32xf32> to vector<8x32xf32>
    %410 = arith.addf %408, %409 : vector<8x32xf32>
    %411 = arith.mulf %405, %410 : vector<8x32xf32>
    %412 = arith.addf %407, %411 : vector<8x32xf32>
    %413 = math.tanh %412 : vector<8x32xf32>
    %cst_118 = arith.constant 1.000000e+00 : f32
    %414 = vector.broadcast %cst_118 : f32 to vector<8x32xf32>
    %415 = arith.subf %414, %406 : vector<8x32xf32>
    %416 = arith.mulf %415, %413 : vector<8x32xf32>
    %417 = arith.mulf %406, %395 : vector<8x32xf32>
    %418 = arith.addf %416, %417 : vector<8x32xf32>
    %cst_119 = arith.constant dense<0.000000e+00> : vector<8x32xf32>
    %419 = tpu.matmul %24, %225, %cst_119 {dimension_numbers = #tpu.dot_dimension_numbers<[1], [0], [0], [1], [0, 0, 1, 1], [], []>} : vector<8x8xf32>, vector<8x32xf32>, vector<8x32xf32> -> vector<8x32xf32>
    %c0_120 = arith.constant 0 : index
    %c0_121 = arith.constant 0 : index
    %420 = vector.load %arg30[%c0_120, %c0_121] : memref<16x32xf32, #tpu.memory_space<vmem>>, vector<8x32xf32>
    tpu.vector_store %arg30[%c0_120, %c0_121], %419 {strides = array<i32>} : memref<16x32xf32, #tpu.memory_space<vmem>>, vector<8x32xf32>,
    %cst_122 = arith.constant dense<0.000000e+00> : vector<8x32xf32>
    %421 = tpu.matmul %24, %418, %cst_122 {dimension_numbers = #tpu.dot_dimension_numbers<[1], [0], [0], [1], [0, 0, 1, 1], [], []>} : vector<8x8xf32>, vector<8x32xf32>, vector<8x32xf32> -> vector<8x32xf32>
    %c8_123 = arith.constant 8 : index
    %c0_124 = arith.constant 0 : index
    %422 = vector.load %arg30[%c8_123, %c0_124] : memref<16x32xf32, #tpu.memory_space<vmem>>, vector<8x32xf32>
    tpu.vector_store %arg30[%c8_123, %c0_124], %421 {strides = array<i32>} : memref<16x32xf32, #tpu.memory_space<vmem>>, vector<8x32xf32>,
    %c0_125 = arith.constant 0 : index
    %c0_126 = arith.constant 0 : index
    %423 = vector.load %arg30[%c0_125, %c0_126] : memref<16x32xf32, #tpu.memory_space<vmem>>, vector<16x32xf32>
    %cst_127 = arith.constant dense<0.000000e+00> : vector<16x64xf32>
    %424 = tpu.matmul %423, %12, %cst_127 {dimension_numbers = #tpu.dot_dimension_numbers<[1], [0], [0], [1], [0, 0, 1, 1], [], []>} : vector<16x32xf32>, vector<32x64xf32>, vector<16x64xf32> -> vector<16x64xf32>
    %425 = vector.broadcast %15 : vector<1x64xf32> to vector<16x64xf32>
    %426 = arith.addf %424, %425 : vector<16x64xf32>
    %cst_128 = arith.constant dense<0.000000e+00> : vector<16x32xf32>
    %427 = tpu.matmul %423, %13, %cst_128 {dimension_numbers = #tpu.dot_dimension_numbers<[1], [0], [0], [1], [0, 0, 1, 1], [], []>} : vector<16x32xf32>, vector<32x32xf32>, vector<16x32xf32> -> vector<16x32xf32>
    %428 = vector.broadcast %16 : vector<1x32xf32> to vector<16x32xf32>
    %429 = arith.addf %427, %428 : vector<16x32xf32>
    %cst_129 = arith.constant 0.000000e+00 : f32
    %430 = vector.broadcast %cst_129 : f32 to vector<8x32xf32>
    %cst_130 = arith.constant dense<0.000000e+00> : vector<8x96xf32>
    %431 = tpu.matmul %430, %14, %cst_130 {dimension_numbers = #tpu.dot_dimension_numbers<[1], [0], [0], [1], [0, 0, 1, 1], [], []>} : vector<8x32xf32>, vector<32x96xf32>, vector<8x96xf32> -> vector<8x96xf32>
    %432 = vector.extract_strided_slice %426 {offsets = [0, 0], sizes = [8, 64], strides = [1, 1]} : vector<16x64xf32> to vector<8x64xf32>
    %433 = vector.extract_strided_slice %431 {offsets = [0, 0], sizes = [8, 64], strides = [1, 1]} : vector<8x96xf32> to vector<8x64xf32>
    %434 = arith.addf %432, %433 : vector<8x64xf32>
    %435 = arith.negf %434 : vector<8x64xf32>
    %436 = math.exp %435 : vector<8x64xf32>
    %cst_131 = arith.constant 1.000000e+00 : f32
    %437 = vector.broadcast %cst_131 : f32 to vector<8x64xf32>
    %438 = arith.addf %437, %436 : vector<8x64xf32>
    %439 = arith.divf %437, %438 : vector<8x64xf32>
    %440 = vector.extract_strided_slice %439 {offsets = [0, 0], sizes = [8, 32], strides = [1, 1]} : vector<8x64xf32> to vector<8x32xf32>
    %441 = vector.extract_strided_slice %439 {offsets = [0, 32], sizes = [8, 32], strides = [1, 1]} : vector<8x64xf32> to vector<8x32xf32>
    %442 = vector.extract_strided_slice %429 {offsets = [0, 0], sizes = [8, 32], strides = [1, 1]} : vector<16x32xf32> to vector<8x32xf32>
    %443 = vector.extract_strided_slice %431 {offsets = [0, 64], sizes = [8, 32], strides = [1, 1]} : vector<8x96xf32> to vector<8x32xf32>
    %444 = vector.broadcast %17 : vector<1x32xf32> to vector<8x32xf32>
    %445 = arith.addf %443, %444 : vector<8x32xf32>
    %446 = arith.mulf %440, %445 : vector<8x32xf32>
    %447 = arith.addf %442, %446 : vector<8x32xf32>
    %448 = math.tanh %447 : vector<8x32xf32>
    %cst_132 = arith.constant 1.000000e+00 : f32
    %449 = vector.broadcast %cst_132 : f32 to vector<8x32xf32>
    %450 = arith.subf %449, %441 : vector<8x32xf32>
    %451 = arith.mulf %450, %448 : vector<8x32xf32>
    %452 = arith.mulf %441, %430 : vector<8x32xf32>
    %453 = arith.addf %451, %452 : vector<8x32xf32>
    %c0_133 = arith.constant 0 : index
    %c0_134 = arith.constant 0 : index
    %454 = vector.load %arg31[%c0_133, %c0_134] : memref<16x32xf32, #tpu.memory_space<vmem>>, vector<8x32xf32>
    tpu.vector_store %arg31[%c0_133, %c0_134], %453 {strides = array<i32>} : memref<16x32xf32, #tpu.memory_space<vmem>>, vector<8x32xf32>,
    %cst_135 = arith.constant dense<0.000000e+00> : vector<8x96xf32>
    %455 = tpu.matmul %453, %14, %cst_135 {dimension_numbers = #tpu.dot_dimension_numbers<[1], [0], [0], [1], [0, 0, 1, 1], [], []>} : vector<8x32xf32>, vector<32x96xf32>, vector<8x96xf32> -> vector<8x96xf32>
    %456 = vector.extract_strided_slice %426 {offsets = [8, 0], sizes = [8, 64], strides = [1, 1]} : vector<16x64xf32> to vector<8x64xf32>
    %457 = vector.extract_strided_slice %455 {offsets = [0, 0], sizes = [8, 64], strides = [1, 1]} : vector<8x96xf32> to vector<8x64xf32>
    %458 = arith.addf %456, %457 : vector<8x64xf32>
    %459 = arith.negf %458 : vector<8x64xf32>
    %460 = math.exp %459 : vector<8x64xf32>
    %cst_136 = arith.constant 1.000000e+00 : f32
    %461 = vector.broadcast %cst_136 : f32 to vector<8x64xf32>
    %462 = arith.addf %461, %460 : vector<8x64xf32>
    %463 = arith.divf %461, %462 : vector<8x64xf32>
    %464 = vector.extract_strided_slice %463 {offsets = [0, 0], sizes = [8, 32], strides = [1, 1]} : vector<8x64xf32> to vector<8x32xf32>
    %465 = vector.extract_strided_slice %463 {offsets = [0, 32], sizes = [8, 32], strides = [1, 1]} : vector<8x64xf32> to vector<8x32xf32>
    %466 = vector.extract_strided_slice %429 {offsets = [8, 0], sizes = [8, 32], strides = [1, 1]} : vector<16x32xf32> to vector<8x32xf32>
    %467 = vector.extract_strided_slice %455 {offsets = [0, 64], sizes = [8, 32], strides = [1, 1]} : vector<8x96xf32> to vector<8x32xf32>
    %468 = vector.broadcast %17 : vector<1x32xf32> to vector<8x32xf32>
    %469 = arith.addf %467, %468 : vector<8x32xf32>
    %470 = arith.mulf %464, %469 : vector<8x32xf32>
    %471 = arith.addf %466, %470 : vector<8x32xf32>
    %472 = math.tanh %471 : vector<8x32xf32>
    %cst_137 = arith.constant 1.000000e+00 : f32
    %473 = vector.broadcast %cst_137 : f32 to vector<8x32xf32>
    %474 = arith.subf %473, %465 : vector<8x32xf32>
    %475 = arith.mulf %474, %472 : vector<8x32xf32>
    %476 = arith.mulf %465, %453 : vector<8x32xf32>
    %477 = arith.addf %475, %476 : vector<8x32xf32>
    %c8_138 = arith.constant 8 : index
    %c0_139 = arith.constant 0 : index
    %478 = vector.load %arg31[%c8_138, %c0_139] : memref<16x32xf32, #tpu.memory_space<vmem>>, vector<8x32xf32>
    tpu.vector_store %arg31[%c8_138, %c0_139], %477 {strides = array<i32>} : memref<16x32xf32, #tpu.memory_space<vmem>>, vector<8x32xf32>,
    %c0_140 = arith.constant 0 : index
    %c0_141 = arith.constant 0 : index
    %479 = vector.load %arg31[%c0_140, %c0_141] : memref<16x32xf32, #tpu.memory_space<vmem>>, vector<16x32xf32>
    %cst_142 = arith.constant dense<0.000000e+00> : vector<16x64xf32>
    %480 = tpu.matmul %479, %18, %cst_142 {dimension_numbers = #tpu.dot_dimension_numbers<[1], [0], [0], [1], [0, 0, 1, 1], [], []>} : vector<16x32xf32>, vector<32x64xf32>, vector<16x64xf32> -> vector<16x64xf32>
    %481 = vector.broadcast %21 : vector<1x64xf32> to vector<16x64xf32>
    %482 = arith.addf %480, %481 : vector<16x64xf32>
    %cst_143 = arith.constant dense<0.000000e+00> : vector<16x32xf32>
    %483 = tpu.matmul %479, %19, %cst_143 {dimension_numbers = #tpu.dot_dimension_numbers<[1], [0], [0], [1], [0, 0, 1, 1], [], []>} : vector<16x32xf32>, vector<32x32xf32>, vector<16x32xf32> -> vector<16x32xf32>
    %484 = vector.broadcast %22 : vector<1x32xf32> to vector<16x32xf32>
    %485 = arith.addf %483, %484 : vector<16x32xf32>
    %cst_144 = arith.constant 0.000000e+00 : f32
    %486 = vector.broadcast %cst_144 : f32 to vector<8x32xf32>
    %cst_145 = arith.constant dense<0.000000e+00> : vector<8x96xf32>
    %487 = tpu.matmul %486, %20, %cst_145 {dimension_numbers = #tpu.dot_dimension_numbers<[1], [0], [0], [1], [0, 0, 1, 1], [], []>} : vector<8x32xf32>, vector<32x96xf32>, vector<8x96xf32> -> vector<8x96xf32>
    %488 = vector.extract_strided_slice %482 {offsets = [0, 0], sizes = [8, 64], strides = [1, 1]} : vector<16x64xf32> to vector<8x64xf32>
    %489 = vector.extract_strided_slice %487 {offsets = [0, 0], sizes = [8, 64], strides = [1, 1]} : vector<8x96xf32> to vector<8x64xf32>
    %490 = arith.addf %488, %489 : vector<8x64xf32>
    %491 = arith.negf %490 : vector<8x64xf32>
    %492 = math.exp %491 : vector<8x64xf32>
    %cst_146 = arith.constant 1.000000e+00 : f32
    %493 = vector.broadcast %cst_146 : f32 to vector<8x64xf32>
    %494 = arith.addf %493, %492 : vector<8x64xf32>
    %495 = arith.divf %493, %494 : vector<8x64xf32>
    %496 = vector.extract_strided_slice %495 {offsets = [0, 0], sizes = [8, 32], strides = [1, 1]} : vector<8x64xf32> to vector<8x32xf32>
    %497 = vector.extract_strided_slice %495 {offsets = [0, 32], sizes = [8, 32], strides = [1, 1]} : vector<8x64xf32> to vector<8x32xf32>
    %498 = vector.extract_strided_slice %485 {offsets = [0, 0], sizes = [8, 32], strides = [1, 1]} : vector<16x32xf32> to vector<8x32xf32>
    %499 = vector.extract_strided_slice %487 {offsets = [0, 64], sizes = [8, 32], strides = [1, 1]} : vector<8x96xf32> to vector<8x32xf32>
    %500 = vector.broadcast %23 : vector<1x32xf32> to vector<8x32xf32>
    %501 = arith.addf %499, %500 : vector<8x32xf32>
    %502 = arith.mulf %496, %501 : vector<8x32xf32>
    %503 = arith.addf %498, %502 : vector<8x32xf32>
    %504 = math.tanh %503 : vector<8x32xf32>
    %cst_147 = arith.constant 1.000000e+00 : f32
    %505 = vector.broadcast %cst_147 : f32 to vector<8x32xf32>
    %506 = arith.subf %505, %497 : vector<8x32xf32>
    %507 = arith.mulf %506, %504 : vector<8x32xf32>
    %508 = arith.mulf %497, %486 : vector<8x32xf32>
    %509 = arith.addf %507, %508 : vector<8x32xf32>
    %cst_148 = arith.constant dense<0.000000e+00> : vector<8x96xf32>
    %510 = tpu.matmul %509, %20, %cst_148 {dimension_numbers = #tpu.dot_dimension_numbers<[1], [0], [0], [1], [0, 0, 1, 1], [], []>} : vector<8x32xf32>, vector<32x96xf32>, vector<8x96xf32> -> vector<8x96xf32>
    %511 = vector.extract_strided_slice %482 {offsets = [8, 0], sizes = [8, 64], strides = [1, 1]} : vector<16x64xf32> to vector<8x64xf32>
    %512 = vector.extract_strided_slice %510 {offsets = [0, 0], sizes = [8, 64], strides = [1, 1]} : vector<8x96xf32> to vector<8x64xf32>
    %513 = arith.addf %511, %512 : vector<8x64xf32>
    %514 = arith.negf %513 : vector<8x64xf32>
    %515 = math.exp %514 : vector<8x64xf32>
    %cst_149 = arith.constant 1.000000e+00 : f32
    %516 = vector.broadcast %cst_149 : f32 to vector<8x64xf32>
    %517 = arith.addf %516, %515 : vector<8x64xf32>
    %518 = arith.divf %516, %517 : vector<8x64xf32>
    %519 = vector.extract_strided_slice %518 {offsets = [0, 0], sizes = [8, 32], strides = [1, 1]} : vector<8x64xf32> to vector<8x32xf32>
    %520 = vector.extract_strided_slice %518 {offsets = [0, 32], sizes = [8, 32], strides = [1, 1]} : vector<8x64xf32> to vector<8x32xf32>
    %521 = vector.extract_strided_slice %485 {offsets = [8, 0], sizes = [8, 32], strides = [1, 1]} : vector<16x32xf32> to vector<8x32xf32>
    %522 = vector.extract_strided_slice %510 {offsets = [0, 64], sizes = [8, 32], strides = [1, 1]} : vector<8x96xf32> to vector<8x32xf32>
    %523 = vector.broadcast %23 : vector<1x32xf32> to vector<8x32xf32>
    %524 = arith.addf %522, %523 : vector<8x32xf32>
    %525 = arith.mulf %519, %524 : vector<8x32xf32>
    %526 = arith.addf %521, %525 : vector<8x32xf32>
    %527 = math.tanh %526 : vector<8x32xf32>
    %cst_150 = arith.constant 1.000000e+00 : f32
    %528 = vector.broadcast %cst_150 : f32 to vector<8x32xf32>
    %529 = arith.subf %528, %520 : vector<8x32xf32>
    %530 = arith.mulf %529, %527 : vector<8x32xf32>
    %531 = arith.mulf %520, %509 : vector<8x32xf32>
    %532 = arith.addf %530, %531 : vector<8x32xf32>
    %cst_151 = arith.constant dense<0.000000e+00> : vector<8x128xf32>
    %533 = tpu.matmul %532, %25, %cst_151 {dimension_numbers = #tpu.dot_dimension_numbers<[1], [0], [0], [1], [0, 0, 1, 1], [], []>} : vector<8x32xf32>, vector<32x128xf32>, vector<8x128xf32> -> vector<8x128xf32>
    %534 = vector.broadcast %26 : vector<1x128xf32> to vector<8x128xf32>
    %535 = arith.addf %533, %534 : vector<8x128xf32>
    %c0_152 = arith.constant 0 : index
    %c0_153 = arith.constant 0 : index
    %536 = vector.load %arg28[%c0_152, %c0_153] : memref<8x128xf32, #tpu.memory_space<vmem>>, vector<8x128xf32>
    tpu.vector_store %arg28[%c0_152, %c0_153], %535 {strides = array<i32>} : memref<8x128xf32, #tpu.memory_space<vmem>>, vector<8x128xf32>,
    return
  }
}

</mosaic_0001>

<llo_original>
// kernel: sum_rnn_forward.1
$region0: #{sum_rnn_forward.1}
  #allocation0 [shape = 'u32[]', space=smem, size = 0x4, offset = 0x4, fixed_abs, tag = 'smem constant byte address 0x4 - core index']
  #allocation1 [shape = 'u32[144,128]{1,0:T(1,128)}', space=vmem, size = 0x12000, scoped, tag = 'internal scratch']
  #allocation2 [shape = 'f32[64,32]{1,0:T(8,128)}', space=vmem, size = 0x8000, scoped, tag = 'scratch operand']
  #allocation3 [shape = 'f32[16,32]{1,0:T(8,128)}', space=vmem, size = 0x2000, scoped, tag = 'scratch operand']
  #allocation4 [shape = 'f32[16,32]{1,0:T(8,128)}', space=vmem, size = 0x2000, scoped, tag = 'scratch operand']
  %s0 = inlined_call_operand.vmem [shape: f32[16,64], index: 0, kind: input, shape index: {}]
  %s1 = inlined_call_operand.vmem [shape: f32[16,32], index: 1, kind: input, shape index: {}]
  %s2 = inlined_call_operand.vmem [shape: f32[32,96], index: 2, kind: input, shape index: {}]
  %s3 = inlined_call_operand.vmem [shape: f32[1,64], index: 3, kind: input, shape index: {}]
  %s4 = inlined_call_operand.vmem [shape: f32[1,32], index: 4, kind: input, shape index: {}]
  %s5 = inlined_call_operand.vmem [shape: f32[1,32], index: 5, kind: input, shape index: {}]
  %s6 = inlined_call_operand.vmem [shape: f32[32,64], index: 6, kind: input, shape index: {}]
  %s7 = inlined_call_operand.vmem [shape: f32[32,32], index: 7, kind: input, shape index: {}]
  %s8 = inlined_call_operand.vmem [shape: f32[32,96], index: 8, kind: input, shape index: {}]
  %s9 = inlined_call_operand.vmem [shape: f32[1,64], index: 9, kind: input, shape index: {}]
  %s10 = inlined_call_operand.vmem [shape: f32[1,32], index: 10, kind: input, shape index: {}]
  %s11 = inlined_call_operand.vmem [shape: f32[1,32], index: 11, kind: input, shape index: {}]
  %s12 = inlined_call_operand.vmem [shape: f32[32,64], index: 12, kind: input, shape index: {}]
  %s13 = inlined_call_operand.vmem [shape: f32[32,32], index: 13, kind: input, shape index: {}]
  %s14 = inlined_call_operand.vmem [shape: f32[32,96], index: 14, kind: input, shape index: {}]
  %s15 = inlined_call_operand.vmem [shape: f32[1,64], index: 15, kind: input, shape index: {}]
  %s16 = inlined_call_operand.vmem [shape: f32[1,32], index: 16, kind: input, shape index: {}]
  %s17 = inlined_call_operand.vmem [shape: f32[1,32], index: 17, kind: input, shape index: {}]
  %s18 = inlined_call_operand.vmem [shape: f32[32,64], index: 18, kind: input, shape index: {}]
  %s19 = inlined_call_operand.vmem [shape: f32[32,32], index: 19, kind: input, shape index: {}]
  %s20 = inlined_call_operand.vmem [shape: f32[32,96], index: 20, kind: input, shape index: {}]
  %s21 = inlined_call_operand.vmem [shape: f32[1,64], index: 21, kind: input, shape index: {}]
  %s22 = inlined_call_operand.vmem [shape: f32[1,32], index: 22, kind: input, shape index: {}]
  %s23 = inlined_call_operand.vmem [shape: f32[1,32], index: 23, kind: input, shape index: {}]
  %s24 = inlined_call_operand.vmem [shape: f32[8,8], index: 24, kind: input, shape index: {}]
  %s25 = inlined_call_operand.vmem [shape: f32[32,128], index: 25, kind: input, shape index: {}]
  %s26 = inlined_call_operand.vmem [shape: f32[1,128], index: 26, kind: input, shape index: {}]
  %s27 = inlined_call_operand.vmem [shape: f32[64,16], index: 27, kind: input, shape index: {}]
  %s28 = inlined_call_operand.vmem [shape: f32[8,128], index: 28, kind: output, shape index: {}]
  %s29 = sld [smem:[#allocation0]]
  $region122: #{sum_rnn_forward.1} parent=0
    _
  %s31 = ssub.s32 1, %s29
  %s32 = scalar_select 0, %s31, %s29
  // Predicated region
  $region2: #{sum_rnn_forward.1} parent=0 // pred_check
    _
  $region3: #{sum_rnn_forward.1} parent=0 // pred_check_branch
    %34 = sbr.rel (0) target = $region5
  $region4: #{sum_rnn_forward.1} parent=0 // pred_region
    _
  $region5: #{sum_rnn_forward.1} parent=0 // pred_fallthru
    _
  // Predicated region
  $region6: #{sum_rnn_forward.1} parent=0 // pred_check
    _
  $region7: #{sum_rnn_forward.1} parent=0 // pred_check_branch
    %36 = sbr.rel (0) target = $region9
  $region8: #{sum_rnn_forward.1} parent=0 // pred_region
    _
  $region9: #{sum_rnn_forward.1} parent=0 // pred_fallthru
    _
  // Predicated region
  $region10: #{sum_rnn_forward.1} parent=0 // pred_check
    _
  $region11: #{sum_rnn_forward.1} parent=0 // pred_check_branch
    %38 = sbr.rel (0) target = $region13
  $region12: #{sum_rnn_forward.1} parent=0 // pred_region
    _
  $region13: #{sum_rnn_forward.1} parent=0 // pred_fallthru
    _
  // Predicated region
  $region14: #{sum_rnn_forward.1} parent=0 // pred_check
    _
  $region15: #{sum_rnn_forward.1} parent=0 // pred_check_branch
    %40 = sbr.rel (0) target = $region17
  $region16: #{sum_rnn_forward.1} parent=0 // pred_region
    _
  $region17: #{sum_rnn_forward.1} parent=0 // pred_fallthru
    _
  // Predicated region
  $region18: #{sum_rnn_forward.1} parent=0 // pred_check
    _
  $region19: #{sum_rnn_forward.1} parent=0 // pred_check_branch
    %42 = sbr.rel (0) target = $region21
  $region20: #{sum_rnn_forward.1} parent=0 // pred_region
    _
  $region21: #{sum_rnn_forward.1} parent=0 // pred_fallthru
    _
  // Predicated region
  $region22: #{sum_rnn_forward.1} parent=0 // pred_check
    _
  $region23: #{sum_rnn_forward.1} parent=0 // pred_check_branch
    %44 = sbr.rel (0) target = $region25
  $region24: #{sum_rnn_forward.1} parent=0 // pred_region
    _
  $region25: #{sum_rnn_forward.1} parent=0 // pred_fallthru
    _
  // Predicated region
  $region26: #{sum_rnn_forward.1} parent=0 // pred_check
    _
  $region27: #{sum_rnn_forward.1} parent=0 // pred_check_branch
    %46 = sbr.rel (0) target = $region29
  $region28: #{sum_rnn_forward.1} parent=0 // pred_region
    _
  $region29: #{sum_rnn_forward.1} parent=0 // pred_fallthru
    _
  // Predicated region
  $region30: #{sum_rnn_forward.1} parent=0 // pred_check
    _
  $region31: #{sum_rnn_forward.1} parent=0 // pred_check_branch
    %48 = sbr.rel (0) target = $region33
  $region32: #{sum_rnn_forward.1} parent=0 // pred_region
    _
  $region33: #{sum_rnn_forward.1} parent=0 // pred_fallthru
    _
  // Predicated region
  $region34: #{sum_rnn_forward.1} parent=0 // pred_check
    _
  $region35: #{sum_rnn_forward.1} parent=0 // pred_check_branch
    %50 = sbr.rel (0) target = $region37
  $region36: #{sum_rnn_forward.1} parent=0 // pred_region
    _
  $region37: #{sum_rnn_forward.1} parent=0 // pred_fallthru
    _
  // Predicated region
  $region38: #{sum_rnn_forward.1} parent=0 // pred_check
    _
  $region39: #{sum_rnn_forward.1} parent=0 // pred_check_branch
    %52 = sbr.rel (0) target = $region41
  $region40: #{sum_rnn_forward.1} parent=0 // pred_region
    _
  $region41: #{sum_rnn_forward.1} parent=0 // pred_fallthru
    _
  // Predicated region
  $region42: #{sum_rnn_forward.1} parent=0 // pred_check
    _
  $region43: #{sum_rnn_forward.1} parent=0 // pred_check_branch
    %54 = sbr.rel (0) target = $region45
  $region44: #{sum_rnn_forward.1} parent=0 // pred_region
    _
  $region45: #{sum_rnn_forward.1} parent=0 // pred_fallthru
    _
  // Predicated region
  $region46: #{sum_rnn_forward.1} parent=0 // pred_check
    _
  $region47: #{sum_rnn_forward.1} parent=0 // pred_check_branch
    %56 = sbr.rel (0) target = $region49
  $region48: #{sum_rnn_forward.1} parent=0 // pred_region
    _
  $region49: #{sum_rnn_forward.1} parent=0 // pred_fallthru
    _
  // Predicated region
  $region50: #{sum_rnn_forward.1} parent=0 // pred_check
    _
  $region51: #{sum_rnn_forward.1} parent=0 // pred_check_branch
    %58 = sbr.rel (0) target = $region53
  $region52: #{sum_rnn_forward.1} parent=0 // pred_region
    _
  $region53: #{sum_rnn_forward.1} parent=0 // pred_fallthru
    _
  // Predicated region
  $region54: #{sum_rnn_forward.1} parent=0 // pred_check
    _
  $region55: #{sum_rnn_forward.1} parent=0 // pred_check_branch
    %60 = sbr.rel (0) target = $region57
  $region56: #{sum_rnn_forward.1} parent=0 // pred_region
    _
  $region57: #{sum_rnn_forward.1} parent=0 // pred_fallthru
    _
  // Predicated region
  $region58: #{sum_rnn_forward.1} parent=0 // pred_check
    _
  $region59: #{sum_rnn_forward.1} parent=0 // pred_check_branch
    %62 = sbr.rel (0) target = $region61
  $region60: #{sum_rnn_forward.1} parent=0 // pred_region
    _
  $region61: #{sum_rnn_forward.1} parent=0 // pred_fallthru
    _
  // Predicated region
  $region62: #{sum_rnn_forward.1} parent=0 // pred_check
    _
  $region63: #{sum_rnn_forward.1} parent=0 // pred_check_branch
    %64 = sbr.rel (0) target = $region65
  $region64: #{sum_rnn_forward.1} parent=0 // pred_region
    _
  $region65: #{sum_rnn_forward.1} parent=0 // pred_fallthru
    _
  // Predicated region
  $region66: #{sum_rnn_forward.1} parent=0 // pred_check
    _
  $region67: #{sum_rnn_forward.1} parent=0 // pred_check_branch
    %66 = sbr.rel (0) target = $region69
  $region68: #{sum_rnn_forward.1} parent=0 // pred_region
    _
  $region69: #{sum_rnn_forward.1} parent=0 // pred_fallthru
    _
  // Predicated region
  $region70: #{sum_rnn_forward.1} parent=0 // pred_check
    _
  $region71: #{sum_rnn_forward.1} parent=0 // pred_check_branch
    %68 = sbr.rel (0) target = $region73
  $region72: #{sum_rnn_forward.1} parent=0 // pred_region
    _
  $region73: #{sum_rnn_forward.1} parent=0 // pred_fallthru
    _
  // Predicated region
  $region74: #{sum_rnn_forward.1} parent=0 // pred_check
    _
  $region75: #{sum_rnn_forward.1} parent=0 // pred_check_branch
    %70 = sbr.rel (0) target = $region77
  $region76: #{sum_rnn_forward.1} parent=0 // pred_region
    _
  $region77: #{sum_rnn_forward.1} parent=0 // pred_fallthru
    _
  // Predicated region
  $region78: #{sum_rnn_forward.1} parent=0 // pred_check
    _
  $region79: #{sum_rnn_forward.1} parent=0 // pred_check_branch
    %72 = sbr.rel (0) target = $region81
  $region80: #{sum_rnn_forward.1} parent=0 // pred_region
    _
  $region81: #{sum_rnn_forward.1} parent=0 // pred_fallthru
    _
  // Predicated region
  $region82: #{sum_rnn_forward.1} parent=0 // pred_check
    _
  $region83: #{sum_rnn_forward.1} parent=0 // pred_check_branch
    %74 = sbr.rel (0) target = $region85
  $region84: #{sum_rnn_forward.1} parent=0 // pred_region
    _
  $region85: #{sum_rnn_forward.1} parent=0 // pred_fallthru
    _
  // Predicated region
  $region86: #{sum_rnn_forward.1} parent=0 // pred_check
    _
  $region87: #{sum_rnn_forward.1} parent=0 // pred_check_branch
    %76 = sbr.rel (0) target = $region89
  $region88: #{sum_rnn_forward.1} parent=0 // pred_region
    _
  $region89: #{sum_rnn_forward.1} parent=0 // pred_fallthru
    _
  // Predicated region
  $region90: #{sum_rnn_forward.1} parent=0 // pred_check
    _
  $region91: #{sum_rnn_forward.1} parent=0 // pred_check_branch
    %78 = sbr.rel (0) target = $region93
  $region92: #{sum_rnn_forward.1} parent=0 // pred_region
    _
  $region93: #{sum_rnn_forward.1} parent=0 // pred_fallthru
    _
  // Predicated region
  $region94: #{sum_rnn_forward.1} parent=0 // pred_check
    _
  $region95: #{sum_rnn_forward.1} parent=0 // pred_check_branch
    %80 = sbr.rel (0) target = $region97
  $region96: #{sum_rnn_forward.1} parent=0 // pred_region
    _
  $region97: #{sum_rnn_forward.1} parent=0 // pred_fallthru
    _
  // Predicated region
  $region98: #{sum_rnn_forward.1} parent=0 // pred_check
    _
  $region99: #{sum_rnn_forward.1} parent=0 // pred_check_branch
    %82 = sbr.rel (0) target = $region101
  $region100: #{sum_rnn_forward.1} parent=0 // pred_region
    _
  $region101: #{sum_rnn_forward.1} parent=0 // pred_fallthru
    _
  // Predicated region
  $region102: #{sum_rnn_forward.1} parent=0 // pred_check
    _
  $region103: #{sum_rnn_forward.1} parent=0 // pred_check_branch
    %84 = sbr.rel (0) target = $region105
  $region104: #{sum_rnn_forward.1} parent=0 // pred_region
    _
  $region105: #{sum_rnn_forward.1} parent=0 // pred_fallthru
    _
  // Predicated region
  $region106: #{sum_rnn_forward.1} parent=0 // pred_check
    _
  $region107: #{sum_rnn_forward.1} parent=0 // pred_check_branch
    %86 = sbr.rel (0) target = $region109
  $region108: #{sum_rnn_forward.1} parent=0 // pred_region
    _
  $region109: #{sum_rnn_forward.1} parent=0 // pred_fallthru
    _
  // Predicated region
  $region110: #{sum_rnn_forward.1} parent=0 // pred_check
    _
  $region111: #{sum_rnn_forward.1} parent=0 // pred_check_branch
    %88 = sbr.rel (0) target = $region113
  $region112: #{sum_rnn_forward.1} parent=0 // pred_region
    _
  $region113: #{sum_rnn_forward.1} parent=0 // pred_fallthru
    _
  %v89 = vld [vmem:[%s0] sm:$0xff]
  %v90 = vld [vmem:[%s0 + $0x8] sm:$0xff]
  %v91 = vld [vmem:[%s1] sm:$0xff]
  %v92 = vld [vmem:[%s1 + $0x8] sm:$0xff]
  %v93 = vld [vmem:[%s2] sm:$0xff]
  %v94 = vld [vmem:[%s2 + $0x8] sm:$0xff]
  %v95 = vld [vmem:[%s2 + $0x10] sm:$0xff]
  %v96 = vld [vmem:[%s2 + $0x18] sm:$0xff]
  %v97 = vld [vmem:[%s3] sm:$0x1]
  %v98 = vld [vmem:[%s4] sm:$0x1]
  %v99 = vld [vmem:[%s5] sm:$0x1]
  %v100 = vld [vmem:[%s6] sm:$0xff]
  %v101 = vld [vmem:[%s6 + $0x8] sm:$0xff]
  %v102 = vld [vmem:[%s6 + $0x10] sm:$0xff]
  %v103 = vld [vmem:[%s6 + $0x18] sm:$0xff]
  %v104 = vld [vmem:[%s7] sm:$0xff]
  %v105 = vld [vmem:[%s7 + $0x8] sm:$0xff]
  %v106 = vld [vmem:[%s7 + $0x10] sm:$0xff]
  %v107 = vld [vmem:[%s7 + $0x18] sm:$0xff]
  %v108 = vld [vmem:[%s8] sm:$0xff]
  %v109 = vld [vmem:[%s8 + $0x8] sm:$0xff]
  %v110 = vld [vmem:[%s8 + $0x10] sm:$0xff]
  %v111 = vld [vmem:[%s8 + $0x18] sm:$0xff]
  %v112 = vld [vmem:[%s9] sm:$0x1]
  %v113 = vld [vmem:[%s10] sm:$0x1]
  %v114 = vld [vmem:[%s11] sm:$0x1]
  %v115 = vld [vmem:[%s12] sm:$0xff]
  %v116 = vld [vmem:[%s12 + $0x8] sm:$0xff]
  %v117 = vld [vmem:[%s12 + $0x10] sm:$0xff]
  %v118 = vld [vmem:[%s12 + $0x18] sm:$0xff]
  %v119 = vld [vmem:[%s13] sm:$0xff]
  %v120 = vld [vmem:[%s13 + $0x8] sm:$0xff]
  %v121 = vld [vmem:[%s13 + $0x10] sm:$0xff]
  %v122 = vld [vmem:[%s13 + $0x18] sm:$0xff]
  %v123 = vld [vmem:[%s14] sm:$0xff]
  %v124 = vld [vmem:[%s14 + $0x8] sm:$0xff]
  %v125 = vld [vmem:[%s14 + $0x10] sm:$0xff]
  %v126 = vld [vmem:[%s14 + $0x18] sm:$0xff]
  %v127 = vld [vmem:[%s15] sm:$0x1]
  %v128 = vld [vmem:[%s16] sm:$0x1]
  %v129 = vld [vmem:[%s17] sm:$0x1]
  %v130 = vld [vmem:[%s18] sm:$0xff]
  %v131 = vld [vmem:[%s18 + $0x8] sm:$0xff]
  %v132 = vld [vmem:[%s18 + $0x10] sm:$0xff]
  %v133 = vld [vmem:[%s18 + $0x18] sm:$0xff]
  %v134 = vld [vmem:[%s19] sm:$0xff]
  %v135 = vld [vmem:[%s19 + $0x8] sm:$0xff]
  %v136 = vld [vmem:[%s19 + $0x10] sm:$0xff]
  %v137 = vld [vmem:[%s19 + $0x18] sm:$0xff]
  %v138 = vld [vmem:[%s20] sm:$0xff]
  %v139 = vld [vmem:[%s20 + $0x8] sm:$0xff]
  %v140 = vld [vmem:[%s20 + $0x10] sm:$0xff]
  %v141 = vld [vmem:[%s20 + $0x18] sm:$0xff]
  %v142 = vld [vmem:[%s21] sm:$0x1]
  %v143 = vld [vmem:[%s22] sm:$0x1]
  %v144 = vld [vmem:[%s23] sm:$0x1]
  %v145 = vld [vmem:[%s24] sm:$0xff]
  %v146 = vld [vmem:[%s25] sm:$0xff]
  %v147 = vld [vmem:[%s25 + $0x8] sm:$0xff]
  %v148 = vld [vmem:[%s25 + $0x10] sm:$0xff]
  %v149 = vld [vmem:[%s25 + $0x18] sm:$0xff]
  %v150 = vld [vmem:[%s26] sm:$0x1]
  %v151 = vld [vmem:[%s27] sm:$0xff]
  %v152 = vld [vmem:[%s27 + $0x8] sm:$0xff]
  %v153 = vld [vmem:[%s27 + $0x10] sm:$0xff]
  %v154 = vld [vmem:[%s27 + $0x18] sm:$0xff]
  %v155 = vld [vmem:[%s27 + $0x20] sm:$0xff]
  %v156 = vld [vmem:[%s27 + $0x28] sm:$0xff]
  %v157 = vld [vmem:[%s27 + $0x30] sm:$0xff]
  %v158 = vld [vmem:[%s27 + $0x38] sm:$0xff]
  %v160 = vlaneseq
  %v161 = vshrl.u32 %v160, 7
  %v162 = vsub.s32 0, %v161
  %v163 = vrot.slane %v97, %v162
  %vm165 = vcmask 130048
  %v167 = vsel %vm165, %v151, 0
  %v170 = vsel %vm165, %v152, 0
  %v173 = vsel %vm165, %v153, 0
  %v176 = vsel %vm165, %v154, 0
  %v179 = vsel %vm165, %v155, 0
  %v182 = vsel %vm165, %v156, 0
  %v185 = vsel %vm165, %v157, 0
  %v188 = vsel %vm165, %v158, 0
  %190 = vmatprep.subr.mxu0 0.0
  %191 = vmatpush1.msra.mxu0 %v89
  %192 = vmatprep.subr.mxu0 0.0
  %193 = vmatpush1.msra.mxu0 %v90
  %194 = vmatprep.subr.mxu0 0.0
  %195 = vmatpush1.msra.mxu0 0.0
  %196 = vmatprep.subr.mxu0 0.0
  %197 = vmatpush1.msra.mxu0 0.0
  %198 = vmatprep.subr.mxu0 0.0
  %199 = vmatpush1.msra.mxu0 0.0
  %200 = vmatprep.subr.mxu0 0.0
  %201 = vmatpush1.msra.mxu0 0.0
  %202 = vmatprep.subr.mxu0 0.0
  %203 = vmatpush1.msra.mxu0 0.0
  %204 = vmatprep.subr.mxu0 0.0
  %205 = vmatpush1.msra.mxu0 0.0
  %206 = vmatprep.subr.mxu0 0.0
  %207 = vmatpush1.msra.mxu0 0.0
  %208 = vmatprep.subr.mxu0 0.0
  %209 = vmatpush1.msra.mxu0 0.0
  %210 = vmatprep.subr.mxu0 0.0
  %211 = vmatpush1.msra.mxu0 0.0
  %212 = vmatprep.subr.mxu0 0.0
  %213 = vmatpush1.msra.mxu0 0.0
  %214 = vmatprep.subr.mxu0 0.0
  %215 = vmatpush1.msra.mxu0 0.0
  %216 = vmatprep.subr.mxu0 0.0
  %217 = vmatpush1.msra.mxu0 0.0
  %218 = vmatprep.subr.mxu0 0.0
  %219 = vmatpush1.msra.mxu0 0.0
  %220 = vmatprep.subr.mxu0 0.0
  %221 = vmatpush1.msra.mxu0 0.0
  %222 = vmatprep.subr.mxu0 0.0
  %223 = vmatpush1.msra.mxu0 0.0
  %224 = vmatprep.subr.mxu0 0.0
  %225 = vmatpush1.msra.mxu0 0.0
  %226 = vmatprep.subr.mxu0 0.0
  %227 = vmatpush1.msra.mxu0 0.0
  %228 = vmatprep.subr.mxu0 0.0
  %229 = vmatpush1.msra.mxu0 0.0
  %230 = vmatprep.subr.mxu0 0.0
  %231 = vmatpush1.msra.mxu0 0.0
  %232 = vmatprep.subr.mxu0 0.0
  %233 = vmatpush1.msra.mxu0 0.0
  %234 = vmatprep.subr.mxu0 0.0
  %235 = vmatpush1.msra.mxu0 0.0
  %236 = vmatprep.subr.mxu0 0.0
  %237 = vmatpush1.msra.mxu0 0.0
  %238 = vmatprep.subr.mxu0 0.0
  %239 = vmatpush1.msra.mxu0 0.0
  %240 = vmatprep.subr.mxu0 0.0
  %241 = vmatpush1.msra.mxu0 0.0
  %242 = vmatprep.subr.mxu0 0.0
  %243 = vmatpush1.msra.mxu0 0.0
  %244 = vmatprep.subr.mxu0 0.0
  %245 = vmatpush1.msra.mxu0 0.0
  %246 = vmatprep.subr.mxu0 0.0
  %247 = vmatpush1.msra.mxu0 0.0
  %248 = vmatprep.subr.mxu0 0.0
  %249 = vmatpush1.msra.mxu0 0.0
  %250 = vmatprep.subr.mxu0 0.0
  %251 = vmatpush1.msra.mxu0 0.0
  %252 = vmatprep.subr.mxu0 0.0
  %253 = vmatpush1.msra.mxu0 0.0
  %254 = vmatprep.mubr.f32.mxu0 0.0
  %255 = vmatmul.mubr.f32.gmra.mrb[0].mxu0 %v167
  %v256 = vpop.f32.mrb[0].mxu0
  %v257 = vadd.f32 %v163, %v256
  %v258 = vpop.f32.mrb[0].mxu0
  %259 = vmatprep.mubr.f32.mxu0 0.0
  %260 = vmatmul.mubr.f32.gmra.mrb[0].mxu0 %v170
  %v261 = vpop.f32.mrb[0].mxu0
  %v262 = vadd.f32 %v163, %v261
  %v263 = vpop.f32.mrb[0].mxu0
  %264 = vmatprep.mubr.f32.mxu0 0.0
  %265 = vmatmul.mubr.f32.gmra.mrb[0].mxu0 %v173
  %v266 = vpop.f32.mrb[0].mxu0
  %v267 = vadd.f32 %v163, %v266
  %v268 = vpop.f32.mrb[0].mxu0
  %269 = vmatprep.mubr.f32.mxu0 0.0
  %270 = vmatmul.mubr.f32.gmra.mrb[0].mxu0 %v176
  %v271 = vpop.f32.mrb[0].mxu0
  %v272 = vadd.f32 %v163, %v271
  %v273 = vpop.f32.mrb[0].mxu0
  %274 = vmatprep.mubr.f32.mxu0 0.0
  %275 = vmatmul.mubr.f32.gmra.mrb[0].mxu0 %v179
  %v276 = vpop.f32.mrb[0].mxu0
  %v277 = vadd.f32 %v163, %v276
  %v278 = vpop.f32.mrb[0].mxu0
  %279 = vmatprep.mubr.f32.mxu0 0.0
  %280 = vmatmul.mubr.f32.gmra.mrb[0].mxu0 %v182
  %v281 = vpop.f32.mrb[0].mxu0
  %v282 = vadd.f32 %v163, %v281
  %v283 = vpop.f32.mrb[0].mxu0
  %284 = vmatprep.mubr.f32.mxu0 0.0
  %285 = vmatmul.mubr.f32.gmra.mrb[0].mxu0 %v185
  %v286 = vpop.f32.mrb[0].mxu0
  %v287 = vadd.f32 %v163, %v286
  %v288 = vpop.f32.mrb[0].mxu0
  %289 = vmatprep.mubr.f32.mxu0 0.0
  %290 = vmatmul.mubr.f32.gmra.mrb[0].mxu0 %v188
  %v291 = vpop.f32.mrb[0].mxu0
  %v292 = vadd.f32 %v163, %v291
  %v293 = vpop.f32.mrb[0].mxu0
  %294 = vdwg.mxu0
  %v296 = vlaneseq
  %v297 = vshrl.u32 %v296, 7
  %v298 = vsub.s32 0, %v297
  %v299 = vrot.slane %v98, %v298
  %301 = vmatprep.subr.mxu0 0.0
  %302 = vmatpush1.msra.mxu0 %v91
  %303 = vmatprep.subr.mxu0 0.0
  %304 = vmatpush1.msra.mxu0 %v92
  %305 = vmatprep.subr.mxu0 0.0
  %306 = vmatpush1.msra.mxu0 0.0
  %307 = vmatprep.subr.mxu0 0.0
  %308 = vmatpush1.msra.mxu0 0.0
  %309 = vmatprep.subr.mxu0 0.0
  %310 = vmatpush1.msra.mxu0 0.0
  %311 = vmatprep.subr.mxu0 0.0
  %312 = vmatpush1.msra.mxu0 0.0
  %313 = vmatprep.subr.mxu0 0.0
  %314 = vmatpush1.msra.mxu0 0.0
  %315 = vmatprep.subr.mxu0 0.0
  %316 = vmatpush1.msra.mxu0 0.0
  %317 = vmatprep.subr.mxu0 0.0
  %318 = vmatpush1.msra.mxu0 0.0
  %319 = vmatprep.subr.mxu0 0.0
  %320 = vmatpush1.msra.mxu0 0.0
  %321 = vmatprep.subr.mxu0 0.0
  %322 = vmatpush1.msra.mxu0 0.0
  %323 = vmatprep.subr.mxu0 0.0
  %324 = vmatpush1.msra.mxu0 0.0
  %325 = vmatprep.subr.mxu0 0.0
  %326 = vmatpush1.msra.mxu0 0.0
  %327 = vmatprep.subr.mxu0 0.0
  %328 = vmatpush1.msra.mxu0 0.0
  %329 = vmatprep.subr.mxu0 0.0
  %330 = vmatpush1.msra.mxu0 0.0
  %331 = vmatprep.subr.mxu0 0.0
  %332 = vmatpush1.msra.mxu0 0.0
  %333 = vmatprep.subr.mxu0 0.0
  %334 = vmatpush1.msra.mxu0 0.0
  %335 = vmatprep.subr.mxu0 0.0
  %336 = vmatpush1.msra.mxu0 0.0
  %337 = vmatprep.subr.mxu0 0.0
  %338 = vmatpush1.msra.mxu0 0.0
  %339 = vmatprep.subr.mxu0 0.0
  %340 = vmatpush1.msra.mxu0 0.0
  %341 = vmatprep.subr.mxu0 0.0
  %342 = vmatpush1.msra.mxu0 0.0
  %343 = vmatprep.subr.mxu0 0.0
  %344 = vmatpush1.msra.mxu0 0.0
  %345 = vmatprep.subr.mxu0 0.0
  %346 = vmatpush1.msra.mxu0 0.0
  %347 = vmatprep.subr.mxu0 0.0
  %348 = vmatpush1.msra.mxu0 0.0
  %349 = vmatprep.subr.mxu0 0.0
  %350 = vmatpush1.msra.mxu0 0.0
  %351 = vmatprep.subr.mxu0 0.0
  %352 = vmatpush1.msra.mxu0 0.0
  %353 = vmatprep.subr.mxu0 0.0
  %354 = vmatpush1.msra.mxu0 0.0
  %355 = vmatprep.subr.mxu0 0.0
  %356 = vmatpush1.msra.mxu0 0.0
  %357 = vmatprep.subr.mxu0 0.0
  %358 = vmatpush1.msra.mxu0 0.0
  %359 = vmatprep.subr.mxu0 0.0
  %360 = vmatpush1.msra.mxu0 0.0
  %361 = vmatprep.subr.mxu0 0.0
  %362 = vmatpush1.msra.mxu0 0.0
  %363 = vmatprep.subr.mxu0 0.0
  %364 = vmatpush1.msra.mxu0 0.0
  %365 = vmatprep.mubr.f32.mxu0 0.0
  %366 = vmatmul.mubr.f32.gmra.mrb[0].mxu0 %v167
  %v367 = vpop.f32.mrb[0].mxu0
  %v368 = vadd.f32 %v299, %v367
  %v369 = vpop.f32.mrb[0].mxu0
  %370 = vmatprep.mubr.f32.mxu0 0.0
  %371 = vmatmul.mubr.f32.gmra.mrb[0].mxu0 %v170
  %v372 = vpop.f32.mrb[0].mxu0
  %v373 = vadd.f32 %v299, %v372
  %v374 = vpop.f32.mrb[0].mxu0
  %375 = vmatprep.mubr.f32.mxu0 0.0
  %376 = vmatmul.mubr.f32.gmra.mrb[0].mxu0 %v173
  %v377 = vpop.f32.mrb[0].mxu0
  %v378 = vadd.f32 %v299, %v377
  %v379 = vpop.f32.mrb[0].mxu0
  %380 = vmatprep.mubr.f32.mxu0 0.0
  %381 = vmatmul.mubr.f32.gmra.mrb[0].mxu0 %v176
  %v382 = vpop.f32.mrb[0].mxu0
  %v383 = vadd.f32 %v299, %v382
  %v384 = vpop.f32.mrb[0].mxu0
  %385 = vmatprep.mubr.f32.mxu0 0.0
  %386 = vmatmul.mubr.f32.gmra.mrb[0].mxu0 %v179
  %v387 = vpop.f32.mrb[0].mxu0
  %v388 = vadd.f32 %v299, %v387
  %v389 = vpop.f32.mrb[0].mxu0
  %390 = vmatprep.mubr.f32.mxu0 0.0
  %391 = vmatmul.mubr.f32.gmra.mrb[0].mxu0 %v182
  %v392 = vpop.f32.mrb[0].mxu0
  %v393 = vadd.f32 %v299, %v392
  %v394 = vpop.f32.mrb[0].mxu0
  %395 = vmatprep.mubr.f32.mxu0 0.0
  %396 = vmatmul.mubr.f32.gmra.mrb[0].mxu0 %v185
  %v397 = vpop.f32.mrb[0].mxu0
  %v398 = vadd.f32 %v299, %v397
  %v399 = vpop.f32.mrb[0].mxu0
  %400 = vmatprep.mubr.f32.mxu0 0.0
  %401 = vmatmul.mubr.f32.gmra.mrb[0].mxu0 %v188
  %v402 = vpop.f32.mrb[0].mxu0
  %v403 = vadd.f32 %v299, %v402
  %v404 = vpop.f32.mrb[0].mxu0
  %405 = vdwg.mxu0
  %vm406 = vcmask 261120
  %v408 = vsel %vm406, 0.0, 0
  %410 = vmatprep.subr.mxu0 0.0
  %411 = vmatpush1.msra.mxu0 %v93
  %412 = vmatprep.subr.mxu0 0.0
  %413 = vmatpush1.msra.mxu0 %v94
  %414 = vmatprep.subr.mxu0 0.0
  %415 = vmatpush1.msra.mxu0 %v95
  %416 = vmatprep.subr.mxu0 0.0
  %417 = vmatpush1.msra.mxu0 %v96
  %418 = vmatprep.subr.mxu0 0.0
  %419 = vmatpush1.msra.mxu0 0.0
  %420 = vmatprep.subr.mxu0 0.0
  %421 = vmatpush1.msra.mxu0 0.0
  %422 = vmatprep.subr.mxu0 0.0
  %423 = vmatpush1.msra.mxu0 0.0
  %424 = vmatprep.subr.mxu0 0.0
  %425 = vmatpush1.msra.mxu0 0.0
  %426 = vmatprep.subr.mxu0 0.0
  %427 = vmatpush1.msra.mxu0 0.0
  %428 = vmatprep.subr.mxu0 0.0
  %429 = vmatpush1.msra.mxu0 0.0
  %430 = vmatprep.subr.mxu0 0.0
  %431 = vmatpush1.msra.mxu0 0.0
  %432 = vmatprep.subr.mxu0 0.0
  %433 = vmatpush1.msra.mxu0 0.0
  %434 = vmatprep.subr.mxu0 0.0
  %435 = vmatpush1.msra.mxu0 0.0
  %436 = vmatprep.subr.mxu0 0.0
  %437 = vmatpush1.msra.mxu0 0.0
  %438 = vmatprep.subr.mxu0 0.0
  %439 = vmatpush1.msra.mxu0 0.0
  %440 = vmatprep.subr.mxu0 0.0
  %441 = vmatpush1.msra.mxu0 0.0
  %442 = vmatprep.subr.mxu0 0.0
  %443 = vmatpush1.msra.mxu0 0.0
  %444 = vmatprep.subr.mxu0 0.0
  %445 = vmatpush1.msra.mxu0 0.0
  %446 = vmatprep.subr.mxu0 0.0
  %447 = vmatpush1.msra.mxu0 0.0
  %448 = vmatprep.subr.mxu0 0.0
  %449 = vmatpush1.msra.mxu0 0.0
  %450 = vmatprep.subr.mxu0 0.0
  %451 = vmatpush1.msra.mxu0 0.0
  %452 = vmatprep.subr.mxu0 0.0
  %453 = vmatpush1.msra.mxu0 0.0
  %454 = vmatprep.subr.mxu0 0.0
  %455 = vmatpush1.msra.mxu0 0.0
  %456 = vmatprep.subr.mxu0 0.0
  %457 = vmatpush1.msra.mxu0 0.0
  %458 = vmatprep.subr.mxu0 0.0
  %459 = vmatpush1.msra.mxu0 0.0
  %460 = vmatprep.subr.mxu0 0.0
  %461 = vmatpush1.msra.mxu0 0.0
  %462 = vmatprep.subr.mxu0 0.0
  %463 = vmatpush1.msra.mxu0 0.0
  %464 = vmatprep.subr.mxu0 0.0
  %465 = vmatpush1.msra.mxu0 0.0
  %466 = vmatprep.subr.mxu0 0.0
  %467 = vmatpush1.msra.mxu0 0.0
  %468 = vmatprep.subr.mxu0 0.0
  %469 = vmatpush1.msra.mxu0 0.0
  %470 = vmatprep.subr.mxu0 0.0
  %471 = vmatpush1.msra.mxu0 0.0
  %472 = vmatprep.subr.mxu0 0.0
  %473 = vmatpush1.msra.mxu0 0.0
  %474 = vmatprep.mubr.f32.mxu0 0.0
  %475 = vmatmul.mubr.f32.gmra.mrb[0].mxu0 %v408
  %v476 = vpop.f32.mrb[0].mxu0
  %v477 = vadd.f32 0.0, %v476
  %v478 = vpop.f32.mrb[0].mxu0
  %479 = vdwg.mxu0
  %v480 = vadd.f32 %v257, %v477
  %v481 = vxor.u32 %v480, 2147483648
  %v482 = vmul.f32 %v481, 1.442695
  %v483 = vpow.pop %v482
  %v484 = vadd.f32 %v483, 1.0
  %v485 = vrcp.pop %v484
  %v486 = vmul.f32 1.0, %v485
  %v488 = vlaneseq
  %v489 = vshrl.u32 %v488, 7
  %v490 = vsub.s32 0, %v489
  %v491 = vrot.slane %v99, %v490
  %492 = vrot.lane.b32.xlu0 %v491, 64
  %v493 = vpop.permute.xlu0 %492
  %v495 = vadd.f32 %v477, %v493
  %497 = vrot.lane.b32.xlu0 %v495, 64
  %v498 = vpop.permute.xlu0 %497
  %v500 = vmul.f32 %v486, %v498
  %v501 = vadd.f32 %v368, %v500
  %v502 = vtanh.pop %v501
  %v503 = vsub.f32 1.0, %v486
  %505 = vrot.lane.b32.xlu0 %v502, 32
  %v506 = vpop.permute.xlu0 %505
  %v508 = vmul.f32 %v503, %v506
  %v509 = vmul.f32 %v486, 0.0
  %v510 = vadd.f32 %v508, %v509
  %512 = vrot.lane.b32.xlu0 %v510, 96
  %v513 = vpop.permute.xlu0 %512
  %515 = vst.msk [vmem:[#allocation2] sm:$0xff] %vm406, %v513
  %v516 = vsel %vm406, %v513, 0
  %518 = vmatprep.subr.mxu0 0.0
  %519 = vmatpush1.msra.mxu0 %v93
  %520 = vmatprep.subr.mxu0 0.0
  %521 = vmatpush1.msra.mxu0 %v94
  %522 = vmatprep.subr.mxu0 0.0
  %523 = vmatpush1.msra.mxu0 %v95
  %524 = vmatprep.subr.mxu0 0.0
  %525 = vmatpush1.msra.mxu0 %v96
  %526 = vmatprep.subr.mxu0 0.0
  %527 = vmatpush1.msra.mxu0 0.0
  %528 = vmatprep.subr.mxu0 0.0
  %529 = vmatpush1.msra.mxu0 0.0
  %530 = vmatprep.subr.mxu0 0.0
  %531 = vmatpush1.msra.mxu0 0.0
  %532 = vmatprep.subr.mxu0 0.0
  %533 = vmatpush1.msra.mxu0 0.0
  %534 = vmatprep.subr.mxu0 0.0
  %535 = vmatpush1.msra.mxu0 0.0
  %536 = vmatprep.subr.mxu0 0.0
  %537 = vmatpush1.msra.mxu0 0.0
  %538 = vmatprep.subr.mxu0 0.0
  %539 = vmatpush1.msra.mxu0 0.0
  %540 = vmatprep.subr.mxu0 0.0
  %541 = vmatpush1.msra.mxu0 0.0
  %542 = vmatprep.subr.mxu0 0.0
  %543 = vmatpush1.msra.mxu0 0.0
  %544 = vmatprep.subr.mxu0 0.0
  %545 = vmatpush1.msra.mxu0 0.0
  %546 = vmatprep.subr.mxu0 0.0
  %547 = vmatpush1.msra.mxu0 0.0
  %548 = vmatprep.subr.mxu0 0.0
  %549 = vmatpush1.msra.mxu0 0.0
  %550 = vmatprep.subr.mxu0 0.0
  %551 = vmatpush1.msra.mxu0 0.0
  %552 = vmatprep.subr.mxu0 0.0
  %553 = vmatpush1.msra.mxu0 0.0
  %554 = vmatprep.subr.mxu0 0.0
  %555 = vmatpush1.msra.mxu0 0.0
  %556 = vmatprep.subr.mxu0 0.0
  %557 = vmatpush1.msra.mxu0 0.0
  %558 = vmatprep.subr.mxu0 0.0
  %559 = vmatpush1.msra.mxu0 0.0
  %560 = vmatprep.subr.mxu0 0.0
  %561 = vmatpush1.msra.mxu0 0.0
  %562 = vmatprep.subr.mxu0 0.0
  %563 = vmatpush1.msra.mxu0 0.0
  %564 = vmatprep.subr.mxu0 0.0
  %565 = vmatpush1.msra.mxu0 0.0
  %566 = vmatprep.subr.mxu0 0.0
  %567 = vmatpush1.msra.mxu0 0.0
  %568 = vmatprep.subr.mxu0 0.0
  %569 = vmatpush1.msra.mxu0 0.0
  %570 = vmatprep.subr.mxu0 0.0
  %571 = vmatpush1.msra.mxu0 0.0
  %572 = vmatprep.subr.mxu0 0.0
  %573 = vmatpush1.msra.mxu0 0.0
  %574 = vmatprep.subr.mxu0 0.0
  %575 = vmatpush1.msra.mxu0 0.0
  %576 = vmatprep.subr.mxu0 0.0
  %577 = vmatpush1.msra.mxu0 0.0
  %578 = vmatprep.subr.mxu0 0.0
  %579 = vmatpush1.msra.mxu0 0.0
  %580 = vmatprep.subr.mxu0 0.0
  %581 = vmatpush1.msra.mxu0 0.0
  %582 = vmatprep.mubr.f32.mxu0 0.0
  %583 = vmatmul.mubr.f32.gmra.mrb[0].mxu0 %v516
  %v584 = vpop.f32.mrb[0].mxu0
  %v585 = vadd.f32 0.0, %v584
  %v586 = vpop.f32.mrb[0].mxu0
  %587 = vdwg.mxu0
  %v588 = vadd.f32 %v262, %v585
  %v589 = vxor.u32 %v588, 2147483648
  %v590 = vmul.f32 %v589, 1.442695
  %v591 = vpow.pop %v590
  %v592 = vadd.f32 %v591, 1.0
  %v593 = vrcp.pop %v592
  %v594 = vmul.f32 1.0, %v593
  %v595 = vadd.f32 %v585, %v493
  %597 = vrot.lane.b32.xlu0 %v595, 64
  %v598 = vpop.permute.xlu0 %597
  %v600 = vmul.f32 %v594, %v598
  %v601 = vadd.f32 %v373, %v600
  %v602 = vtanh.pop %v601
  %v603 = vsub.f32 1.0, %v594
  %605 = vrot.lane.b32.xlu0 %v602, 32
  %v606 = vpop.permute.xlu0 %605
  %v608 = vmul.f32 %v603, %v606
  %v609 = vmul.f32 %v594, %v510
  %v610 = vadd.f32 %v608, %v609
  %612 = vrot.lane.b32.xlu0 %v610, 96
  %v613 = vpop.permute.xlu0 %612
  %615 = vst.msk [vmem:[#allocation2 + $0x8] sm:$0xff] %vm406, %v613
  %v616 = vsel %vm406, %v613, 0
  %618 = vmatprep.subr.mxu0 0.0
  %619 = vmatpush1.msra.mxu0 %v93
  %620 = vmatprep.subr.mxu0 0.0
  %621 = vmatpush1.msra.mxu0 %v94
  %622 = vmatprep.subr.mxu0 0.0
  %623 = vmatpush1.msra.mxu0 %v95
  %624 = vmatprep.subr.mxu0 0.0
  %625 = vmatpush1.msra.mxu0 %v96
  %626 = vmatprep.subr.mxu0 0.0
  %627 = vmatpush1.msra.mxu0 0.0
  %628 = vmatprep.subr.mxu0 0.0
  %629 = vmatpush1.msra.mxu0 0.0
  %630 = vmatprep.subr.mxu0 0.0
  %631 = vmatpush1.msra.mxu0 0.0
  %632 = vmatprep.subr.mxu0 0.0
  %633 = vmatpush1.msra.mxu0 0.0
  %634 = vmatprep.subr.mxu0 0.0
  %635 = vmatpush1.msra.mxu0 0.0
  %636 = vmatprep.subr.mxu0 0.0
  %637 = vmatpush1.msra.mxu0 0.0
  %638 = vmatprep.subr.mxu0 0.0
  %639 = vmatpush1.msra.mxu0 0.0
  %640 = vmatprep.subr.mxu0 0.0
  %641 = vmatpush1.msra.mxu0 0.0
  %642 = vmatprep.subr.mxu0 0.0
  %643 = vmatpush1.msra.mxu0 0.0
  %644 = vmatprep.subr.mxu0 0.0
  %645 = vmatpush1.msra.mxu0 0.0
  %646 = vmatprep.subr.mxu0 0.0
  %647 = vmatpush1.msra.mxu0 0.0
  %648 = vmatprep.subr.mxu0 0.0
  %649 = vmatpush1.msra.mxu0 0.0
  %650 = vmatprep.subr.mxu0 0.0
  %651 = vmatpush1.msra.mxu0 0.0
  %652 = vmatprep.subr.mxu0 0.0
  %653 = vmatpush1.msra.mxu0 0.0
  %654 = vmatprep.subr.mxu0 0.0
  %655 = vmatpush1.msra.mxu0 0.0
  %656 = vmatprep.subr.mxu0 0.0
  %657 = vmatpush1.msra.mxu0 0.0
  %658 = vmatprep.subr.mxu0 0.0
  %659 = vmatpush1.msra.mxu0 0.0
  %660 = vmatprep.subr.mxu0 0.0
  %661 = vmatpush1.msra.mxu0 0.0
  %662 = vmatprep.subr.mxu0 0.0
  %663 = vmatpush1.msra.mxu0 0.0
  %664 = vmatprep.subr.mxu0 0.0
  %665 = vmatpush1.msra.mxu0 0.0
  %666 = vmatprep.subr.mxu0 0.0
  %667 = vmatpush1.msra.mxu0 0.0
  %668 = vmatprep.subr.mxu0 0.0
  %669 = vmatpush1.msra.mxu0 0.0
  %670 = vmatprep.subr.mxu0 0.0
  %671 = vmatpush1.msra.mxu0 0.0
  %672 = vmatprep.subr.mxu0 0.0
  %673 = vmatpush1.msra.mxu0 0.0
  %674 = vmatprep.subr.mxu0 0.0
  %675 = vmatpush1.msra.mxu0 0.0
  %676 = vmatprep.subr.mxu0 0.0
  %677 = vmatpush1.msra.mxu0 0.0
  %678 = vmatprep.subr.mxu0 0.0
  %679 = vmatpush1.msra.mxu0 0.0
  %680 = vmatprep.subr.mxu0 0.0
  %681 = vmatpush1.msra.mxu0 0.0
  %682 = vmatprep.mubr.f32.mxu0 0.0
  %683 = vmatmul.mubr.f32.gmra.mrb[0].mxu0 %v616
  %v684 = vpop.f32.mrb[0].mxu0
  %v685 = vadd.f32 0.0, %v684
  %v686 = vpop.f32.mrb[0].mxu0
  %687 = vdwg.mxu0
  %v688 = vadd.f32 %v267, %v685
  %v689 = vxor.u32 %v688, 2147483648
  %v690 = vmul.f32 %v689, 1.442695
  %v691 = vpow.pop %v690
  %v692 = vadd.f32 %v691, 1.0
  %v693 = vrcp.pop %v692
  %v694 = vmul.f32 1.0, %v693
  %v695 = vadd.f32 %v685, %v493
  %697 = vrot.lane.b32.xlu0 %v695, 64
  %v698 = vpop.permute.xlu0 %697
  %v700 = vmul.f32 %v694, %v698
  %v701 = vadd.f32 %v378, %v700
  %v702 = vtanh.pop %v701
  %v703 = vsub.f32 1.0, %v694
  %705 = vrot.lane.b32.xlu0 %v702, 32
  %v706 = vpop.permute.xlu0 %705
  %v708 = vmul.f32 %v703, %v706
  %v709 = vmul.f32 %v694, %v610
  %v710 = vadd.f32 %v708, %v709
  %712 = vrot.lane.b32.xlu0 %v710, 96
  %v713 = vpop.permute.xlu0 %712
  %715 = vst.msk [vmem:[#allocation2 + $0x10] sm:$0xff] %vm406, %v713
  %v716 = vsel %vm406, %v713, 0
  %718 = vmatprep.subr.mxu0 0.0
  %719 = vmatpush1.msra.mxu0 %v93
  %720 = vmatprep.subr.mxu0 0.0
  %721 = vmatpush1.msra.mxu0 %v94
  %722 = vmatprep.subr.mxu0 0.0
  %723 = vmatpush1.msra.mxu0 %v95
  %724 = vmatprep.subr.mxu0 0.0
  %725 = vmatpush1.msra.mxu0 %v96
  %726 = vmatprep.subr.mxu0 0.0
  %727 = vmatpush1.msra.mxu0 0.0
  %728 = vmatprep.subr.mxu0 0.0
  %729 = vmatpush1.msra.mxu0 0.0
  %730 = vmatprep.subr.mxu0 0.0
  %731 = vmatpush1.msra.mxu0 0.0
  %732 = vmatprep.subr.mxu0 0.0
  %733 = vmatpush1.msra.mxu0 0.0
  %734 = vmatprep.subr.mxu0 0.0
  %735 = vmatpush1.msra.mxu0 0.0
  %736 = vmatprep.subr.mxu0 0.0
  %737 = vmatpush1.msra.mxu0 0.0
  %738 = vmatprep.subr.mxu0 0.0
  %739 = vmatpush1.msra.mxu0 0.0
  %740 = vmatprep.subr.mxu0 0.0
  %741 = vmatpush1.msra.mxu0 0.0
  %742 = vmatprep.subr.mxu0 0.0
  %743 = vmatpush1.msra.mxu0 0.0
  %744 = vmatprep.subr.mxu0 0.0
  %745 = vmatpush1.msra.mxu0 0.0
  %746 = vmatprep.subr.mxu0 0.0
  %747 = vmatpush1.msra.mxu0 0.0
  %748 = vmatprep.subr.mxu0 0.0
  %749 = vmatpush1.msra.mxu0 0.0
  %750 = vmatprep.subr.mxu0 0.0
  %751 = vmatpush1.msra.mxu0 0.0
  %752 = vmatprep.subr.mxu0 0.0
  %753 = vmatpush1.msra.mxu0 0.0
  %754 = vmatprep.subr.mxu0 0.0
  %755 = vmatpush1.msra.mxu0 0.0
  %756 = vmatprep.subr.mxu0 0.0
  %757 = vmatpush1.msra.mxu0 0.0
  %758 = vmatprep.subr.mxu0 0.0
  %759 = vmatpush1.msra.mxu0 0.0
  %760 = vmatprep.subr.mxu0 0.0
  %761 = vmatpush1.msra.mxu0 0.0
  %762 = vmatprep.subr.mxu0 0.0
  %763 = vmatpush1.msra.mxu0 0.0
  %764 = vmatprep.subr.mxu0 0.0
  %765 = vmatpush1.msra.mxu0 0.0
  %766 = vmatprep.subr.mxu0 0.0
  %767 = vmatpush1.msra.mxu0 0.0
  %768 = vmatprep.subr.mxu0 0.0
  %769 = vmatpush1.msra.mxu0 0.0
  %770 = vmatprep.subr.mxu0 0.0
  %771 = vmatpush1.msra.mxu0 0.0
  %772 = vmatprep.subr.mxu0 0.0
  %773 = vmatpush1.msra.mxu0 0.0
  %774 = vmatprep.subr.mxu0 0.0
  %775 = vmatpush1.msra.mxu0 0.0
  %776 = vmatprep.subr.mxu0 0.0
  %777 = vmatpush1.msra.mxu0 0.0
  %778 = vmatprep.subr.mxu0 0.0
  %779 = vmatpush1.msra.mxu0 0.0
  %780 = vmatprep.subr.mxu0 0.0
  %781 = vmatpush1.msra.mxu0 0.0
  %782 = vmatprep.mubr.f32.mxu0 0.0
  %783 = vmatmul.mubr.f32.gmra.mrb[0].mxu0 %v716
  %v784 = vpop.f32.mrb[0].mxu0
  %v785 = vadd.f32 0.0, %v784
  %v786 = vpop.f32.mrb[0].mxu0
  %787 = vdwg.mxu0
  %v788 = vadd.f32 %v272, %v785
  %v789 = vxor.u32 %v788, 2147483648
  %v790 = vmul.f32 %v789, 1.442695
  %v791 = vpow.pop %v790
  %v792 = vadd.f32 %v791, 1.0
  %v793 = vrcp.pop %v792
  %v794 = vmul.f32 1.0, %v793
  %v795 = vadd.f32 %v785, %v493
  %797 = vrot.lane.b32.xlu0 %v795, 64
  %v798 = vpop.permute.xlu0 %797
  %v800 = vmul.f32 %v794, %v798
  %v801 = vadd.f32 %v383, %v800
  %v802 = vtanh.pop %v801
  %v803 = vsub.f32 1.0, %v794
  %805 = vrot.lane.b32.xlu0 %v802, 32
  %v806 = vpop.permute.xlu0 %805
  %v808 = vmul.f32 %v803, %v806
  %v809 = vmul.f32 %v794, %v710
  %v810 = vadd.f32 %v808, %v809
  %812 = vrot.lane.b32.xlu0 %v810, 96
  %v813 = vpop.permute.xlu0 %812
  %815 = vst.msk [vmem:[#allocation2 + $0x18] sm:$0xff] %vm406, %v813
  %v816 = vsel %vm406, %v813, 0
  %818 = vmatprep.subr.mxu0 0.0
  %819 = vmatpush1.msra.mxu0 %v93
  %820 = vmatprep.subr.mxu0 0.0
  %821 = vmatpush1.msra.mxu0 %v94
  %822 = vmatprep.subr.mxu0 0.0
  %823 = vmatpush1.msra.mxu0 %v95
  %824 = vmatprep.subr.mxu0 0.0
  %825 = vmatpush1.msra.mxu0 %v96
  %826 = vmatprep.subr.mxu0 0.0
  %827 = vmatpush1.msra.mxu0 0.0
  %828 = vmatprep.subr.mxu0 0.0
  %829 = vmatpush1.msra.mxu0 0.0
  %830 = vmatprep.subr.mxu0 0.0
  %831 = vmatpush1.msra.mxu0 0.0
  %832 = vmatprep.subr.mxu0 0.0
  %833 = vmatpush1.msra.mxu0 0.0
  %834 = vmatprep.subr.mxu0 0.0
  %835 = vmatpush1.msra.mxu0 0.0
  %836 = vmatprep.subr.mxu0 0.0
  %837 = vmatpush1.msra.mxu0 0.0
  %838 = vmatprep.subr.mxu0 0.0
  %839 = vmatpush1.msra.mxu0 0.0
  %840 = vmatprep.subr.mxu0 0.0
  %841 = vmatpush1.msra.mxu0 0.0
  %842 = vmatprep.subr.mxu0 0.0
  %843 = vmatpush1.msra.mxu0 0.0
  %844 = vmatprep.subr.mxu0 0.0
  %845 = vmatpush1.msra.mxu0 0.0
  %846 = vmatprep.subr.mxu0 0.0
  %847 = vmatpush1.msra.mxu0 0.0
  %848 = vmatprep.subr.mxu0 0.0
  %849 = vmatpush1.msra.mxu0 0.0
  %850 = vmatprep.subr.mxu0 0.0
  %851 = vmatpush1.msra.mxu0 0.0
  %852 = vmatprep.subr.mxu0 0.0
  %853 = vmatpush1.msra.mxu0 0.0
  %854 = vmatprep.subr.mxu0 0.0
  %855 = vmatpush1.msra.mxu0 0.0
  %856 = vmatprep.subr.mxu0 0.0
  %857 = vmatpush1.msra.mxu0 0.0
  %858 = vmatprep.subr.mxu0 0.0
  %859 = vmatpush1.msra.mxu0 0.0
  %860 = vmatprep.subr.mxu0 0.0
  %861 = vmatpush1.msra.mxu0 0.0
  %862 = vmatprep.subr.mxu0 0.0
  %863 = vmatpush1.msra.mxu0 0.0
  %864 = vmatprep.subr.mxu0 0.0
  %865 = vmatpush1.msra.mxu0 0.0
  %866 = vmatprep.subr.mxu0 0.0
  %867 = vmatpush1.msra.mxu0 0.0
  %868 = vmatprep.subr.mxu0 0.0
  %869 = vmatpush1.msra.mxu0 0.0
  %870 = vmatprep.subr.mxu0 0.0
  %871 = vmatpush1.msra.mxu0 0.0
  %872 = vmatprep.subr.mxu0 0.0
  %873 = vmatpush1.msra.mxu0 0.0
  %874 = vmatprep.subr.mxu0 0.0
  %875 = vmatpush1.msra.mxu0 0.0
  %876 = vmatprep.subr.mxu0 0.0
  %877 = vmatpush1.msra.mxu0 0.0
  %878 = vmatprep.subr.mxu0 0.0
  %879 = vmatpush1.msra.mxu0 0.0
  %880 = vmatprep.subr.mxu0 0.0
  %881 = vmatpush1.msra.mxu0 0.0
  %882 = vmatprep.mubr.f32.mxu0 0.0
  %883 = vmatmul.mubr.f32.gmra.mrb[0].mxu0 %v816
  %v884 = vpop.f32.mrb[0].mxu0
  %v885 = vadd.f32 0.0, %v884
  %v886 = vpop.f32.mrb[0].mxu0
  %887 = vdwg.mxu0
  %v888 = vadd.f32 %v277, %v885
  %v889 = vxor.u32 %v888, 2147483648
  %v890 = vmul.f32 %v889, 1.442695
  %v891 = vpow.pop %v890
  %v892 = vadd.f32 %v891, 1.0
  %v893 = vrcp.pop %v892
  %v894 = vmul.f32 1.0, %v893
  %v895 = vadd.f32 %v885, %v493
  %897 = vrot.lane.b32.xlu0 %v895, 64
  %v898 = vpop.permute.xlu0 %897
  %v900 = vmul.f32 %v894, %v898
  %v901 = vadd.f32 %v388, %v900
  %v902 = vtanh.pop %v901
  %v903 = vsub.f32 1.0, %v894
  %905 = vrot.lane.b32.xlu0 %v902, 32
  %v906 = vpop.permute.xlu0 %905
  %v908 = vmul.f32 %v903, %v906
  %v909 = vmul.f32 %v894, %v810
  %v910 = vadd.f32 %v908, %v909
  %912 = vrot.lane.b32.xlu0 %v910, 96
  %v913 = vpop.permute.xlu0 %912
  %915 = vst.msk [vmem:[#allocation2 + $0x20] sm:$0xff] %vm406, %v913
  %v916 = vsel %vm406, %v913, 0
  %918 = vmatprep.subr.mxu0 0.0
  %919 = vmatpush1.msra.mxu0 %v93
  %920 = vmatprep.subr.mxu0 0.0
  %921 = vmatpush1.msra.mxu0 %v94
  %922 = vmatprep.subr.mxu0 0.0
  %923 = vmatpush1.msra.mxu0 %v95
  %924 = vmatprep.subr.mxu0 0.0
  %925 = vmatpush1.msra.mxu0 %v96
  %926 = vmatprep.subr.mxu0 0.0
  %927 = vmatpush1.msra.mxu0 0.0
  %928 = vmatprep.subr.mxu0 0.0
  %929 = vmatpush1.msra.mxu0 0.0
  %930 = vmatprep.subr.mxu0 0.0
  %931 = vmatpush1.msra.mxu0 0.0
  %932 = vmatprep.subr.mxu0 0.0
  %933 = vmatpush1.msra.mxu0 0.0
  %934 = vmatprep.subr.mxu0 0.0
  %935 = vmatpush1.msra.mxu0 0.0
  %936 = vmatprep.subr.mxu0 0.0
  %937 = vmatpush1.msra.mxu0 0.0
  %938 = vmatprep.subr.mxu0 0.0
  %939 = vmatpush1.msra.mxu0 0.0
  %940 = vmatprep.subr.mxu0 0.0
  %941 = vmatpush1.msra.mxu0 0.0
  %942 = vmatprep.subr.mxu0 0.0
  %943 = vmatpush1.msra.mxu0 0.0
  %944 = vmatprep.subr.mxu0 0.0
  %945 = vmatpush1.msra.mxu0 0.0
  %946 = vmatprep.subr.mxu0 0.0
  %947 = vmatpush1.msra.mxu0 0.0
  %948 = vmatprep.subr.mxu0 0.0
  %949 = vmatpush1.msra.mxu0 0.0
  %950 = vmatprep.subr.mxu0 0.0
  %951 = vmatpush1.msra.mxu0 0.0
  %952 = vmatprep.subr.mxu0 0.0
  %953 = vmatpush1.msra.mxu0 0.0
  %954 = vmatprep.subr.mxu0 0.0
  %955 = vmatpush1.msra.mxu0 0.0
  %956 = vmatprep.subr.mxu0 0.0
  %957 = vmatpush1.msra.mxu0 0.0
  %958 = vmatprep.subr.mxu0 0.0
  %959 = vmatpush1.msra.mxu0 0.0
  %960 = vmatprep.subr.mxu0 0.0
  %961 = vmatpush1.msra.mxu0 0.0
  %962 = vmatprep.subr.mxu0 0.0
  %963 = vmatpush1.msra.mxu0 0.0
  %964 = vmatprep.subr.mxu0 0.0
  %965 = vmatpush1.msra.mxu0 0.0
  %966 = vmatprep.subr.mxu0 0.0
  %967 = vmatpush1.msra.mxu0 0.0
  %968 = vmatprep.subr.mxu0 0.0
  %969 = vmatpush1.msra.mxu0 0.0
  %970 = vmatprep.subr.mxu0 0.0
  %971 = vmatpush1.msra.mxu0 0.0
  %972 = vmatprep.subr.mxu0 0.0
  %973 = vmatpush1.msra.mxu0 0.0
  %974 = vmatprep.subr.mxu0 0.0
  %975 = vmatpush1.msra.mxu0 0.0
  %976 = vmatprep.subr.mxu0 0.0
  %977 = vmatpush1.msra.mxu0 0.0
  %978 = vmatprep.subr.mxu0 0.0
  %979 = vmatpush1.msra.mxu0 0.0
  %980 = vmatprep.subr.mxu0 0.0
  %981 = vmatpush1.msra.mxu0 0.0
  %982 = vmatprep.mubr.f32.mxu0 0.0
  %983 = vmatmul.mubr.f32.gmra.mrb[0].mxu0 %v916
  %v984 = vpop.f32.mrb[0].mxu0
  %v985 = vadd.f32 0.0, %v984
  %v986 = vpop.f32.mrb[0].mxu0
  %987 = vdwg.mxu0
  %v988 = vadd.f32 %v282, %v985
  %v989 = vxor.u32 %v988, 2147483648
  %v990 = vmul.f32 %v989, 1.442695
  %v991 = vpow.pop %v990
  %v992 = vadd.f32 %v991, 1.0
  %v993 = vrcp.pop %v992
  %v994 = vmul.f32 1.0, %v993
  %v995 = vadd.f32 %v985, %v493
  %997 = vrot.lane.b32.xlu0 %v995, 64
  %v998 = vpop.permute.xlu0 %997
  %v1000 = vmul.f32 %v994, %v998
  %v1001 = vadd.f32 %v393, %v1000
  %v1002 = vtanh.pop %v1001
  %v1003 = vsub.f32 1.0, %v994
  %1005 = vrot.lane.b32.xlu0 %v1002, 32
  %v1006 = vpop.permute.xlu0 %1005
  %v1008 = vmul.f32 %v1003, %v1006
  %v1009 = vmul.f32 %v994, %v910
  %v1010 = vadd.f32 %v1008, %v1009
  %1012 = vrot.lane.b32.xlu0 %v1010, 96
  %v1013 = vpop.permute.xlu0 %1012
  %1015 = vst.msk [vmem:[#allocation2 + $0x28] sm:$0xff] %vm406, %v1013
  %v1016 = vsel %vm406, %v1013, 0
  %1018 = vmatprep.subr.mxu0 0.0
  %1019 = vmatpush1.msra.mxu0 %v93
  %1020 = vmatprep.subr.mxu0 0.0
  %1021 = vmatpush1.msra.mxu0 %v94
  %1022 = vmatprep.subr.mxu0 0.0
  %1023 = vmatpush1.msra.mxu0 %v95
  %1024 = vmatprep.subr.mxu0 0.0
  %1025 = vmatpush1.msra.mxu0 %v96
  %1026 = vmatprep.subr.mxu0 0.0
  %1027 = vmatpush1.msra.mxu0 0.0
  %1028 = vmatprep.subr.mxu0 0.0
  %1029 = vmatpush1.msra.mxu0 0.0
  %1030 = vmatprep.subr.mxu0 0.0
  %1031 = vmatpush1.msra.mxu0 0.0
  %1032 = vmatprep.subr.mxu0 0.0
  %1033 = vmatpush1.msra.mxu0 0.0
  %1034 = vmatprep.subr.mxu0 0.0
  %1035 = vmatpush1.msra.mxu0 0.0
  %1036 = vmatprep.subr.mxu0 0.0
  %1037 = vmatpush1.msra.mxu0 0.0
  %1038 = vmatprep.subr.mxu0 0.0
  %1039 = vmatpush1.msra.mxu0 0.0
  %1040 = vmatprep.subr.mxu0 0.0
  %1041 = vmatpush1.msra.mxu0 0.0
  %1042 = vmatprep.subr.mxu0 0.0
  %1043 = vmatpush1.msra.mxu0 0.0
  %1044 = vmatprep.subr.mxu0 0.0
  %1045 = vmatpush1.msra.mxu0 0.0
  %1046 = vmatprep.subr.mxu0 0.0
  %1047 = vmatpush1.msra.mxu0 0.0
  %1048 = vmatprep.subr.mxu0 0.0
  %1049 = vmatpush1.msra.mxu0 0.0
  %1050 = vmatprep.subr.mxu0 0.0
  %1051 = vmatpush1.msra.mxu0 0.0
  %1052 = vmatprep.subr.mxu0 0.0
  %1053 = vmatpush1.msra.mxu0 0.0
  %1054 = vmatprep.subr.mxu0 0.0
  %1055 = vmatpush1.msra.mxu0 0.0
  %1056 = vmatprep.subr.mxu0 0.0
  %1057 = vmatpush1.msra.mxu0 0.0
  %1058 = vmatprep.subr.mxu0 0.0
  %1059 = vmatpush1.msra.mxu0 0.0
  %1060 = vmatprep.subr.mxu0 0.0
  %1061 = vmatpush1.msra.mxu0 0.0
  %1062 = vmatprep.subr.mxu0 0.0
  %1063 = vmatpush1.msra.mxu0 0.0
  %1064 = vmatprep.subr.mxu0 0.0
  %1065 = vmatpush1.msra.mxu0 0.0
  %1066 = vmatprep.subr.mxu0 0.0
  %1067 = vmatpush1.msra.mxu0 0.0
  %1068 = vmatprep.subr.mxu0 0.0
  %1069 = vmatpush1.msra.mxu0 0.0
  %1070 = vmatprep.subr.mxu0 0.0
  %1071 = vmatpush1.msra.mxu0 0.0
  %1072 = vmatprep.subr.mxu0 0.0
  %1073 = vmatpush1.msra.mxu0 0.0
  %1074 = vmatprep.subr.mxu0 0.0
  %1075 = vmatpush1.msra.mxu0 0.0
  %1076 = vmatprep.subr.mxu0 0.0
  %1077 = vmatpush1.msra.mxu0 0.0
  %1078 = vmatprep.subr.mxu0 0.0
  %1079 = vmatpush1.msra.mxu0 0.0
  %1080 = vmatprep.subr.mxu0 0.0
  %1081 = vmatpush1.msra.mxu0 0.0
  %1082 = vmatprep.mubr.f32.mxu0 0.0
  %1083 = vmatmul.mubr.f32.gmra.mrb[0].mxu0 %v1016
  %v1084 = vpop.f32.mrb[0].mxu0
  %v1085 = vadd.f32 0.0, %v1084
  %v1086 = vpop.f32.mrb[0].mxu0
  %1087 = vdwg.mxu0
  %v1088 = vadd.f32 %v287, %v1085
  %v1089 = vxor.u32 %v1088, 2147483648
  %v1090 = vmul.f32 %v1089, 1.442695
  %v1091 = vpow.pop %v1090
  %v1092 = vadd.f32 %v1091, 1.0
  %v1093 = vrcp.pop %v1092
  %v1094 = vmul.f32 1.0, %v1093
  %v1095 = vadd.f32 %v1085, %v493
  %1097 = vrot.lane.b32.xlu0 %v1095, 64
  %v1098 = vpop.permute.xlu0 %1097
  %v1100 = vmul.f32 %v1094, %v1098
  %v1101 = vadd.f32 %v398, %v1100
  %v1102 = vtanh.pop %v1101
  %v1103 = vsub.f32 1.0, %v1094
  %1105 = vrot.lane.b32.xlu0 %v1102, 32
  %v1106 = vpop.permute.xlu0 %1105
  %v1108 = vmul.f32 %v1103, %v1106
  %v1109 = vmul.f32 %v1094, %v1010
  %v1110 = vadd.f32 %v1108, %v1109
  %1112 = vrot.lane.b32.xlu0 %v1110, 96
  %v1113 = vpop.permute.xlu0 %1112
  %1115 = vst.msk [vmem:[#allocation2 + $0x30] sm:$0xff] %vm406, %v1113
  %v1116 = vsel %vm406, %v1113, 0
  %1118 = vmatprep.subr.mxu0 0.0
  %1119 = vmatpush1.msra.mxu0 %v93
  %1120 = vmatprep.subr.mxu0 0.0
  %1121 = vmatpush1.msra.mxu0 %v94
  %1122 = vmatprep.subr.mxu0 0.0
  %1123 = vmatpush1.msra.mxu0 %v95
  %1124 = vmatprep.subr.mxu0 0.0
  %1125 = vmatpush1.msra.mxu0 %v96
  %1126 = vmatprep.subr.mxu0 0.0
  %1127 = vmatpush1.msra.mxu0 0.0
  %1128 = vmatprep.subr.mxu0 0.0
  %1129 = vmatpush1.msra.mxu0 0.0
  %1130 = vmatprep.subr.mxu0 0.0
  %1131 = vmatpush1.msra.mxu0 0.0
  %1132 = vmatprep.subr.mxu0 0.0
  %1133 = vmatpush1.msra.mxu0 0.0
  %1134 = vmatprep.subr.mxu0 0.0
  %1135 = vmatpush1.msra.mxu0 0.0
  %1136 = vmatprep.subr.mxu0 0.0
  %1137 = vmatpush1.msra.mxu0 0.0
  %1138 = vmatprep.subr.mxu0 0.0
  %1139 = vmatpush1.msra.mxu0 0.0
  %1140 = vmatprep.subr.mxu0 0.0
  %1141 = vmatpush1.msra.mxu0 0.0
  %1142 = vmatprep.subr.mxu0 0.0
  %1143 = vmatpush1.msra.mxu0 0.0
  %1144 = vmatprep.subr.mxu0 0.0
  %1145 = vmatpush1.msra.mxu0 0.0
  %1146 = vmatprep.subr.mxu0 0.0
  %1147 = vmatpush1.msra.mxu0 0.0
  %1148 = vmatprep.subr.mxu0 0.0
  %1149 = vmatpush1.msra.mxu0 0.0
  %1150 = vmatprep.subr.mxu0 0.0
  %1151 = vmatpush1.msra.mxu0 0.0
  %1152 = vmatprep.subr.mxu0 0.0
  %1153 = vmatpush1.msra.mxu0 0.0
  %1154 = vmatprep.subr.mxu0 0.0
  %1155 = vmatpush1.msra.mxu0 0.0
  %1156 = vmatprep.subr.mxu0 0.0
  %1157 = vmatpush1.msra.mxu0 0.0
  %1158 = vmatprep.subr.mxu0 0.0
  %1159 = vmatpush1.msra.mxu0 0.0
  %1160 = vmatprep.subr.mxu0 0.0
  %1161 = vmatpush1.msra.mxu0 0.0
  %1162 = vmatprep.subr.mxu0 0.0
  %1163 = vmatpush1.msra.mxu0 0.0
  %1164 = vmatprep.subr.mxu0 0.0
  %1165 = vmatpush1.msra.mxu0 0.0
  %1166 = vmatprep.subr.mxu0 0.0
  %1167 = vmatpush1.msra.mxu0 0.0
  %1168 = vmatprep.subr.mxu0 0.0
  %1169 = vmatpush1.msra.mxu0 0.0
  %1170 = vmatprep.subr.mxu0 0.0
  %1171 = vmatpush1.msra.mxu0 0.0
  %1172 = vmatprep.subr.mxu0 0.0
  %1173 = vmatpush1.msra.mxu0 0.0
  %1174 = vmatprep.subr.mxu0 0.0
  %1175 = vmatpush1.msra.mxu0 0.0
  %1176 = vmatprep.subr.mxu0 0.0
  %1177 = vmatpush1.msra.mxu0 0.0
  %1178 = vmatprep.subr.mxu0 0.0
  %1179 = vmatpush1.msra.mxu0 0.0
  %1180 = vmatprep.subr.mxu0 0.0
  %1181 = vmatpush1.msra.mxu0 0.0
  %1182 = vmatprep.mubr.f32.mxu0 0.0
  %1183 = vmatmul.mubr.f32.gmra.mrb[0].mxu0 %v1116
  %v1184 = vpop.f32.mrb[0].mxu0
  %v1185 = vadd.f32 0.0, %v1184
  %v1186 = vpop.f32.mrb[0].mxu0
  %1187 = vdwg.mxu0
  %v1188 = vadd.f32 %v292, %v1185
  %v1189 = vxor.u32 %v1188, 2147483648
  %v1190 = vmul.f32 %v1189, 1.442695
  %v1191 = vpow.pop %v1190
  %v1192 = vadd.f32 %v1191, 1.0
  %v1193 = vrcp.pop %v1192
  %v1194 = vmul.f32 1.0, %v1193
  %v1195 = vadd.f32 %v1185, %v493
  %1197 = vrot.lane.b32.xlu0 %v1195, 64
  %v1198 = vpop.permute.xlu0 %1197
  %v1200 = vmul.f32 %v1194, %v1198
  %v1201 = vadd.f32 %v403, %v1200
  %v1202 = vtanh.pop %v1201
  %v1203 = vsub.f32 1.0, %v1194
  %1205 = vrot.lane.b32.xlu0 %v1202, 32
  %v1206 = vpop.permute.xlu0 %1205
  %v1208 = vmul.f32 %v1203, %v1206
  %v1209 = vmul.f32 %v1194, %v1110
  %v1210 = vadd.f32 %v1208, %v1209
  %1212 = vrot.lane.b32.xlu0 %v1210, 96
  %v1213 = vpop.permute.xlu0 %1212
  %1215 = vst.msk [vmem:[#allocation2 + $0x38] sm:$0xff] %vm406, %v1213
  %v1216 = vld [vmem:[#allocation2] sm:$0xff]
  %v1217 = vld [vmem:[#allocation2 + $0x8] sm:$0xff]
  %v1218 = vld [vmem:[#allocation2 + $0x10] sm:$0xff]
  %v1219 = vld [vmem:[#allocation2 + $0x18] sm:$0xff]
  %v1220 = vld [vmem:[#allocation2 + $0x20] sm:$0xff]
  %v1221 = vld [vmem:[#allocation2 + $0x28] sm:$0xff]
  %v1222 = vld [vmem:[#allocation2 + $0x30] sm:$0xff]
  %v1223 = vld [vmem:[#allocation2 + $0x38] sm:$0xff]
  %v1225 = vlaneseq
  %v1226 = vshrl.u32 %v1225, 7
  %v1227 = vsub.s32 0, %v1226
  %v1228 = vrot.slane %v112, %v1227
  %v1231 = vsel %vm406, %v1216, 0
  %v1234 = vsel %vm406, %v1217, 0
  %v1237 = vsel %vm406, %v1218, 0
  %v1240 = vsel %vm406, %v1219, 0
  %v1243 = vsel %vm406, %v1220, 0
  %v1246 = vsel %vm406, %v1221, 0
  %v1249 = vsel %vm406, %v1222, 0
  %v1252 = vsel %vm406, %v1223, 0
  %1254 = vmatprep.subr.mxu0 0.0
  %1255 = vmatpush1.msra.mxu0 %v100
  %1256 = vmatprep.subr.mxu0 0.0
  %1257 = vmatpush1.msra.mxu0 %v101
  %1258 = vmatprep.subr.mxu0 0.0
  %1259 = vmatpush1.msra.mxu0 %v102
  %1260 = vmatprep.subr.mxu0 0.0
  %1261 = vmatpush1.msra.mxu0 %v103
  %1262 = vmatprep.subr.mxu0 0.0
  %1263 = vmatpush1.msra.mxu0 0.0
  %1264 = vmatprep.subr.mxu0 0.0
  %1265 = vmatpush1.msra.mxu0 0.0
  %1266 = vmatprep.subr.mxu0 0.0
  %1267 = vmatpush1.msra.mxu0 0.0
  %1268 = vmatprep.subr.mxu0 0.0
  %1269 = vmatpush1.msra.mxu0 0.0
  %1270 = vmatprep.subr.mxu0 0.0
  %1271 = vmatpush1.msra.mxu0 0.0
  %1272 = vmatprep.subr.mxu0 0.0
  %1273 = vmatpush1.msra.mxu0 0.0
  %1274 = vmatprep.subr.mxu0 0.0
  %1275 = vmatpush1.msra.mxu0 0.0
  %1276 = vmatprep.subr.mxu0 0.0
  %1277 = vmatpush1.msra.mxu0 0.0
  %1278 = vmatprep.subr.mxu0 0.0
  %1279 = vmatpush1.msra.mxu0 0.0
  %1280 = vmatprep.subr.mxu0 0.0
  %1281 = vmatpush1.msra.mxu0 0.0
  %1282 = vmatprep.subr.mxu0 0.0
  %1283 = vmatpush1.msra.mxu0 0.0
  %1284 = vmatprep.subr.mxu0 0.0
  %1285 = vmatpush1.msra.mxu0 0.0
  %1286 = vmatprep.subr.mxu0 0.0
  %1287 = vmatpush1.msra.mxu0 0.0
  %1288 = vmatprep.subr.mxu0 0.0
  %1289 = vmatpush1.msra.mxu0 0.0
  %1290 = vmatprep.subr.mxu0 0.0
  %1291 = vmatpush1.msra.mxu0 0.0
  %1292 = vmatprep.subr.mxu0 0.0
  %1293 = vmatpush1.msra.mxu0 0.0
  %1294 = vmatprep.subr.mxu0 0.0
  %1295 = vmatpush1.msra.mxu0 0.0
  %1296 = vmatprep.subr.mxu0 0.0
  %1297 = vmatpush1.msra.mxu0 0.0
  %1298 = vmatprep.subr.mxu0 0.0
  %1299 = vmatpush1.msra.mxu0 0.0
  %1300 = vmatprep.subr.mxu0 0.0
  %1301 = vmatpush1.msra.mxu0 0.0
  %1302 = vmatprep.subr.mxu0 0.0
  %1303 = vmatpush1.msra.mxu0 0.0
  %1304 = vmatprep.subr.mxu0 0.0
  %1305 = vmatpush1.msra.mxu0 0.0
  %1306 = vmatprep.subr.mxu0 0.0
  %1307 = vmatpush1.msra.mxu0 0.0
  %1308 = vmatprep.subr.mxu0 0.0
  %1309 = vmatpush1.msra.mxu0 0.0
  %1310 = vmatprep.subr.mxu0 0.0
  %1311 = vmatpush1.msra.mxu0 0.0
  %1312 = vmatprep.subr.mxu0 0.0
  %1313 = vmatpush1.msra.mxu0 0.0
  %1314 = vmatprep.subr.mxu0 0.0
  %1315 = vmatpush1.msra.mxu0 0.0
  %1316 = vmatprep.subr.mxu0 0.0
  %1317 = vmatpush1.msra.mxu0 0.0
  %1318 = vmatprep.mubr.f32.mxu0 0.0
  %1319 = vmatmul.mubr.f32.gmra.mrb[0].mxu0 %v1231
  %v1320 = vpop.f32.mrb[0].mxu0
  %v1321 = vadd.f32 %v1228, %v1320
  %v1322 = vpop.f32.mrb[0].mxu0
  %1323 = vmatprep.mubr.f32.mxu0 0.0
  %1324 = vmatmul.mubr.f32.gmra.mrb[0].mxu0 %v1234
  %v1325 = vpop.f32.mrb[0].mxu0
  %v1326 = vadd.f32 %v1228, %v1325
  %v1327 = vpop.f32.mrb[0].mxu0
  %1328 = vmatprep.mubr.f32.mxu0 0.0
  %1329 = vmatmul.mubr.f32.gmra.mrb[0].mxu0 %v1237
  %v1330 = vpop.f32.mrb[0].mxu0
  %v1331 = vadd.f32 %v1228, %v1330
  %v1332 = vpop.f32.mrb[0].mxu0
  %1333 = vmatprep.mubr.f32.mxu0 0.0
  %1334 = vmatmul.mubr.f32.gmra.mrb[0].mxu0 %v1240
  %v1335 = vpop.f32.mrb[0].mxu0
  %v1336 = vadd.f32 %v1228, %v1335
  %v1337 = vpop.f32.mrb[0].mxu0
  %1338 = vmatprep.mubr.f32.mxu0 0.0
  %1339 = vmatmul.mubr.f32.gmra.mrb[0].mxu0 %v1243
  %v1340 = vpop.f32.mrb[0].mxu0
  %v1341 = vadd.f32 %v1228, %v1340
  %v1342 = vpop.f32.mrb[0].mxu0
  %1343 = vmatprep.mubr.f32.mxu0 0.0
  %1344 = vmatmul.mubr.f32.gmra.mrb[0].mxu0 %v1246
  %v1345 = vpop.f32.mrb[0].mxu0
  %v1346 = vadd.f32 %v1228, %v1345
  %v1347 = vpop.f32.mrb[0].mxu0
  %1348 = vmatprep.mubr.f32.mxu0 0.0
  %1349 = vmatmul.mubr.f32.gmra.mrb[0].mxu0 %v1249
  %v1350 = vpop.f32.mrb[0].mxu0
  %v1351 = vadd.f32 %v1228, %v1350
  %v1352 = vpop.f32.mrb[0].mxu0
  %1353 = vmatprep.mubr.f32.mxu0 0.0
  %1354 = vmatmul.mubr.f32.gmra.mrb[0].mxu0 %v1252
  %v1355 = vpop.f32.mrb[0].mxu0
  %v1356 = vadd.f32 %v1228, %v1355
  %v1357 = vpop.f32.mrb[0].mxu0
  %1358 = vdwg.mxu0
  %v1360 = vlaneseq
  %v1361 = vshrl.u32 %v1360, 7
  %v1362 = vsub.s32 0, %v1361
  %v1363 = vrot.slane %v113, %v1362
  %1365 = vmatprep.subr.mxu0 0.0
  %1366 = vmatpush1.msra.mxu0 %v104
  %1367 = vmatprep.subr.mxu0 0.0
  %1368 = vmatpush1.msra.mxu0 %v105
  %1369 = vmatprep.subr.mxu0 0.0
  %1370 = vmatpush1.msra.mxu0 %v106
  %1371 = vmatprep.subr.mxu0 0.0
  %1372 = vmatpush1.msra.mxu0 %v107
  %1373 = vmatprep.subr.mxu0 0.0
  %1374 = vmatpush1.msra.mxu0 0.0
  %1375 = vmatprep.subr.mxu0 0.0
  %1376 = vmatpush1.msra.mxu0 0.0
  %1377 = vmatprep.subr.mxu0 0.0
  %1378 = vmatpush1.msra.mxu0 0.0
  %1379 = vmatprep.subr.mxu0 0.0
  %1380 = vmatpush1.msra.mxu0 0.0
  %1381 = vmatprep.subr.mxu0 0.0
  %1382 = vmatpush1.msra.mxu0 0.0
  %1383 = vmatprep.subr.mxu0 0.0
  %1384 = vmatpush1.msra.mxu0 0.0
  %1385 = vmatprep.subr.mxu0 0.0
  %1386 = vmatpush1.msra.mxu0 0.0
  %1387 = vmatprep.subr.mxu0 0.0
  %1388 = vmatpush1.msra.mxu0 0.0
  %1389 = vmatprep.subr.mxu0 0.0
  %1390 = vmatpush1.msra.mxu0 0.0
  %1391 = vmatprep.subr.mxu0 0.0
  %1392 = vmatpush1.msra.mxu0 0.0
  %1393 = vmatprep.subr.mxu0 0.0
  %1394 = vmatpush1.msra.mxu0 0.0
  %1395 = vmatprep.subr.mxu0 0.0
  %1396 = vmatpush1.msra.mxu0 0.0
  %1397 = vmatprep.subr.mxu0 0.0
  %1398 = vmatpush1.msra.mxu0 0.0
  %1399 = vmatprep.subr.mxu0 0.0
  %1400 = vmatpush1.msra.mxu0 0.0
  %1401 = vmatprep.subr.mxu0 0.0
  %1402 = vmatpush1.msra.mxu0 0.0
  %1403 = vmatprep.subr.mxu0 0.0
  %1404 = vmatpush1.msra.mxu0 0.0
  %1405 = vmatprep.subr.mxu0 0.0
  %1406 = vmatpush1.msra.mxu0 0.0
  %1407 = vmatprep.subr.mxu0 0.0
  %1408 = vmatpush1.msra.mxu0 0.0
  %1409 = vmatprep.subr.mxu0 0.0
  %1410 = vmatpush1.msra.mxu0 0.0
  %1411 = vmatprep.subr.mxu0 0.0
  %1412 = vmatpush1.msra.mxu0 0.0
  %1413 = vmatprep.subr.mxu0 0.0
  %1414 = vmatpush1.msra.mxu0 0.0
  %1415 = vmatprep.subr.mxu0 0.0
  %1416 = vmatpush1.msra.mxu0 0.0
  %1417 = vmatprep.subr.mxu0 0.0
  %1418 = vmatpush1.msra.mxu0 0.0
  %1419 = vmatprep.subr.mxu0 0.0
  %1420 = vmatpush1.msra.mxu0 0.0
  %1421 = vmatprep.subr.mxu0 0.0
  %1422 = vmatpush1.msra.mxu0 0.0
  %1423 = vmatprep.subr.mxu0 0.0
  %1424 = vmatpush1.msra.mxu0 0.0
  %1425 = vmatprep.subr.mxu0 0.0
  %1426 = vmatpush1.msra.mxu0 0.0
  %1427 = vmatprep.subr.mxu0 0.0
  %1428 = vmatpush1.msra.mxu0 0.0
  %1429 = vmatprep.mubr.f32.mxu0 0.0
  %1430 = vmatmul.mubr.f32.gmra.mrb[0].mxu0 %v1231
  %v1431 = vpop.f32.mrb[0].mxu0
  %v1432 = vadd.f32 %v1363, %v1431
  %v1433 = vpop.f32.mrb[0].mxu0
  %1434 = vmatprep.mubr.f32.mxu0 0.0
  %1435 = vmatmul.mubr.f32.gmra.mrb[0].mxu0 %v1234
  %v1436 = vpop.f32.mrb[0].mxu0
  %v1437 = vadd.f32 %v1363, %v1436
  %v1438 = vpop.f32.mrb[0].mxu0
  %1439 = vmatprep.mubr.f32.mxu0 0.0
  %1440 = vmatmul.mubr.f32.gmra.mrb[0].mxu0 %v1237
  %v1441 = vpop.f32.mrb[0].mxu0
  %v1442 = vadd.f32 %v1363, %v1441
  %v1443 = vpop.f32.mrb[0].mxu0
  %1444 = vmatprep.mubr.f32.mxu0 0.0
  %1445 = vmatmul.mubr.f32.gmra.mrb[0].mxu0 %v1240
  %v1446 = vpop.f32.mrb[0].mxu0
  %v1447 = vadd.f32 %v1363, %v1446
  %v1448 = vpop.f32.mrb[0].mxu0
  %1449 = vmatprep.mubr.f32.mxu0 0.0
  %1450 = vmatmul.mubr.f32.gmra.mrb[0].mxu0 %v1243
  %v1451 = vpop.f32.mrb[0].mxu0
  %v1452 = vadd.f32 %v1363, %v1451
  %v1453 = vpop.f32.mrb[0].mxu0
  %1454 = vmatprep.mubr.f32.mxu0 0.0
  %1455 = vmatmul.mubr.f32.gmra.mrb[0].mxu0 %v1246
  %v1456 = vpop.f32.mrb[0].mxu0
  %v1457 = vadd.f32 %v1363, %v1456
  %v1458 = vpop.f32.mrb[0].mxu0
  %1459 = vmatprep.mubr.f32.mxu0 0.0
  %1460 = vmatmul.mubr.f32.gmra.mrb[0].mxu0 %v1249
  %v1461 = vpop.f32.mrb[0].mxu0
  %v1462 = vadd.f32 %v1363, %v1461
  %v1463 = vpop.f32.mrb[0].mxu0
  %1464 = vmatprep.mubr.f32.mxu0 0.0
  %1465 = vmatmul.mubr.f32.gmra.mrb[0].mxu0 %v1252
  %v1466 = vpop.f32.mrb[0].mxu0
  %v1467 = vadd.f32 %v1363, %v1466
  %v1468 = vpop.f32.mrb[0].mxu0
  %1469 = vdwg.mxu0
  %1470 = vmatprep.subr.mxu0 0.0
  %1471 = vmatpush1.msra.mxu0 %v108
  %1472 = vmatprep.subr.mxu0 0.0
  %1473 = vmatpush1.msra.mxu0 %v109
  %1474 = vmatprep.subr.mxu0 0.0
  %1475 = vmatpush1.msra.mxu0 %v110
  %1476 = vmatprep.subr.mxu0 0.0
  %1477 = vmatpush1.msra.mxu0 %v111
  %1478 = vmatprep.subr.mxu0 0.0
  %1479 = vmatpush1.msra.mxu0 0.0
  %1480 = vmatprep.subr.mxu0 0.0
  %1481 = vmatpush1.msra.mxu0 0.0
  %1482 = vmatprep.subr.mxu0 0.0
  %1483 = vmatpush1.msra.mxu0 0.0
  %1484 = vmatprep.subr.mxu0 0.0
  %1485 = vmatpush1.msra.mxu0 0.0
  %1486 = vmatprep.subr.mxu0 0.0
  %1487 = vmatpush1.msra.mxu0 0.0
  %1488 = vmatprep.subr.mxu0 0.0
  %1489 = vmatpush1.msra.mxu0 0.0
  %1490 = vmatprep.subr.mxu0 0.0
  %1491 = vmatpush1.msra.mxu0 0.0
  %1492 = vmatprep.subr.mxu0 0.0
  %1493 = vmatpush1.msra.mxu0 0.0
  %1494 = vmatprep.subr.mxu0 0.0
  %1495 = vmatpush1.msra.mxu0 0.0
  %1496 = vmatprep.subr.mxu0 0.0
  %1497 = vmatpush1.msra.mxu0 0.0
  %1498 = vmatprep.subr.mxu0 0.0
  %1499 = vmatpush1.msra.mxu0 0.0
  %1500 = vmatprep.subr.mxu0 0.0
  %1501 = vmatpush1.msra.mxu0 0.0
  %1502 = vmatprep.subr.mxu0 0.0
  %1503 = vmatpush1.msra.mxu0 0.0
  %1504 = vmatprep.subr.mxu0 0.0
  %1505 = vmatpush1.msra.mxu0 0.0
  %1506 = vmatprep.subr.mxu0 0.0
  %1507 = vmatpush1.msra.mxu0 0.0
  %1508 = vmatprep.subr.mxu0 0.0
  %1509 = vmatpush1.msra.mxu0 0.0
  %1510 = vmatprep.subr.mxu0 0.0
  %1511 = vmatpush1.msra.mxu0 0.0
  %1512 = vmatprep.subr.mxu0 0.0
  %1513 = vmatpush1.msra.mxu0 0.0
  %1514 = vmatprep.subr.mxu0 0.0
  %1515 = vmatpush1.msra.mxu0 0.0
  %1516 = vmatprep.subr.mxu0 0.0
  %1517 = vmatpush1.msra.mxu0 0.0
  %1518 = vmatprep.subr.mxu0 0.0
  %1519 = vmatpush1.msra.mxu0 0.0
  %1520 = vmatprep.subr.mxu0 0.0
  %1521 = vmatpush1.msra.mxu0 0.0
  %1522 = vmatprep.subr.mxu0 0.0
  %1523 = vmatpush1.msra.mxu0 0.0
  %1524 = vmatprep.subr.mxu0 0.0
  %1525 = vmatpush1.msra.mxu0 0.0
  %1526 = vmatprep.subr.mxu0 0.0
  %1527 = vmatpush1.msra.mxu0 0.0
  %1528 = vmatprep.subr.mxu0 0.0
  %1529 = vmatpush1.msra.mxu0 0.0
  %1530 = vmatprep.subr.mxu0 0.0
  %1531 = vmatpush1.msra.mxu0 0.0
  %1532 = vmatprep.subr.mxu0 0.0
  %1533 = vmatpush1.msra.mxu0 0.0
  %1534 = vmatprep.mubr.f32.mxu0 0.0
  %1535 = vmatmul.mubr.f32.gmra.mrb[0].mxu0 %v408
  %v1536 = vpop.f32.mrb[0].mxu0
  %v1537 = vadd.f32 0.0, %v1536
  %v1538 = vpop.f32.mrb[0].mxu0
  %1539 = vdwg.mxu0
  %v1540 = vadd.f32 %v1321, %v1537
  %v1541 = vxor.u32 %v1540, 2147483648
  %v1542 = vmul.f32 %v1541, 1.442695
  %v1543 = vpow.pop %v1542
  %v1544 = vadd.f32 %v1543, 1.0
  %v1545 = vrcp.pop %v1544
  %v1546 = vmul.f32 1.0, %v1545
  %v1548 = vlaneseq
  %v1549 = vshrl.u32 %v1548, 7
  %v1550 = vsub.s32 0, %v1549
  %v1551 = vrot.slane %v114, %v1550
  %1552 = vrot.lane.b32.xlu0 %v1551, 64
  %v1553 = vpop.permute.xlu0 %1552
  %v1555 = vadd.f32 %v1537, %v1553
  %1557 = vrot.lane.b32.xlu0 %v1555, 64
  %v1558 = vpop.permute.xlu0 %1557
  %v1560 = vmul.f32 %v1546, %v1558
  %v1561 = vadd.f32 %v1432, %v1560
  %v1562 = vtanh.pop %v1561
  %v1563 = vsub.f32 1.0, %v1546
  %1565 = vrot.lane.b32.xlu0 %v1562, 32
  %v1566 = vpop.permute.xlu0 %1565
  %v1568 = vmul.f32 %v1563, %v1566
  %v1569 = vmul.f32 %v1546, 0.0
  %v1570 = vadd.f32 %v1568, %v1569
  %1572 = vrot.lane.b32.xlu0 %v1570, 96
  %v1573 = vpop.permute.xlu0 %1572
  %v1574 = vsel %vm406, %v1573, 0
  %1576 = vmatprep.subr.mxu0 0.0
  %1577 = vmatpush1.msra.mxu0 %v108
  %1578 = vmatprep.subr.mxu0 0.0
  %1579 = vmatpush1.msra.mxu0 %v109
  %1580 = vmatprep.subr.mxu0 0.0
  %1581 = vmatpush1.msra.mxu0 %v110
  %1582 = vmatprep.subr.mxu0 0.0
  %1583 = vmatpush1.msra.mxu0 %v111
  %1584 = vmatprep.subr.mxu0 0.0
  %1585 = vmatpush1.msra.mxu0 0.0
  %1586 = vmatprep.subr.mxu0 0.0
  %1587 = vmatpush1.msra.mxu0 0.0
  %1588 = vmatprep.subr.mxu0 0.0
  %1589 = vmatpush1.msra.mxu0 0.0
  %1590 = vmatprep.subr.mxu0 0.0
  %1591 = vmatpush1.msra.mxu0 0.0
  %1592 = vmatprep.subr.mxu0 0.0
  %1593 = vmatpush1.msra.mxu0 0.0
  %1594 = vmatprep.subr.mxu0 0.0
  %1595 = vmatpush1.msra.mxu0 0.0
  %1596 = vmatprep.subr.mxu0 0.0
  %1597 = vmatpush1.msra.mxu0 0.0
  %1598 = vmatprep.subr.mxu0 0.0
  %1599 = vmatpush1.msra.mxu0 0.0
  %1600 = vmatprep.subr.mxu0 0.0
  %1601 = vmatpush1.msra.mxu0 0.0
  %1602 = vmatprep.subr.mxu0 0.0
  %1603 = vmatpush1.msra.mxu0 0.0
  %1604 = vmatprep.subr.mxu0 0.0
  %1605 = vmatpush1.msra.mxu0 0.0
  %1606 = vmatprep.subr.mxu0 0.0
  %1607 = vmatpush1.msra.mxu0 0.0
  %1608 = vmatprep.subr.mxu0 0.0
  %1609 = vmatpush1.msra.mxu0 0.0
  %1610 = vmatprep.subr.mxu0 0.0
  %1611 = vmatpush1.msra.mxu0 0.0
  %1612 = vmatprep.subr.mxu0 0.0
  %1613 = vmatpush1.msra.mxu0 0.0
  %1614 = vmatprep.subr.mxu0 0.0
  %1615 = vmatpush1.msra.mxu0 0.0
  %1616 = vmatprep.subr.mxu0 0.0
  %1617 = vmatpush1.msra.mxu0 0.0
  %1618 = vmatprep.subr.mxu0 0.0
  %1619 = vmatpush1.msra.mxu0 0.0
  %1620 = vmatprep.subr.mxu0 0.0
  %1621 = vmatpush1.msra.mxu0 0.0
  %1622 = vmatprep.subr.mxu0 0.0
  %1623 = vmatpush1.msra.mxu0 0.0
  %1624 = vmatprep.subr.mxu0 0.0
  %1625 = vmatpush1.msra.mxu0 0.0
  %1626 = vmatprep.subr.mxu0 0.0
  %1627 = vmatpush1.msra.mxu0 0.0
  %1628 = vmatprep.subr.mxu0 0.0
  %1629 = vmatpush1.msra.mxu0 0.0
  %1630 = vmatprep.subr.mxu0 0.0
  %1631 = vmatpush1.msra.mxu0 0.0
  %1632 = vmatprep.subr.mxu0 0.0
  %1633 = vmatpush1.msra.mxu0 0.0
  %1634 = vmatprep.subr.mxu0 0.0
  %1635 = vmatpush1.msra.mxu0 0.0
  %1636 = vmatprep.subr.mxu0 0.0
  %1637 = vmatpush1.msra.mxu0 0.0
  %1638 = vmatprep.subr.mxu0 0.0
  %1639 = vmatpush1.msra.mxu0 0.0
  %1640 = vmatprep.mubr.f32.mxu0 0.0
  %1641 = vmatmul.mubr.f32.gmra.mrb[0].mxu0 %v1574
  %v1642 = vpop.f32.mrb[0].mxu0
  %v1643 = vadd.f32 0.0, %v1642
  %v1644 = vpop.f32.mrb[0].mxu0
  %1645 = vdwg.mxu0
  %v1646 = vadd.f32 %v1326, %v1643
  %v1647 = vxor.u32 %v1646, 2147483648
  %v1648 = vmul.f32 %v1647, 1.442695
  %v1649 = vpow.pop %v1648
  %v1650 = vadd.f32 %v1649, 1.0
  %v1651 = vrcp.pop %v1650
  %v1652 = vmul.f32 1.0, %v1651
  %v1653 = vadd.f32 %v1643, %v1553
  %1655 = vrot.lane.b32.xlu0 %v1653, 64
  %v1656 = vpop.permute.xlu0 %1655
  %v1658 = vmul.f32 %v1652, %v1656
  %v1659 = vadd.f32 %v1437, %v1658
  %v1660 = vtanh.pop %v1659
  %v1661 = vsub.f32 1.0, %v1652
  %1663 = vrot.lane.b32.xlu0 %v1660, 32
  %v1664 = vpop.permute.xlu0 %1663
  %v1666 = vmul.f32 %v1661, %v1664
  %v1667 = vmul.f32 %v1652, %v1570
  %v1668 = vadd.f32 %v1666, %v1667
  %1670 = vrot.lane.b32.xlu0 %v1668, 96
  %v1671 = vpop.permute.xlu0 %1670
  %v1672 = vsel %vm406, %v1671, 0
  %1674 = vmatprep.subr.mxu0 0.0
  %1675 = vmatpush1.msra.mxu0 %v108
  %1676 = vmatprep.subr.mxu0 0.0
  %1677 = vmatpush1.msra.mxu0 %v109
  %1678 = vmatprep.subr.mxu0 0.0
  %1679 = vmatpush1.msra.mxu0 %v110
  %1680 = vmatprep.subr.mxu0 0.0
  %1681 = vmatpush1.msra.mxu0 %v111
  %1682 = vmatprep.subr.mxu0 0.0
  %1683 = vmatpush1.msra.mxu0 0.0
  %1684 = vmatprep.subr.mxu0 0.0
  %1685 = vmatpush1.msra.mxu0 0.0
  %1686 = vmatprep.subr.mxu0 0.0
  %1687 = vmatpush1.msra.mxu0 0.0
  %1688 = vmatprep.subr.mxu0 0.0
  %1689 = vmatpush1.msra.mxu0 0.0
  %1690 = vmatprep.subr.mxu0 0.0
  %1691 = vmatpush1.msra.mxu0 0.0
  %1692 = vmatprep.subr.mxu0 0.0
  %1693 = vmatpush1.msra.mxu0 0.0
  %1694 = vmatprep.subr.mxu0 0.0
  %1695 = vmatpush1.msra.mxu0 0.0
  %1696 = vmatprep.subr.mxu0 0.0
  %1697 = vmatpush1.msra.mxu0 0.0
  %1698 = vmatprep.subr.mxu0 0.0
  %1699 = vmatpush1.msra.mxu0 0.0
  %1700 = vmatprep.subr.mxu0 0.0
  %1701 = vmatpush1.msra.mxu0 0.0
  %1702 = vmatprep.subr.mxu0 0.0
  %1703 = vmatpush1.msra.mxu0 0.0
  %1704 = vmatprep.subr.mxu0 0.0
  %1705 = vmatpush1.msra.mxu0 0.0
  %1706 = vmatprep.subr.mxu0 0.0
  %1707 = vmatpush1.msra.mxu0 0.0
  %1708 = vmatprep.subr.mxu0 0.0
  %1709 = vmatpush1.msra.mxu0 0.0
  %1710 = vmatprep.subr.mxu0 0.0
  %1711 = vmatpush1.msra.mxu0 0.0
  %1712 = vmatprep.subr.mxu0 0.0
  %1713 = vmatpush1.msra.mxu0 0.0
  %1714 = vmatprep.subr.mxu0 0.0
  %1715 = vmatpush1.msra.mxu0 0.0
  %1716 = vmatprep.subr.mxu0 0.0
  %1717 = vmatpush1.msra.mxu0 0.0
  %1718 = vmatprep.subr.mxu0 0.0
  %1719 = vmatpush1.msra.mxu0 0.0
  %1720 = vmatprep.subr.mxu0 0.0
  %1721 = vmatpush1.msra.mxu0 0.0
  %1722 = vmatprep.subr.mxu0 0.0
  %1723 = vmatpush1.msra.mxu0 0.0
  %1724 = vmatprep.subr.mxu0 0.0
  %1725 = vmatpush1.msra.mxu0 0.0
  %1726 = vmatprep.subr.mxu0 0.0
  %1727 = vmatpush1.msra.mxu0 0.0
  %1728 = vmatprep.subr.mxu0 0.0
  %1729 = vmatpush1.msra.mxu0 0.0
  %1730 = vmatprep.subr.mxu0 0.0
  %1731 = vmatpush1.msra.mxu0 0.0
  %1732 = vmatprep.subr.mxu0 0.0
  %1733 = vmatpush1.msra.mxu0 0.0
  %1734 = vmatprep.subr.mxu0 0.0
  %1735 = vmatpush1.msra.mxu0 0.0
  %1736 = vmatprep.subr.mxu0 0.0
  %1737 = vmatpush1.msra.mxu0 0.0
  %1738 = vmatprep.mubr.f32.mxu0 0.0
  %1739 = vmatmul.mubr.f32.gmra.mrb[0].mxu0 %v1672
  %v1740 = vpop.f32.mrb[0].mxu0
  %v1741 = vadd.f32 0.0, %v1740
  %v1742 = vpop.f32.mrb[0].mxu0
  %1743 = vdwg.mxu0
  %v1744 = vadd.f32 %v1331, %v1741
  %v1745 = vxor.u32 %v1744, 2147483648
  %v1746 = vmul.f32 %v1745, 1.442695
  %v1747 = vpow.pop %v1746
  %v1748 = vadd.f32 %v1747, 1.0
  %v1749 = vrcp.pop %v1748
  %v1750 = vmul.f32 1.0, %v1749
  %v1751 = vadd.f32 %v1741, %v1553
  %1753 = vrot.lane.b32.xlu0 %v1751, 64
  %v1754 = vpop.permute.xlu0 %1753
  %v1756 = vmul.f32 %v1750, %v1754
  %v1757 = vadd.f32 %v1442, %v1756
  %v1758 = vtanh.pop %v1757
  %v1759 = vsub.f32 1.0, %v1750
  %1761 = vrot.lane.b32.xlu0 %v1758, 32
  %v1762 = vpop.permute.xlu0 %1761
  %v1764 = vmul.f32 %v1759, %v1762
  %v1765 = vmul.f32 %v1750, %v1668
  %v1766 = vadd.f32 %v1764, %v1765
  %1768 = vrot.lane.b32.xlu0 %v1766, 96
  %v1769 = vpop.permute.xlu0 %1768
  %v1770 = vsel %vm406, %v1769, 0
  %1772 = vmatprep.subr.mxu0 0.0
  %1773 = vmatpush1.msra.mxu0 %v108
  %1774 = vmatprep.subr.mxu0 0.0
  %1775 = vmatpush1.msra.mxu0 %v109
  %1776 = vmatprep.subr.mxu0 0.0
  %1777 = vmatpush1.msra.mxu0 %v110
  %1778 = vmatprep.subr.mxu0 0.0
  %1779 = vmatpush1.msra.mxu0 %v111
  %1780 = vmatprep.subr.mxu0 0.0
  %1781 = vmatpush1.msra.mxu0 0.0
  %1782 = vmatprep.subr.mxu0 0.0
  %1783 = vmatpush1.msra.mxu0 0.0
  %1784 = vmatprep.subr.mxu0 0.0
  %1785 = vmatpush1.msra.mxu0 0.0
  %1786 = vmatprep.subr.mxu0 0.0
  %1787 = vmatpush1.msra.mxu0 0.0
  %1788 = vmatprep.subr.mxu0 0.0
  %1789 = vmatpush1.msra.mxu0 0.0
  %1790 = vmatprep.subr.mxu0 0.0
  %1791 = vmatpush1.msra.mxu0 0.0
  %1792 = vmatprep.subr.mxu0 0.0
  %1793 = vmatpush1.msra.mxu0 0.0
  %1794 = vmatprep.subr.mxu0 0.0
  %1795 = vmatpush1.msra.mxu0 0.0
  %1796 = vmatprep.subr.mxu0 0.0
  %1797 = vmatpush1.msra.mxu0 0.0
  %1798 = vmatprep.subr.mxu0 0.0
  %1799 = vmatpush1.msra.mxu0 0.0
  %1800 = vmatprep.subr.mxu0 0.0
  %1801 = vmatpush1.msra.mxu0 0.0
  %1802 = vmatprep.subr.mxu0 0.0
  %1803 = vmatpush1.msra.mxu0 0.0
  %1804 = vmatprep.subr.mxu0 0.0
  %1805 = vmatpush1.msra.mxu0 0.0
  %1806 = vmatprep.subr.mxu0 0.0
  %1807 = vmatpush1.msra.mxu0 0.0
  %1808 = vmatprep.subr.mxu0 0.0
  %1809 = vmatpush1.msra.mxu0 0.0
  %1810 = vmatprep.subr.mxu0 0.0
  %1811 = vmatpush1.msra.mxu0 0.0
  %1812 = vmatprep.subr.mxu0 0.0
  %1813 = vmatpush1.msra.mxu0 0.0
  %1814 = vmatprep.subr.mxu0 0.0
  %1815 = vmatpush1.msra.mxu0 0.0
  %1816 = vmatprep.subr.mxu0 0.0
  %1817 = vmatpush1.msra.mxu0 0.0
  %1818 = vmatprep.subr.mxu0 0.0
  %1819 = vmatpush1.msra.mxu0 0.0
  %1820 = vmatprep.subr.mxu0 0.0
  %1821 = vmatpush1.msra.mxu0 0.0
  %1822 = vmatprep.subr.mxu0 0.0
  %1823 = vmatpush1.msra.mxu0 0.0
  %1824 = vmatprep.subr.mxu0 0.0
  %1825 = vmatpush1.msra.mxu0 0.0
  %1826 = vmatprep.subr.mxu0 0.0
  %1827 = vmatpush1.msra.mxu0 0.0
  %1828 = vmatprep.subr.mxu0 0.0
  %1829 = vmatpush1.msra.mxu0 0.0
  %1830 = vmatprep.subr.mxu0 0.0
  %1831 = vmatpush1.msra.mxu0 0.0
  %1832 = vmatprep.subr.mxu0 0.0
  %1833 = vmatpush1.msra.mxu0 0.0
  %1834 = vmatprep.subr.mxu0 0.0
  %1835 = vmatpush1.msra.mxu0 0.0
  %1836 = vmatprep.mubr.f32.mxu0 0.0
  %1837 = vmatmul.mubr.f32.gmra.mrb[0].mxu0 %v1770
  %v1838 = vpop.f32.mrb[0].mxu0
  %v1839 = vadd.f32 0.0, %v1838
  %v1840 = vpop.f32.mrb[0].mxu0
  %1841 = vdwg.mxu0
  %v1842 = vadd.f32 %v1336, %v1839
  %v1843 = vxor.u32 %v1842, 2147483648
  %v1844 = vmul.f32 %v1843, 1.442695
  %v1845 = vpow.pop %v1844
  %v1846 = vadd.f32 %v1845, 1.0
  %v1847 = vrcp.pop %v1846
  %v1848 = vmul.f32 1.0, %v1847
  %v1849 = vadd.f32 %v1839, %v1553
  %1851 = vrot.lane.b32.xlu0 %v1849, 64
  %v1852 = vpop.permute.xlu0 %1851
  %v1854 = vmul.f32 %v1848, %v1852
  %v1855 = vadd.f32 %v1447, %v1854
  %v1856 = vtanh.pop %v1855
  %v1857 = vsub.f32 1.0, %v1848
  %1859 = vrot.lane.b32.xlu0 %v1856, 32
  %v1860 = vpop.permute.xlu0 %1859
  %v1862 = vmul.f32 %v1857, %v1860
  %v1863 = vmul.f32 %v1848, %v1766
  %v1864 = vadd.f32 %v1862, %v1863
  %1866 = vrot.lane.b32.xlu0 %v1864, 96
  %v1867 = vpop.permute.xlu0 %1866
  %v1868 = vsel %vm406, %v1867, 0
  %1870 = vmatprep.subr.mxu0 0.0
  %1871 = vmatpush1.msra.mxu0 %v108
  %1872 = vmatprep.subr.mxu0 0.0
  %1873 = vmatpush1.msra.mxu0 %v109
  %1874 = vmatprep.subr.mxu0 0.0
  %1875 = vmatpush1.msra.mxu0 %v110
  %1876 = vmatprep.subr.mxu0 0.0
  %1877 = vmatpush1.msra.mxu0 %v111
  %1878 = vmatprep.subr.mxu0 0.0
  %1879 = vmatpush1.msra.mxu0 0.0
  %1880 = vmatprep.subr.mxu0 0.0
  %1881 = vmatpush1.msra.mxu0 0.0
  %1882 = vmatprep.subr.mxu0 0.0
  %1883 = vmatpush1.msra.mxu0 0.0
  %1884 = vmatprep.subr.mxu0 0.0
  %1885 = vmatpush1.msra.mxu0 0.0
  %1886 = vmatprep.subr.mxu0 0.0
  %1887 = vmatpush1.msra.mxu0 0.0
  %1888 = vmatprep.subr.mxu0 0.0
  %1889 = vmatpush1.msra.mxu0 0.0
  %1890 = vmatprep.subr.mxu0 0.0
  %1891 = vmatpush1.msra.mxu0 0.0
  %1892 = vmatprep.subr.mxu0 0.0
  %1893 = vmatpush1.msra.mxu0 0.0
  %1894 = vmatprep.subr.mxu0 0.0
  %1895 = vmatpush1.msra.mxu0 0.0
  %1896 = vmatprep.subr.mxu0 0.0
  %1897 = vmatpush1.msra.mxu0 0.0
  %1898 = vmatprep.subr.mxu0 0.0
  %1899 = vmatpush1.msra.mxu0 0.0
  %1900 = vmatprep.subr.mxu0 0.0
  %1901 = vmatpush1.msra.mxu0 0.0
  %1902 = vmatprep.subr.mxu0 0.0
  %1903 = vmatpush1.msra.mxu0 0.0
  %1904 = vmatprep.subr.mxu0 0.0
  %1905 = vmatpush1.msra.mxu0 0.0
  %1906 = vmatprep.subr.mxu0 0.0
  %1907 = vmatpush1.msra.mxu0 0.0
  %1908 = vmatprep.subr.mxu0 0.0
  %1909 = vmatpush1.msra.mxu0 0.0
  %1910 = vmatprep.subr.mxu0 0.0
  %1911 = vmatpush1.msra.mxu0 0.0
  %1912 = vmatprep.subr.mxu0 0.0
  %1913 = vmatpush1.msra.mxu0 0.0
  %1914 = vmatprep.subr.mxu0 0.0
  %1915 = vmatpush1.msra.mxu0 0.0
  %1916 = vmatprep.subr.mxu0 0.0
  %1917 = vmatpush1.msra.mxu0 0.0
  %1918 = vmatprep.subr.mxu0 0.0
  %1919 = vmatpush1.msra.mxu0 0.0
  %1920 = vmatprep.subr.mxu0 0.0
  %1921 = vmatpush1.msra.mxu0 0.0
  %1922 = vmatprep.subr.mxu0 0.0
  %1923 = vmatpush1.msra.mxu0 0.0
  %1924 = vmatprep.subr.mxu0 0.0
  %1925 = vmatpush1.msra.mxu0 0.0
  %1926 = vmatprep.subr.mxu0 0.0
  %1927 = vmatpush1.msra.mxu0 0.0
  %1928 = vmatprep.subr.mxu0 0.0
  %1929 = vmatpush1.msra.mxu0 0.0
  %1930 = vmatprep.subr.mxu0 0.0
  %1931 = vmatpush1.msra.mxu0 0.0
  %1932 = vmatprep.subr.mxu0 0.0
  %1933 = vmatpush1.msra.mxu0 0.0
  %1934 = vmatprep.mubr.f32.mxu0 0.0
  %1935 = vmatmul.mubr.f32.gmra.mrb[0].mxu0 %v1868
  %v1936 = vpop.f32.mrb[0].mxu0
  %v1937 = vadd.f32 0.0, %v1936
  %v1938 = vpop.f32.mrb[0].mxu0
  %1939 = vdwg.mxu0
  %v1940 = vadd.f32 %v1341, %v1937
  %v1941 = vxor.u32 %v1940, 2147483648
  %v1942 = vmul.f32 %v1941, 1.442695
  %v1943 = vpow.pop %v1942
  %v1944 = vadd.f32 %v1943, 1.0
  %v1945 = vrcp.pop %v1944
  %v1946 = vmul.f32 1.0, %v1945
  %v1947 = vadd.f32 %v1937, %v1553
  %1949 = vrot.lane.b32.xlu0 %v1947, 64
  %v1950 = vpop.permute.xlu0 %1949
  %v1952 = vmul.f32 %v1946, %v1950
  %v1953 = vadd.f32 %v1452, %v1952
  %v1954 = vtanh.pop %v1953
  %v1955 = vsub.f32 1.0, %v1946
  %1957 = vrot.lane.b32.xlu0 %v1954, 32
  %v1958 = vpop.permute.xlu0 %1957
  %v1960 = vmul.f32 %v1955, %v1958
  %v1961 = vmul.f32 %v1946, %v1864
  %v1962 = vadd.f32 %v1960, %v1961
  %1964 = vrot.lane.b32.xlu0 %v1962, 96
  %v1965 = vpop.permute.xlu0 %1964
  %v1966 = vsel %vm406, %v1965, 0
  %1968 = vmatprep.subr.mxu0 0.0
  %1969 = vmatpush1.msra.mxu0 %v108
  %1970 = vmatprep.subr.mxu0 0.0
  %1971 = vmatpush1.msra.mxu0 %v109
  %1972 = vmatprep.subr.mxu0 0.0
  %1973 = vmatpush1.msra.mxu0 %v110
  %1974 = vmatprep.subr.mxu0 0.0
  %1975 = vmatpush1.msra.mxu0 %v111
  %1976 = vmatprep.subr.mxu0 0.0
  %1977 = vmatpush1.msra.mxu0 0.0
  %1978 = vmatprep.subr.mxu0 0.0
  %1979 = vmatpush1.msra.mxu0 0.0
  %1980 = vmatprep.subr.mxu0 0.0
  %1981 = vmatpush1.msra.mxu0 0.0
  %1982 = vmatprep.subr.mxu0 0.0
  %1983 = vmatpush1.msra.mxu0 0.0
  %1984 = vmatprep.subr.mxu0 0.0
  %1985 = vmatpush1.msra.mxu0 0.0
  %1986 = vmatprep.subr.mxu0 0.0
  %1987 = vmatpush1.msra.mxu0 0.0
  %1988 = vmatprep.subr.mxu0 0.0
  %1989 = vmatpush1.msra.mxu0 0.0
  %1990 = vmatprep.subr.mxu0 0.0
  %1991 = vmatpush1.msra.mxu0 0.0
  %1992 = vmatprep.subr.mxu0 0.0
  %1993 = vmatpush1.msra.mxu0 0.0
  %1994 = vmatprep.subr.mxu0 0.0
  %1995 = vmatpush1.msra.mxu0 0.0
  %1996 = vmatprep.subr.mxu0 0.0
  %1997 = vmatpush1.msra.mxu0 0.0
  %1998 = vmatprep.subr.mxu0 0.0
  %1999 = vmatpush1.msra.mxu0 0.0
  %2000 = vmatprep.subr.mxu0 0.0
  %2001 = vmatpush1.msra.mxu0 0.0
  %2002 = vmatprep.subr.mxu0 0.0
  %2003 = vmatpush1.msra.mxu0 0.0
  %2004 = vmatprep.subr.mxu0 0.0
  %2005 = vmatpush1.msra.mxu0 0.0
  %2006 = vmatprep.subr.mxu0 0.0
  %2007 = vmatpush1.msra.mxu0 0.0
  %2008 = vmatprep.subr.mxu0 0.0
  %2009 = vmatpush1.msra.mxu0 0.0
  %2010 = vmatprep.subr.mxu0 0.0
  %2011 = vmatpush1.msra.mxu0 0.0
  %2012 = vmatprep.subr.mxu0 0.0
  %2013 = vmatpush1.msra.mxu0 0.0
  %2014 = vmatprep.subr.mxu0 0.0
  %2015 = vmatpush1.msra.mxu0 0.0
  %2016 = vmatprep.subr.mxu0 0.0
  %2017 = vmatpush1.msra.mxu0 0.0
  %2018 = vmatprep.subr.mxu0 0.0
  %2019 = vmatpush1.msra.mxu0 0.0
  %2020 = vmatprep.subr.mxu0 0.0
  %2021 = vmatpush1.msra.mxu0 0.0
  %2022 = vmatprep.subr.mxu0 0.0
  %2023 = vmatpush1.msra.mxu0 0.0
  %2024 = vmatprep.subr.mxu0 0.0
  %2025 = vmatpush1.msra.mxu0 0.0
  %2026 = vmatprep.subr.mxu0 0.0
  %2027 = vmatpush1.msra.mxu0 0.0
  %2028 = vmatprep.subr.mxu0 0.0
  %2029 = vmatpush1.msra.mxu0 0.0
  %2030 = vmatprep.subr.mxu0 0.0
  %2031 = vmatpush1.msra.mxu0 0.0
  %2032 = vmatprep.mubr.f32.mxu0 0.0
  %2033 = vmatmul.mubr.f32.gmra.mrb[0].mxu0 %v1966
  %v2034 = vpop.f32.mrb[0].mxu0
  %v2035 = vadd.f32 0.0, %v2034
  %v2036 = vpop.f32.mrb[0].mxu0
  %2037 = vdwg.mxu0
  %v2038 = vadd.f32 %v1346, %v2035
  %v2039 = vxor.u32 %v2038, 2147483648
  %v2040 = vmul.f32 %v2039, 1.442695
  %v2041 = vpow.pop %v2040
  %v2042 = vadd.f32 %v2041, 1.0
  %v2043 = vrcp.pop %v2042
  %v2044 = vmul.f32 1.0, %v2043
  %v2045 = vadd.f32 %v2035, %v1553
  %2047 = vrot.lane.b32.xlu0 %v2045, 64
  %v2048 = vpop.permute.xlu0 %2047
  %v2050 = vmul.f32 %v2044, %v2048
  %v2051 = vadd.f32 %v1457, %v2050
  %v2052 = vtanh.pop %v2051
  %v2053 = vsub.f32 1.0, %v2044
  %2055 = vrot.lane.b32.xlu0 %v2052, 32
  %v2056 = vpop.permute.xlu0 %2055
  %v2058 = vmul.f32 %v2053, %v2056
  %v2059 = vmul.f32 %v2044, %v1962
  %v2060 = vadd.f32 %v2058, %v2059
  %2062 = vrot.lane.b32.xlu0 %v2060, 96
  %v2063 = vpop.permute.xlu0 %2062
  %v2064 = vsel %vm406, %v2063, 0
  %2066 = vmatprep.subr.mxu0 0.0
  %2067 = vmatpush1.msra.mxu0 %v108
  %2068 = vmatprep.subr.mxu0 0.0
  %2069 = vmatpush1.msra.mxu0 %v109
  %2070 = vmatprep.subr.mxu0 0.0
  %2071 = vmatpush1.msra.mxu0 %v110
  %2072 = vmatprep.subr.mxu0 0.0
  %2073 = vmatpush1.msra.mxu0 %v111
  %2074 = vmatprep.subr.mxu0 0.0
  %2075 = vmatpush1.msra.mxu0 0.0
  %2076 = vmatprep.subr.mxu0 0.0
  %2077 = vmatpush1.msra.mxu0 0.0
  %2078 = vmatprep.subr.mxu0 0.0
  %2079 = vmatpush1.msra.mxu0 0.0
  %2080 = vmatprep.subr.mxu0 0.0
  %2081 = vmatpush1.msra.mxu0 0.0
  %2082 = vmatprep.subr.mxu0 0.0
  %2083 = vmatpush1.msra.mxu0 0.0
  %2084 = vmatprep.subr.mxu0 0.0
  %2085 = vmatpush1.msra.mxu0 0.0
  %2086 = vmatprep.subr.mxu0 0.0
  %2087 = vmatpush1.msra.mxu0 0.0
  %2088 = vmatprep.subr.mxu0 0.0
  %2089 = vmatpush1.msra.mxu0 0.0
  %2090 = vmatprep.subr.mxu0 0.0
  %2091 = vmatpush1.msra.mxu0 0.0
  %2092 = vmatprep.subr.mxu0 0.0
  %2093 = vmatpush1.msra.mxu0 0.0
  %2094 = vmatprep.subr.mxu0 0.0
  %2095 = vmatpush1.msra.mxu0 0.0
  %2096 = vmatprep.subr.mxu0 0.0
  %2097 = vmatpush1.msra.mxu0 0.0
  %2098 = vmatprep.subr.mxu0 0.0
  %2099 = vmatpush1.msra.mxu0 0.0
  %2100 = vmatprep.subr.mxu0 0.0
  %2101 = vmatpush1.msra.mxu0 0.0
  %2102 = vmatprep.subr.mxu0 0.0
  %2103 = vmatpush1.msra.mxu0 0.0
  %2104 = vmatprep.subr.mxu0 0.0
  %2105 = vmatpush1.msra.mxu0 0.0
  %2106 = vmatprep.subr.mxu0 0.0
  %2107 = vmatpush1.msra.mxu0 0.0
  %2108 = vmatprep.subr.mxu0 0.0
  %2109 = vmatpush1.msra.mxu0 0.0
  %2110 = vmatprep.subr.mxu0 0.0
  %2111 = vmatpush1.msra.mxu0 0.0
  %2112 = vmatprep.subr.mxu0 0.0
  %2113 = vmatpush1.msra.mxu0 0.0
  %2114 = vmatprep.subr.mxu0 0.0
  %2115 = vmatpush1.msra.mxu0 0.0
  %2116 = vmatprep.subr.mxu0 0.0
  %2117 = vmatpush1.msra.mxu0 0.0
  %2118 = vmatprep.subr.mxu0 0.0
  %2119 = vmatpush1.msra.mxu0 0.0
  %2120 = vmatprep.subr.mxu0 0.0
  %2121 = vmatpush1.msra.mxu0 0.0
  %2122 = vmatprep.subr.mxu0 0.0
  %2123 = vmatpush1.msra.mxu0 0.0
  %2124 = vmatprep.subr.mxu0 0.0
  %2125 = vmatpush1.msra.mxu0 0.0
  %2126 = vmatprep.subr.mxu0 0.0
  %2127 = vmatpush1.msra.mxu0 0.0
  %2128 = vmatprep.subr.mxu0 0.0
  %2129 = vmatpush1.msra.mxu0 0.0
  %2130 = vmatprep.mubr.f32.mxu0 0.0
  %2131 = vmatmul.mubr.f32.gmra.mrb[0].mxu0 %v2064
  %v2132 = vpop.f32.mrb[0].mxu0
  %v2133 = vadd.f32 0.0, %v2132
  %v2134 = vpop.f32.mrb[0].mxu0
  %2135 = vdwg.mxu0
  %v2136 = vadd.f32 %v1351, %v2133
  %v2137 = vxor.u32 %v2136, 2147483648
  %v2138 = vmul.f32 %v2137, 1.442695
  %v2139 = vpow.pop %v2138
  %v2140 = vadd.f32 %v2139, 1.0
  %v2141 = vrcp.pop %v2140
  %v2142 = vmul.f32 1.0, %v2141
  %v2143 = vadd.f32 %v2133, %v1553
  %2145 = vrot.lane.b32.xlu0 %v2143, 64
  %v2146 = vpop.permute.xlu0 %2145
  %v2148 = vmul.f32 %v2142, %v2146
  %v2149 = vadd.f32 %v1462, %v2148
  %v2150 = vtanh.pop %v2149
  %v2151 = vsub.f32 1.0, %v2142
  %2153 = vrot.lane.b32.xlu0 %v2150, 32
  %v2154 = vpop.permute.xlu0 %2153
  %v2156 = vmul.f32 %v2151, %v2154
  %v2157 = vmul.f32 %v2142, %v2060
  %v2158 = vadd.f32 %v2156, %v2157
  %2160 = vrot.lane.b32.xlu0 %v2158, 96
  %v2161 = vpop.permute.xlu0 %2160
  %v2162 = vsel %vm406, %v2161, 0
  %2164 = vmatprep.subr.mxu0 0.0
  %2165 = vmatpush1.msra.mxu0 %v108
  %2166 = vmatprep.subr.mxu0 0.0
  %2167 = vmatpush1.msra.mxu0 %v109
  %2168 = vmatprep.subr.mxu0 0.0
  %2169 = vmatpush1.msra.mxu0 %v110
  %2170 = vmatprep.subr.mxu0 0.0
  %2171 = vmatpush1.msra.mxu0 %v111
  %2172 = vmatprep.subr.mxu0 0.0
  %2173 = vmatpush1.msra.mxu0 0.0
  %2174 = vmatprep.subr.mxu0 0.0
  %2175 = vmatpush1.msra.mxu0 0.0
  %2176 = vmatprep.subr.mxu0 0.0
  %2177 = vmatpush1.msra.mxu0 0.0
  %2178 = vmatprep.subr.mxu0 0.0
  %2179 = vmatpush1.msra.mxu0 0.0
  %2180 = vmatprep.subr.mxu0 0.0
  %2181 = vmatpush1.msra.mxu0 0.0
  %2182 = vmatprep.subr.mxu0 0.0
  %2183 = vmatpush1.msra.mxu0 0.0
  %2184 = vmatprep.subr.mxu0 0.0
  %2185 = vmatpush1.msra.mxu0 0.0
  %2186 = vmatprep.subr.mxu0 0.0
  %2187 = vmatpush1.msra.mxu0 0.0
  %2188 = vmatprep.subr.mxu0 0.0
  %2189 = vmatpush1.msra.mxu0 0.0
  %2190 = vmatprep.subr.mxu0 0.0
  %2191 = vmatpush1.msra.mxu0 0.0
  %2192 = vmatprep.subr.mxu0 0.0
  %2193 = vmatpush1.msra.mxu0 0.0
  %2194 = vmatprep.subr.mxu0 0.0
  %2195 = vmatpush1.msra.mxu0 0.0
  %2196 = vmatprep.subr.mxu0 0.0
  %2197 = vmatpush1.msra.mxu0 0.0
  %2198 = vmatprep.subr.mxu0 0.0
  %2199 = vmatpush1.msra.mxu0 0.0
  %2200 = vmatprep.subr.mxu0 0.0
  %2201 = vmatpush1.msra.mxu0 0.0
  %2202 = vmatprep.subr.mxu0 0.0
  %2203 = vmatpush1.msra.mxu0 0.0
  %2204 = vmatprep.subr.mxu0 0.0
  %2205 = vmatpush1.msra.mxu0 0.0
  %2206 = vmatprep.subr.mxu0 0.0
  %2207 = vmatpush1.msra.mxu0 0.0
  %2208 = vmatprep.subr.mxu0 0.0
  %2209 = vmatpush1.msra.mxu0 0.0
  %2210 = vmatprep.subr.mxu0 0.0
  %2211 = vmatpush1.msra.mxu0 0.0
  %2212 = vmatprep.subr.mxu0 0.0
  %2213 = vmatpush1.msra.mxu0 0.0
  %2214 = vmatprep.subr.mxu0 0.0
  %2215 = vmatpush1.msra.mxu0 0.0
  %2216 = vmatprep.subr.mxu0 0.0
  %2217 = vmatpush1.msra.mxu0 0.0
  %2218 = vmatprep.subr.mxu0 0.0
  %2219 = vmatpush1.msra.mxu0 0.0
  %2220 = vmatprep.subr.mxu0 0.0
  %2221 = vmatpush1.msra.mxu0 0.0
  %2222 = vmatprep.subr.mxu0 0.0
  %2223 = vmatpush1.msra.mxu0 0.0
  %2224 = vmatprep.subr.mxu0 0.0
  %2225 = vmatpush1.msra.mxu0 0.0
  %2226 = vmatprep.subr.mxu0 0.0
  %2227 = vmatpush1.msra.mxu0 0.0
  %2228 = vmatprep.mubr.f32.mxu0 0.0
  %2229 = vmatmul.mubr.f32.gmra.mrb[0].mxu0 %v2162
  %v2230 = vpop.f32.mrb[0].mxu0
  %v2231 = vadd.f32 0.0, %v2230
  %v2232 = vpop.f32.mrb[0].mxu0
  %2233 = vdwg.mxu0
  %v2234 = vadd.f32 %v1356, %v2231
  %v2235 = vxor.u32 %v2234, 2147483648
  %v2236 = vmul.f32 %v2235, 1.442695
  %v2237 = vpow.pop %v2236
  %v2238 = vadd.f32 %v2237, 1.0
  %v2239 = vrcp.pop %v2238
  %v2240 = vmul.f32 1.0, %v2239
  %v2241 = vadd.f32 %v2231, %v1553
  %2243 = vrot.lane.b32.xlu0 %v2241, 64
  %v2244 = vpop.permute.xlu0 %2243
  %v2246 = vmul.f32 %v2240, %v2244
  %v2247 = vadd.f32 %v1467, %v2246
  %v2248 = vtanh.pop %v2247
  %v2249 = vsub.f32 1.0, %v2240
  %2251 = vrot.lane.b32.xlu0 %v2248, 32
  %v2252 = vpop.permute.xlu0 %2251
  %v2254 = vmul.f32 %v2249, %v2252
  %v2255 = vmul.f32 %v2240, %v2158
  %v2256 = vadd.f32 %v2254, %v2255
  %vm2257 = vcmask 64512
  %v2259 = vsel %vm2257, %v145, 0
  %2261 = vmatprep.subr.mxu0 0.0
  %2262 = vmatpush1.msra.mxu0 %v1213
  %2263 = vmatprep.subr.mxu0 0.0
  %2264 = vmatpush1.msra.mxu0 0.0
  %2265 = vmatprep.subr.mxu0 0.0
  %2266 = vmatpush1.msra.mxu0 0.0
  %2267 = vmatprep.subr.mxu0 0.0
  %2268 = vmatpush1.msra.mxu0 0.0
  %2269 = vmatprep.subr.mxu0 0.0
  %2270 = vmatpush1.msra.mxu0 0.0
  %2271 = vmatprep.subr.mxu0 0.0
  %2272 = vmatpush1.msra.mxu0 0.0
  %2273 = vmatprep.subr.mxu0 0.0
  %2274 = vmatpush1.msra.mxu0 0.0
  %2275 = vmatprep.subr.mxu0 0.0
  %2276 = vmatpush1.msra.mxu0 0.0
  %2277 = vmatprep.subr.mxu0 0.0
  %2278 = vmatpush1.msra.mxu0 0.0
  %2279 = vmatprep.subr.mxu0 0.0
  %2280 = vmatpush1.msra.mxu0 0.0
  %2281 = vmatprep.subr.mxu0 0.0
  %2282 = vmatpush1.msra.mxu0 0.0
  %2283 = vmatprep.subr.mxu0 0.0
  %2284 = vmatpush1.msra.mxu0 0.0
  %2285 = vmatprep.subr.mxu0 0.0
  %2286 = vmatpush1.msra.mxu0 0.0
  %2287 = vmatprep.subr.mxu0 0.0
  %2288 = vmatpush1.msra.mxu0 0.0
  %2289 = vmatprep.subr.mxu0 0.0
  %2290 = vmatpush1.msra.mxu0 0.0
  %2291 = vmatprep.subr.mxu0 0.0
  %2292 = vmatpush1.msra.mxu0 0.0
  %2293 = vmatprep.subr.mxu0 0.0
  %2294 = vmatpush1.msra.mxu0 0.0
  %2295 = vmatprep.subr.mxu0 0.0
  %2296 = vmatpush1.msra.mxu0 0.0
  %2297 = vmatprep.subr.mxu0 0.0
  %2298 = vmatpush1.msra.mxu0 0.0
  %2299 = vmatprep.subr.mxu0 0.0
  %2300 = vmatpush1.msra.mxu0 0.0
  %2301 = vmatprep.subr.mxu0 0.0
  %2302 = vmatpush1.msra.mxu0 0.0
  %2303 = vmatprep.subr.mxu0 0.0
  %2304 = vmatpush1.msra.mxu0 0.0
  %2305 = vmatprep.subr.mxu0 0.0
  %2306 = vmatpush1.msra.mxu0 0.0
  %2307 = vmatprep.subr.mxu0 0.0
  %2308 = vmatpush1.msra.mxu0 0.0
  %2309 = vmatprep.subr.mxu0 0.0
  %2310 = vmatpush1.msra.mxu0 0.0
  %2311 = vmatprep.subr.mxu0 0.0
  %2312 = vmatpush1.msra.mxu0 0.0
  %2313 = vmatprep.subr.mxu0 0.0
  %2314 = vmatpush1.msra.mxu0 0.0
  %2315 = vmatprep.subr.mxu0 0.0
  %2316 = vmatpush1.msra.mxu0 0.0
  %2317 = vmatprep.subr.mxu0 0.0
  %2318 = vmatpush1.msra.mxu0 0.0
  %2319 = vmatprep.subr.mxu0 0.0
  %2320 = vmatpush1.msra.mxu0 0.0
  %2321 = vmatprep.subr.mxu0 0.0
  %2322 = vmatpush1.msra.mxu0 0.0
  %2323 = vmatprep.subr.mxu0 0.0
  %2324 = vmatpush1.msra.mxu0 0.0
  %2325 = vmatprep.mubr.f32.mxu0 0.0
  %2326 = vmatmul.mubr.f32.gmra.mrb[0].mxu0 %v2259
  %v2327 = vpop.f32.mrb[0].mxu0
  %v2328 = vadd.f32 0.0, %v2327
  %v2329 = vpop.f32.mrb[0].mxu0
  %2330 = vdwg.mxu0
  %2331 = vst.msk [vmem:[#allocation3] sm:$0xff] %vm406, %v2328
  %2333 = vrot.lane.b32.xlu0 %v2256, 96
  %v2334 = vpop.permute.xlu0 %2333
  %2336 = vmatprep.subr.mxu0 0.0
  %2337 = vmatpush1.msra.mxu0 %v2334
  %2338 = vmatprep.subr.mxu0 0.0
  %2339 = vmatpush1.msra.mxu0 0.0
  %2340 = vmatprep.subr.mxu0 0.0
  %2341 = vmatpush1.msra.mxu0 0.0
  %2342 = vmatprep.subr.mxu0 0.0
  %2343 = vmatpush1.msra.mxu0 0.0
  %2344 = vmatprep.subr.mxu0 0.0
  %2345 = vmatpush1.msra.mxu0 0.0
  %2346 = vmatprep.subr.mxu0 0.0
  %2347 = vmatpush1.msra.mxu0 0.0
  %2348 = vmatprep.subr.mxu0 0.0
  %2349 = vmatpush1.msra.mxu0 0.0
  %2350 = vmatprep.subr.mxu0 0.0
  %2351 = vmatpush1.msra.mxu0 0.0
  %2352 = vmatprep.subr.mxu0 0.0
  %2353 = vmatpush1.msra.mxu0 0.0
  %2354 = vmatprep.subr.mxu0 0.0
  %2355 = vmatpush1.msra.mxu0 0.0
  %2356 = vmatprep.subr.mxu0 0.0
  %2357 = vmatpush1.msra.mxu0 0.0
  %2358 = vmatprep.subr.mxu0 0.0
  %2359 = vmatpush1.msra.mxu0 0.0
  %2360 = vmatprep.subr.mxu0 0.0
  %2361 = vmatpush1.msra.mxu0 0.0
  %2362 = vmatprep.subr.mxu0 0.0
  %2363 = vmatpush1.msra.mxu0 0.0
  %2364 = vmatprep.subr.mxu0 0.0
  %2365 = vmatpush1.msra.mxu0 0.0
  %2366 = vmatprep.subr.mxu0 0.0
  %2367 = vmatpush1.msra.mxu0 0.0
  %2368 = vmatprep.subr.mxu0 0.0
  %2369 = vmatpush1.msra.mxu0 0.0
  %2370 = vmatprep.subr.mxu0 0.0
  %2371 = vmatpush1.msra.mxu0 0.0
  %2372 = vmatprep.subr.mxu0 0.0
  %2373 = vmatpush1.msra.mxu0 0.0
  %2374 = vmatprep.subr.mxu0 0.0
  %2375 = vmatpush1.msra.mxu0 0.0
  %2376 = vmatprep.subr.mxu0 0.0
  %2377 = vmatpush1.msra.mxu0 0.0
  %2378 = vmatprep.subr.mxu0 0.0
  %2379 = vmatpush1.msra.mxu0 0.0
  %2380 = vmatprep.subr.mxu0 0.0
  %2381 = vmatpush1.msra.mxu0 0.0
  %2382 = vmatprep.subr.mxu0 0.0
  %2383 = vmatpush1.msra.mxu0 0.0
  %2384 = vmatprep.subr.mxu0 0.0
  %2385 = vmatpush1.msra.mxu0 0.0
  %2386 = vmatprep.subr.mxu0 0.0
  %2387 = vmatpush1.msra.mxu0 0.0
  %2388 = vmatprep.subr.mxu0 0.0
  %2389 = vmatpush1.msra.mxu0 0.0
  %2390 = vmatprep.subr.mxu0 0.0
  %2391 = vmatpush1.msra.mxu0 0.0
  %2392 = vmatprep.subr.mxu0 0.0
  %2393 = vmatpush1.msra.mxu0 0.0
  %2394 = vmatprep.subr.mxu0 0.0
  %2395 = vmatpush1.msra.mxu0 0.0
  %2396 = vmatprep.subr.mxu0 0.0
  %2397 = vmatpush1.msra.mxu0 0.0
  %2398 = vmatprep.subr.mxu0 0.0
  %2399 = vmatpush1.msra.mxu0 0.0
  %2400 = vmatprep.mubr.f32.mxu0 0.0
  %2401 = vmatmul.mubr.f32.gmra.mrb[0].mxu0 %v2259
  %v2402 = vpop.f32.mrb[0].mxu0
  %v2403 = vadd.f32 0.0, %v2402
  %v2404 = vpop.f32.mrb[0].mxu0
  %2405 = vdwg.mxu0
  %2406 = vst.msk [vmem:[#allocation3 + $0x8] sm:$0xff] %vm406, %v2403
  %v2407 = vld [vmem:[#allocation3] sm:$0xff]
  %v2408 = vld [vmem:[#allocation3 + $0x8] sm:$0xff]
  %v2410 = vlaneseq
  %v2411 = vshrl.u32 %v2410, 7
  %v2412 = vsub.s32 0, %v2411
  %v2413 = vrot.slane %v127, %v2412
  %v2416 = vsel %vm406, %v2407, 0
  %v2419 = vsel %vm406, %v2408, 0
  %2421 = vmatprep.subr.mxu0 0.0
  %2422 = vmatpush1.msra.mxu0 %v115
  %2423 = vmatprep.subr.mxu0 0.0
  %2424 = vmatpush1.msra.mxu0 %v116
  %2425 = vmatprep.subr.mxu0 0.0
  %2426 = vmatpush1.msra.mxu0 %v117
  %2427 = vmatprep.subr.mxu0 0.0
  %2428 = vmatpush1.msra.mxu0 %v118
  %2429 = vmatprep.subr.mxu0 0.0
  %2430 = vmatpush1.msra.mxu0 0.0
  %2431 = vmatprep.subr.mxu0 0.0
  %2432 = vmatpush1.msra.mxu0 0.0
  %2433 = vmatprep.subr.mxu0 0.0
  %2434 = vmatpush1.msra.mxu0 0.0
  %2435 = vmatprep.subr.mxu0 0.0
  %2436 = vmatpush1.msra.mxu0 0.0
  %2437 = vmatprep.subr.mxu0 0.0
  %2438 = vmatpush1.msra.mxu0 0.0
  %2439 = vmatprep.subr.mxu0 0.0
  %2440 = vmatpush1.msra.mxu0 0.0
  %2441 = vmatprep.subr.mxu0 0.0
  %2442 = vmatpush1.msra.mxu0 0.0
  %2443 = vmatprep.subr.mxu0 0.0
  %2444 = vmatpush1.msra.mxu0 0.0
  %2445 = vmatprep.subr.mxu0 0.0
  %2446 = vmatpush1.msra.mxu0 0.0
  %2447 = vmatprep.subr.mxu0 0.0
  %2448 = vmatpush1.msra.mxu0 0.0
  %2449 = vmatprep.subr.mxu0 0.0
  %2450 = vmatpush1.msra.mxu0 0.0
  %2451 = vmatprep.subr.mxu0 0.0
  %2452 = vmatpush1.msra.mxu0 0.0
  %2453 = vmatprep.subr.mxu0 0.0
  %2454 = vmatpush1.msra.mxu0 0.0
  %2455 = vmatprep.subr.mxu0 0.0
  %2456 = vmatpush1.msra.mxu0 0.0
  %2457 = vmatprep.subr.mxu0 0.0
  %2458 = vmatpush1.msra.mxu0 0.0
  %2459 = vmatprep.subr.mxu0 0.0
  %2460 = vmatpush1.msra.mxu0 0.0
  %2461 = vmatprep.subr.mxu0 0.0
  %2462 = vmatpush1.msra.mxu0 0.0
  %2463 = vmatprep.subr.mxu0 0.0
  %2464 = vmatpush1.msra.mxu0 0.0
  %2465 = vmatprep.subr.mxu0 0.0
  %2466 = vmatpush1.msra.mxu0 0.0
  %2467 = vmatprep.subr.mxu0 0.0
  %2468 = vmatpush1.msra.mxu0 0.0
  %2469 = vmatprep.subr.mxu0 0.0
  %2470 = vmatpush1.msra.mxu0 0.0
  %2471 = vmatprep.subr.mxu0 0.0
  %2472 = vmatpush1.msra.mxu0 0.0
  %2473 = vmatprep.subr.mxu0 0.0
  %2474 = vmatpush1.msra.mxu0 0.0
  %2475 = vmatprep.subr.mxu0 0.0
  %2476 = vmatpush1.msra.mxu0 0.0
  %2477 = vmatprep.subr.mxu0 0.0
  %2478 = vmatpush1.msra.mxu0 0.0
  %2479 = vmatprep.subr.mxu0 0.0
  %2480 = vmatpush1.msra.mxu0 0.0
  %2481 = vmatprep.subr.mxu0 0.0
  %2482 = vmatpush1.msra.mxu0 0.0
  %2483 = vmatprep.subr.mxu0 0.0
  %2484 = vmatpush1.msra.mxu0 0.0
  %2485 = vmatprep.mubr.f32.mxu0 0.0
  %2486 = vmatmul.mubr.f32.gmra.mrb[0].mxu0 %v2416
  %v2487 = vpop.f32.mrb[0].mxu0
  %v2488 = vadd.f32 %v2413, %v2487
  %v2489 = vpop.f32.mrb[0].mxu0
  %2490 = vmatprep.mubr.f32.mxu0 0.0
  %2491 = vmatmul.mubr.f32.gmra.mrb[0].mxu0 %v2419
  %v2492 = vpop.f32.mrb[0].mxu0
  %v2493 = vadd.f32 %v2413, %v2492
  %v2494 = vpop.f32.mrb[0].mxu0
  %2495 = vdwg.mxu0
  %v2497 = vlaneseq
  %v2498 = vshrl.u32 %v2497, 7
  %v2499 = vsub.s32 0, %v2498
  %v2500 = vrot.slane %v128, %v2499
  %2502 = vmatprep.subr.mxu0 0.0
  %2503 = vmatpush1.msra.mxu0 %v119
  %2504 = vmatprep.subr.mxu0 0.0
  %2505 = vmatpush1.msra.mxu0 %v120
  %2506 = vmatprep.subr.mxu0 0.0
  %2507 = vmatpush1.msra.mxu0 %v121
  %2508 = vmatprep.subr.mxu0 0.0
  %2509 = vmatpush1.msra.mxu0 %v122
  %2510 = vmatprep.subr.mxu0 0.0
  %2511 = vmatpush1.msra.mxu0 0.0
  %2512 = vmatprep.subr.mxu0 0.0
  %2513 = vmatpush1.msra.mxu0 0.0
  %2514 = vmatprep.subr.mxu0 0.0
  %2515 = vmatpush1.msra.mxu0 0.0
  %2516 = vmatprep.subr.mxu0 0.0
  %2517 = vmatpush1.msra.mxu0 0.0
  %2518 = vmatprep.subr.mxu0 0.0
  %2519 = vmatpush1.msra.mxu0 0.0
  %2520 = vmatprep.subr.mxu0 0.0
  %2521 = vmatpush1.msra.mxu0 0.0
  %2522 = vmatprep.subr.mxu0 0.0
  %2523 = vmatpush1.msra.mxu0 0.0
  %2524 = vmatprep.subr.mxu0 0.0
  %2525 = vmatpush1.msra.mxu0 0.0
  %2526 = vmatprep.subr.mxu0 0.0
  %2527 = vmatpush1.msra.mxu0 0.0
  %2528 = vmatprep.subr.mxu0 0.0
  %2529 = vmatpush1.msra.mxu0 0.0
  %2530 = vmatprep.subr.mxu0 0.0
  %2531 = vmatpush1.msra.mxu0 0.0
  %2532 = vmatprep.subr.mxu0 0.0
  %2533 = vmatpush1.msra.mxu0 0.0
  %2534 = vmatprep.subr.mxu0 0.0
  %2535 = vmatpush1.msra.mxu0 0.0
  %2536 = vmatprep.subr.mxu0 0.0
  %2537 = vmatpush1.msra.mxu0 0.0
  %2538 = vmatprep.subr.mxu0 0.0
  %2539 = vmatpush1.msra.mxu0 0.0
  %2540 = vmatprep.subr.mxu0 0.0
  %2541 = vmatpush1.msra.mxu0 0.0
  %2542 = vmatprep.subr.mxu0 0.0
  %2543 = vmatpush1.msra.mxu0 0.0
  %2544 = vmatprep.subr.mxu0 0.0
  %2545 = vmatpush1.msra.mxu0 0.0
  %2546 = vmatprep.subr.mxu0 0.0
  %2547 = vmatpush1.msra.mxu0 0.0
  %2548 = vmatprep.subr.mxu0 0.0
  %2549 = vmatpush1.msra.mxu0 0.0
  %2550 = vmatprep.subr.mxu0 0.0
  %2551 = vmatpush1.msra.mxu0 0.0
  %2552 = vmatprep.subr.mxu0 0.0
  %2553 = vmatpush1.msra.mxu0 0.0
  %2554 = vmatprep.subr.mxu0 0.0
  %2555 = vmatpush1.msra.mxu0 0.0
  %2556 = vmatprep.subr.mxu0 0.0
  %2557 = vmatpush1.msra.mxu0 0.0
  %2558 = vmatprep.subr.mxu0 0.0
  %2559 = vmatpush1.msra.mxu0 0.0
  %2560 = vmatprep.subr.mxu0 0.0
  %2561 = vmatpush1.msra.mxu0 0.0
  %2562 = vmatprep.subr.mxu0 0.0
  %2563 = vmatpush1.msra.mxu0 0.0
  %2564 = vmatprep.subr.mxu0 0.0
  %2565 = vmatpush1.msra.mxu0 0.0
  %2566 = vmatprep.mubr.f32.mxu0 0.0
  %2567 = vmatmul.mubr.f32.gmra.mrb[0].mxu0 %v2416
  %v2568 = vpop.f32.mrb[0].mxu0
  %v2569 = vadd.f32 %v2500, %v2568
  %v2570 = vpop.f32.mrb[0].mxu0
  %2571 = vmatprep.mubr.f32.mxu0 0.0
  %2572 = vmatmul.mubr.f32.gmra.mrb[0].mxu0 %v2419
  %v2573 = vpop.f32.mrb[0].mxu0
  %v2574 = vadd.f32 %v2500, %v2573
  %v2575 = vpop.f32.mrb[0].mxu0
  %2576 = vdwg.mxu0
  %2577 = vmatprep.subr.mxu0 0.0
  %2578 = vmatpush1.msra.mxu0 %v123
  %2579 = vmatprep.subr.mxu0 0.0
  %2580 = vmatpush1.msra.mxu0 %v124
  %2581 = vmatprep.subr.mxu0 0.0
  %2582 = vmatpush1.msra.mxu0 %v125
  %2583 = vmatprep.subr.mxu0 0.0
  %2584 = vmatpush1.msra.mxu0 %v126
  %2585 = vmatprep.subr.mxu0 0.0
  %2586 = vmatpush1.msra.mxu0 0.0
  %2587 = vmatprep.subr.mxu0 0.0
  %2588 = vmatpush1.msra.mxu0 0.0
  %2589 = vmatprep.subr.mxu0 0.0
  %2590 = vmatpush1.msra.mxu0 0.0
  %2591 = vmatprep.subr.mxu0 0.0
  %2592 = vmatpush1.msra.mxu0 0.0
  %2593 = vmatprep.subr.mxu0 0.0
  %2594 = vmatpush1.msra.mxu0 0.0
  %2595 = vmatprep.subr.mxu0 0.0
  %2596 = vmatpush1.msra.mxu0 0.0
  %2597 = vmatprep.subr.mxu0 0.0
  %2598 = vmatpush1.msra.mxu0 0.0
  %2599 = vmatprep.subr.mxu0 0.0
  %2600 = vmatpush1.msra.mxu0 0.0
  %2601 = vmatprep.subr.mxu0 0.0
  %2602 = vmatpush1.msra.mxu0 0.0
  %2603 = vmatprep.subr.mxu0 0.0
  %2604 = vmatpush1.msra.mxu0 0.0
  %2605 = vmatprep.subr.mxu0 0.0
  %2606 = vmatpush1.msra.mxu0 0.0
  %2607 = vmatprep.subr.mxu0 0.0
  %2608 = vmatpush1.msra.mxu0 0.0
  %2609 = vmatprep.subr.mxu0 0.0
  %2610 = vmatpush1.msra.mxu0 0.0
  %2611 = vmatprep.subr.mxu0 0.0
  %2612 = vmatpush1.msra.mxu0 0.0
  %2613 = vmatprep.subr.mxu0 0.0
  %2614 = vmatpush1.msra.mxu0 0.0
  %2615 = vmatprep.subr.mxu0 0.0
  %2616 = vmatpush1.msra.mxu0 0.0
  %2617 = vmatprep.subr.mxu0 0.0
  %2618 = vmatpush1.msra.mxu0 0.0
  %2619 = vmatprep.subr.mxu0 0.0
  %2620 = vmatpush1.msra.mxu0 0.0
  %2621 = vmatprep.subr.mxu0 0.0
  %2622 = vmatpush1.msra.mxu0 0.0
  %2623 = vmatprep.subr.mxu0 0.0
  %2624 = vmatpush1.msra.mxu0 0.0
  %2625 = vmatprep.subr.mxu0 0.0
  %2626 = vmatpush1.msra.mxu0 0.0
  %2627 = vmatprep.subr.mxu0 0.0
  %2628 = vmatpush1.msra.mxu0 0.0
  %2629 = vmatprep.subr.mxu0 0.0
  %2630 = vmatpush1.msra.mxu0 0.0
  %2631 = vmatprep.subr.mxu0 0.0
  %2632 = vmatpush1.msra.mxu0 0.0
  %2633 = vmatprep.subr.mxu0 0.0
  %2634 = vmatpush1.msra.mxu0 0.0
  %2635 = vmatprep.subr.mxu0 0.0
  %2636 = vmatpush1.msra.mxu0 0.0
  %2637 = vmatprep.subr.mxu0 0.0
  %2638 = vmatpush1.msra.mxu0 0.0
  %2639 = vmatprep.subr.mxu0 0.0
  %2640 = vmatpush1.msra.mxu0 0.0
  %2641 = vmatprep.mubr.f32.mxu0 0.0
  %2642 = vmatmul.mubr.f32.gmra.mrb[0].mxu0 %v408
  %v2643 = vpop.f32.mrb[0].mxu0
  %v2644 = vadd.f32 0.0, %v2643
  %v2645 = vpop.f32.mrb[0].mxu0
  %2646 = vdwg.mxu0
  %v2647 = vadd.f32 %v2488, %v2644
  %v2648 = vxor.u32 %v2647, 2147483648
  %v2649 = vmul.f32 %v2648, 1.442695
  %v2650 = vpow.pop %v2649
  %v2651 = vadd.f32 %v2650, 1.0
  %v2652 = vrcp.pop %v2651
  %v2653 = vmul.f32 1.0, %v2652
  %v2655 = vlaneseq
  %v2656 = vshrl.u32 %v2655, 7
  %v2657 = vsub.s32 0, %v2656
  %v2658 = vrot.slane %v129, %v2657
  %2659 = vrot.lane.b32.xlu0 %v2658, 64
  %v2660 = vpop.permute.xlu0 %2659
  %v2662 = vadd.f32 %v2644, %v2660
  %2664 = vrot.lane.b32.xlu0 %v2662, 64
  %v2665 = vpop.permute.xlu0 %2664
  %v2667 = vmul.f32 %v2653, %v2665
  %v2668 = vadd.f32 %v2569, %v2667
  %v2669 = vtanh.pop %v2668
  %v2670 = vsub.f32 1.0, %v2653
  %2672 = vrot.lane.b32.xlu0 %v2669, 32
  %v2673 = vpop.permute.xlu0 %2672
  %v2675 = vmul.f32 %v2670, %v2673
  %v2676 = vmul.f32 %v2653, 0.0
  %v2677 = vadd.f32 %v2675, %v2676
  %2679 = vrot.lane.b32.xlu0 %v2677, 96
  %v2680 = vpop.permute.xlu0 %2679
  %2682 = vst.msk [vmem:[#allocation4] sm:$0xff] %vm406, %v2680
  %v2683 = vsel %vm406, %v2680, 0
  %2685 = vmatprep.subr.mxu0 0.0
  %2686 = vmatpush1.msra.mxu0 %v123
  %2687 = vmatprep.subr.mxu0 0.0
  %2688 = vmatpush1.msra.mxu0 %v124
  %2689 = vmatprep.subr.mxu0 0.0
  %2690 = vmatpush1.msra.mxu0 %v125
  %2691 = vmatprep.subr.mxu0 0.0
  %2692 = vmatpush1.msra.mxu0 %v126
  %2693 = vmatprep.subr.mxu0 0.0
  %2694 = vmatpush1.msra.mxu0 0.0
  %2695 = vmatprep.subr.mxu0 0.0
  %2696 = vmatpush1.msra.mxu0 0.0
  %2697 = vmatprep.subr.mxu0 0.0
  %2698 = vmatpush1.msra.mxu0 0.0
  %2699 = vmatprep.subr.mxu0 0.0
  %2700 = vmatpush1.msra.mxu0 0.0
  %2701 = vmatprep.subr.mxu0 0.0
  %2702 = vmatpush1.msra.mxu0 0.0
  %2703 = vmatprep.subr.mxu0 0.0
  %2704 = vmatpush1.msra.mxu0 0.0
  %2705 = vmatprep.subr.mxu0 0.0
  %2706 = vmatpush1.msra.mxu0 0.0
  %2707 = vmatprep.subr.mxu0 0.0
  %2708 = vmatpush1.msra.mxu0 0.0
  %2709 = vmatprep.subr.mxu0 0.0
  %2710 = vmatpush1.msra.mxu0 0.0
  %2711 = vmatprep.subr.mxu0 0.0
  %2712 = vmatpush1.msra.mxu0 0.0
  %2713 = vmatprep.subr.mxu0 0.0
  %2714 = vmatpush1.msra.mxu0 0.0
  %2715 = vmatprep.subr.mxu0 0.0
  %2716 = vmatpush1.msra.mxu0 0.0
  %2717 = vmatprep.subr.mxu0 0.0
  %2718 = vmatpush1.msra.mxu0 0.0
  %2719 = vmatprep.subr.mxu0 0.0
  %2720 = vmatpush1.msra.mxu0 0.0
  %2721 = vmatprep.subr.mxu0 0.0
  %2722 = vmatpush1.msra.mxu0 0.0
  %2723 = vmatprep.subr.mxu0 0.0
  %2724 = vmatpush1.msra.mxu0 0.0
  %2725 = vmatprep.subr.mxu0 0.0
  %2726 = vmatpush1.msra.mxu0 0.0
  %2727 = vmatprep.subr.mxu0 0.0
  %2728 = vmatpush1.msra.mxu0 0.0
  %2729 = vmatprep.subr.mxu0 0.0
  %2730 = vmatpush1.msra.mxu0 0.0
  %2731 = vmatprep.subr.mxu0 0.0
  %2732 = vmatpush1.msra.mxu0 0.0
  %2733 = vmatprep.subr.mxu0 0.0
  %2734 = vmatpush1.msra.mxu0 0.0
  %2735 = vmatprep.subr.mxu0 0.0
  %2736 = vmatpush1.msra.mxu0 0.0
  %2737 = vmatprep.subr.mxu0 0.0
  %2738 = vmatpush1.msra.mxu0 0.0
  %2739 = vmatprep.subr.mxu0 0.0
  %2740 = vmatpush1.msra.mxu0 0.0
  %2741 = vmatprep.subr.mxu0 0.0
  %2742 = vmatpush1.msra.mxu0 0.0
  %2743 = vmatprep.subr.mxu0 0.0
  %2744 = vmatpush1.msra.mxu0 0.0
  %2745 = vmatprep.subr.mxu0 0.0
  %2746 = vmatpush1.msra.mxu0 0.0
  %2747 = vmatprep.subr.mxu0 0.0
  %2748 = vmatpush1.msra.mxu0 0.0
  %2749 = vmatprep.mubr.f32.mxu0 0.0
  %2750 = vmatmul.mubr.f32.gmra.mrb[0].mxu0 %v2683
  %v2751 = vpop.f32.mrb[0].mxu0
  %v2752 = vadd.f32 0.0, %v2751
  %v2753 = vpop.f32.mrb[0].mxu0
  %2754 = vdwg.mxu0
  %v2755 = vadd.f32 %v2493, %v2752
  %v2756 = vxor.u32 %v2755, 2147483648
  %v2757 = vmul.f32 %v2756, 1.442695
  %v2758 = vpow.pop %v2757
  %v2759 = vadd.f32 %v2758, 1.0
  %v2760 = vrcp.pop %v2759
  %v2761 = vmul.f32 1.0, %v2760
  %v2762 = vadd.f32 %v2752, %v2660
  %2764 = vrot.lane.b32.xlu0 %v2762, 64
  %v2765 = vpop.permute.xlu0 %2764
  %v2767 = vmul.f32 %v2761, %v2765
  %v2768 = vadd.f32 %v2574, %v2767
  %v2769 = vtanh.pop %v2768
  %v2770 = vsub.f32 1.0, %v2761
  %2772 = vrot.lane.b32.xlu0 %v2769, 32
  %v2773 = vpop.permute.xlu0 %2772
  %v2775 = vmul.f32 %v2770, %v2773
  %v2776 = vmul.f32 %v2761, %v2677
  %v2777 = vadd.f32 %v2775, %v2776
  %2779 = vrot.lane.b32.xlu0 %v2777, 96
  %v2780 = vpop.permute.xlu0 %2779
  %2782 = vst.msk [vmem:[#allocation4 + $0x8] sm:$0xff] %vm406, %v2780
  %v2783 = vld [vmem:[#allocation4] sm:$0xff]
  %v2784 = vld [vmem:[#allocation4 + $0x8] sm:$0xff]
  %v2786 = vlaneseq
  %v2787 = vshrl.u32 %v2786, 7
  %v2788 = vsub.s32 0, %v2787
  %v2789 = vrot.slane %v142, %v2788
  %v2792 = vsel %vm406, %v2783, 0
  %v2795 = vsel %vm406, %v2784, 0
  %2797 = vmatprep.subr.mxu0 0.0
  %2798 = vmatpush1.msra.mxu0 %v130
  %2799 = vmatprep.subr.mxu0 0.0
  %2800 = vmatpush1.msra.mxu0 %v131
  %2801 = vmatprep.subr.mxu0 0.0
  %2802 = vmatpush1.msra.mxu0 %v132
  %2803 = vmatprep.subr.mxu0 0.0
  %2804 = vmatpush1.msra.mxu0 %v133
  %2805 = vmatprep.subr.mxu0 0.0
  %2806 = vmatpush1.msra.mxu0 0.0
  %2807 = vmatprep.subr.mxu0 0.0
  %2808 = vmatpush1.msra.mxu0 0.0
  %2809 = vmatprep.subr.mxu0 0.0
  %2810 = vmatpush1.msra.mxu0 0.0
  %2811 = vmatprep.subr.mxu0 0.0
  %2812 = vmatpush1.msra.mxu0 0.0
  %2813 = vmatprep.subr.mxu0 0.0
  %2814 = vmatpush1.msra.mxu0 0.0
  %2815 = vmatprep.subr.mxu0 0.0
  %2816 = vmatpush1.msra.mxu0 0.0
  %2817 = vmatprep.subr.mxu0 0.0
  %2818 = vmatpush1.msra.mxu0 0.0
  %2819 = vmatprep.subr.mxu0 0.0
  %2820 = vmatpush1.msra.mxu0 0.0
  %2821 = vmatprep.subr.mxu0 0.0
  %2822 = vmatpush1.msra.mxu0 0.0
  %2823 = vmatprep.subr.mxu0 0.0
  %2824 = vmatpush1.msra.mxu0 0.0
  %2825 = vmatprep.subr.mxu0 0.0
  %2826 = vmatpush1.msra.mxu0 0.0
  %2827 = vmatprep.subr.mxu0 0.0
  %2828 = vmatpush1.msra.mxu0 0.0
  %2829 = vmatprep.subr.mxu0 0.0
  %2830 = vmatpush1.msra.mxu0 0.0
  %2831 = vmatprep.subr.mxu0 0.0
  %2832 = vmatpush1.msra.mxu0 0.0
  %2833 = vmatprep.subr.mxu0 0.0
  %2834 = vmatpush1.msra.mxu0 0.0
  %2835 = vmatprep.subr.mxu0 0.0
  %2836 = vmatpush1.msra.mxu0 0.0
  %2837 = vmatprep.subr.mxu0 0.0
  %2838 = vmatpush1.msra.mxu0 0.0
  %2839 = vmatprep.subr.mxu0 0.0
  %2840 = vmatpush1.msra.mxu0 0.0
  %2841 = vmatprep.subr.mxu0 0.0
  %2842 = vmatpush1.msra.mxu0 0.0
  %2843 = vmatprep.subr.mxu0 0.0
  %2844 = vmatpush1.msra.mxu0 0.0
  %2845 = vmatprep.subr.mxu0 0.0
  %2846 = vmatpush1.msra.mxu0 0.0
  %2847 = vmatprep.subr.mxu0 0.0
  %2848 = vmatpush1.msra.mxu0 0.0
  %2849 = vmatprep.subr.mxu0 0.0
  %2850 = vmatpush1.msra.mxu0 0.0
  %2851 = vmatprep.subr.mxu0 0.0
  %2852 = vmatpush1.msra.mxu0 0.0
  %2853 = vmatprep.subr.mxu0 0.0
  %2854 = vmatpush1.msra.mxu0 0.0
  %2855 = vmatprep.subr.mxu0 0.0
  %2856 = vmatpush1.msra.mxu0 0.0
  %2857 = vmatprep.subr.mxu0 0.0
  %2858 = vmatpush1.msra.mxu0 0.0
  %2859 = vmatprep.subr.mxu0 0.0
  %2860 = vmatpush1.msra.mxu0 0.0
  %2861 = vmatprep.mubr.f32.mxu0 0.0
  %2862 = vmatmul.mubr.f32.gmra.mrb[0].mxu0 %v2792
  %v2863 = vpop.f32.mrb[0].mxu0
  %v2864 = vadd.f32 %v2789, %v2863
  %v2865 = vpop.f32.mrb[0].mxu0
  %2866 = vmatprep.mubr.f32.mxu0 0.0
  %2867 = vmatmul.mubr.f32.gmra.mrb[0].mxu0 %v2795
  %v2868 = vpop.f32.mrb[0].mxu0
  %v2869 = vadd.f32 %v2789, %v2868
  %v2870 = vpop.f32.mrb[0].mxu0
  %2871 = vdwg.mxu0
  %v2873 = vlaneseq
  %v2874 = vshrl.u32 %v2873, 7
  %v2875 = vsub.s32 0, %v2874
  %v2876 = vrot.slane %v143, %v2875
  %2878 = vmatprep.subr.mxu0 0.0
  %2879 = vmatpush1.msra.mxu0 %v134
  %2880 = vmatprep.subr.mxu0 0.0
  %2881 = vmatpush1.msra.mxu0 %v135
  %2882 = vmatprep.subr.mxu0 0.0
  %2883 = vmatpush1.msra.mxu0 %v136
  %2884 = vmatprep.subr.mxu0 0.0
  %2885 = vmatpush1.msra.mxu0 %v137
  %2886 = vmatprep.subr.mxu0 0.0
  %2887 = vmatpush1.msra.mxu0 0.0
  %2888 = vmatprep.subr.mxu0 0.0
  %2889 = vmatpush1.msra.mxu0 0.0
  %2890 = vmatprep.subr.mxu0 0.0
  %2891 = vmatpush1.msra.mxu0 0.0
  %2892 = vmatprep.subr.mxu0 0.0
  %2893 = vmatpush1.msra.mxu0 0.0
  %2894 = vmatprep.subr.mxu0 0.0
  %2895 = vmatpush1.msra.mxu0 0.0
  %2896 = vmatprep.subr.mxu0 0.0
  %2897 = vmatpush1.msra.mxu0 0.0
  %2898 = vmatprep.subr.mxu0 0.0
  %2899 = vmatpush1.msra.mxu0 0.0
  %2900 = vmatprep.subr.mxu0 0.0
  %2901 = vmatpush1.msra.mxu0 0.0
  %2902 = vmatprep.subr.mxu0 0.0
  %2903 = vmatpush1.msra.mxu0 0.0
  %2904 = vmatprep.subr.mxu0 0.0
  %2905 = vmatpush1.msra.mxu0 0.0
  %2906 = vmatprep.subr.mxu0 0.0
  %2907 = vmatpush1.msra.mxu0 0.0
  %2908 = vmatprep.subr.mxu0 0.0
  %2909 = vmatpush1.msra.mxu0 0.0
  %2910 = vmatprep.subr.mxu0 0.0
  %2911 = vmatpush1.msra.mxu0 0.0
  %2912 = vmatprep.subr.mxu0 0.0
  %2913 = vmatpush1.msra.mxu0 0.0
  %2914 = vmatprep.subr.mxu0 0.0
  %2915 = vmatpush1.msra.mxu0 0.0
  %2916 = vmatprep.subr.mxu0 0.0
  %2917 = vmatpush1.msra.mxu0 0.0
  %2918 = vmatprep.subr.mxu0 0.0
  %2919 = vmatpush1.msra.mxu0 0.0
  %2920 = vmatprep.subr.mxu0 0.0
  %2921 = vmatpush1.msra.mxu0 0.0
  %2922 = vmatprep.subr.mxu0 0.0
  %2923 = vmatpush1.msra.mxu0 0.0
  %2924 = vmatprep.subr.mxu0 0.0
  %2925 = vmatpush1.msra.mxu0 0.0
  %2926 = vmatprep.subr.mxu0 0.0
  %2927 = vmatpush1.msra.mxu0 0.0
  %2928 = vmatprep.subr.mxu0 0.0
  %2929 = vmatpush1.msra.mxu0 0.0
  %2930 = vmatprep.subr.mxu0 0.0
  %2931 = vmatpush1.msra.mxu0 0.0
  %2932 = vmatprep.subr.mxu0 0.0
  %2933 = vmatpush1.msra.mxu0 0.0
  %2934 = vmatprep.subr.mxu0 0.0
  %2935 = vmatpush1.msra.mxu0 0.0
  %2936 = vmatprep.subr.mxu0 0.0
  %2937 = vmatpush1.msra.mxu0 0.0
  %2938 = vmatprep.subr.mxu0 0.0
  %2939 = vmatpush1.msra.mxu0 0.0
  %2940 = vmatprep.subr.mxu0 0.0
  %2941 = vmatpush1.msra.mxu0 0.0
  %2942 = vmatprep.mubr.f32.mxu0 0.0
  %2943 = vmatmul.mubr.f32.gmra.mrb[0].mxu0 %v2792
  %v2944 = vpop.f32.mrb[0].mxu0
  %v2945 = vadd.f32 %v2876, %v2944
  %v2946 = vpop.f32.mrb[0].mxu0
  %2947 = vmatprep.mubr.f32.mxu0 0.0
  %2948 = vmatmul.mubr.f32.gmra.mrb[0].mxu0 %v2795
  %v2949 = vpop.f32.mrb[0].mxu0
  %v2950 = vadd.f32 %v2876, %v2949
  %v2951 = vpop.f32.mrb[0].mxu0
  %2952 = vdwg.mxu0
  %2953 = vmatprep.subr.mxu0 0.0
  %2954 = vmatpush1.msra.mxu0 %v138
  %2955 = vmatprep.subr.mxu0 0.0
  %2956 = vmatpush1.msra.mxu0 %v139
  %2957 = vmatprep.subr.mxu0 0.0
  %2958 = vmatpush1.msra.mxu0 %v140
  %2959 = vmatprep.subr.mxu0 0.0
  %2960 = vmatpush1.msra.mxu0 %v141
  %2961 = vmatprep.subr.mxu0 0.0
  %2962 = vmatpush1.msra.mxu0 0.0
  %2963 = vmatprep.subr.mxu0 0.0
  %2964 = vmatpush1.msra.mxu0 0.0
  %2965 = vmatprep.subr.mxu0 0.0
  %2966 = vmatpush1.msra.mxu0 0.0
  %2967 = vmatprep.subr.mxu0 0.0
  %2968 = vmatpush1.msra.mxu0 0.0
  %2969 = vmatprep.subr.mxu0 0.0
  %2970 = vmatpush1.msra.mxu0 0.0
  %2971 = vmatprep.subr.mxu0 0.0
  %2972 = vmatpush1.msra.mxu0 0.0
  %2973 = vmatprep.subr.mxu0 0.0
  %2974 = vmatpush1.msra.mxu0 0.0
  %2975 = vmatprep.subr.mxu0 0.0
  %2976 = vmatpush1.msra.mxu0 0.0
  %2977 = vmatprep.subr.mxu0 0.0
  %2978 = vmatpush1.msra.mxu0 0.0
  %2979 = vmatprep.subr.mxu0 0.0
  %2980 = vmatpush1.msra.mxu0 0.0
  %2981 = vmatprep.subr.mxu0 0.0
  %2982 = vmatpush1.msra.mxu0 0.0
  %2983 = vmatprep.subr.mxu0 0.0
  %2984 = vmatpush1.msra.mxu0 0.0
  %2985 = vmatprep.subr.mxu0 0.0
  %2986 = vmatpush1.msra.mxu0 0.0
  %2987 = vmatprep.subr.mxu0 0.0
  %2988 = vmatpush1.msra.mxu0 0.0
  %2989 = vmatprep.subr.mxu0 0.0
  %2990 = vmatpush1.msra.mxu0 0.0
  %2991 = vmatprep.subr.mxu0 0.0
  %2992 = vmatpush1.msra.mxu0 0.0
  %2993 = vmatprep.subr.mxu0 0.0
  %2994 = vmatpush1.msra.mxu0 0.0
  %2995 = vmatprep.subr.mxu0 0.0
  %2996 = vmatpush1.msra.mxu0 0.0
  %2997 = vmatprep.subr.mxu0 0.0
  %2998 = vmatpush1.msra.mxu0 0.0
  %2999 = vmatprep.subr.mxu0 0.0
  %3000 = vmatpush1.msra.mxu0 0.0
  %3001 = vmatprep.subr.mxu0 0.0
  %3002 = vmatpush1.msra.mxu0 0.0
  %3003 = vmatprep.subr.mxu0 0.0
  %3004 = vmatpush1.msra.mxu0 0.0
  %3005 = vmatprep.subr.mxu0 0.0
  %3006 = vmatpush1.msra.mxu0 0.0
  %3007 = vmatprep.subr.mxu0 0.0
  %3008 = vmatpush1.msra.mxu0 0.0
  %3009 = vmatprep.subr.mxu0 0.0
  %3010 = vmatpush1.msra.mxu0 0.0
  %3011 = vmatprep.subr.mxu0 0.0
  %3012 = vmatpush1.msra.mxu0 0.0
  %3013 = vmatprep.subr.mxu0 0.0
  %3014 = vmatpush1.msra.mxu0 0.0
  %3015 = vmatprep.subr.mxu0 0.0
  %3016 = vmatpush1.msra.mxu0 0.0
  %3017 = vmatprep.mubr.f32.mxu0 0.0
  %3018 = vmatmul.mubr.f32.gmra.mrb[0].mxu0 %v408
  %v3019 = vpop.f32.mrb[0].mxu0
  %v3020 = vadd.f32 0.0, %v3019
  %v3021 = vpop.f32.mrb[0].mxu0
  %3022 = vdwg.mxu0
  %v3023 = vadd.f32 %v2864, %v3020
  %v3024 = vxor.u32 %v3023, 2147483648
  %v3025 = vmul.f32 %v3024, 1.442695
  %v3026 = vpow.pop %v3025
  %v3027 = vadd.f32 %v3026, 1.0
  %v3028 = vrcp.pop %v3027
  %v3029 = vmul.f32 1.0, %v3028
  %v3031 = vlaneseq
  %v3032 = vshrl.u32 %v3031, 7
  %v3033 = vsub.s32 0, %v3032
  %v3034 = vrot.slane %v144, %v3033
  %3035 = vrot.lane.b32.xlu0 %v3034, 64
  %v3036 = vpop.permute.xlu0 %3035
  %v3038 = vadd.f32 %v3020, %v3036
  %3040 = vrot.lane.b32.xlu0 %v3038, 64
  %v3041 = vpop.permute.xlu0 %3040
  %v3043 = vmul.f32 %v3029, %v3041
  %v3044 = vadd.f32 %v2945, %v3043
  %v3045 = vtanh.pop %v3044
  %v3046 = vsub.f32 1.0, %v3029
  %3048 = vrot.lane.b32.xlu0 %v3045, 32
  %v3049 = vpop.permute.xlu0 %3048
  %v3051 = vmul.f32 %v3046, %v3049
  %v3052 = vmul.f32 %v3029, 0.0
  %v3053 = vadd.f32 %v3051, %v3052
  %3055 = vrot.lane.b32.xlu0 %v3053, 96
  %v3056 = vpop.permute.xlu0 %3055
  %v3057 = vsel %vm406, %v3056, 0
  %3059 = vmatprep.subr.mxu0 0.0
  %3060 = vmatpush1.msra.mxu0 %v138
  %3061 = vmatprep.subr.mxu0 0.0
  %3062 = vmatpush1.msra.mxu0 %v139
  %3063 = vmatprep.subr.mxu0 0.0
  %3064 = vmatpush1.msra.mxu0 %v140
  %3065 = vmatprep.subr.mxu0 0.0
  %3066 = vmatpush1.msra.mxu0 %v141
  %3067 = vmatprep.subr.mxu0 0.0
  %3068 = vmatpush1.msra.mxu0 0.0
  %3069 = vmatprep.subr.mxu0 0.0
  %3070 = vmatpush1.msra.mxu0 0.0
  %3071 = vmatprep.subr.mxu0 0.0
  %3072 = vmatpush1.msra.mxu0 0.0
  %3073 = vmatprep.subr.mxu0 0.0
  %3074 = vmatpush1.msra.mxu0 0.0
  %3075 = vmatprep.subr.mxu0 0.0
  %3076 = vmatpush1.msra.mxu0 0.0
  %3077 = vmatprep.subr.mxu0 0.0
  %3078 = vmatpush1.msra.mxu0 0.0
  %3079 = vmatprep.subr.mxu0 0.0
  %3080 = vmatpush1.msra.mxu0 0.0
  %3081 = vmatprep.subr.mxu0 0.0
  %3082 = vmatpush1.msra.mxu0 0.0
  %3083 = vmatprep.subr.mxu0 0.0
  %3084 = vmatpush1.msra.mxu0 0.0
  %3085 = vmatprep.subr.mxu0 0.0
  %3086 = vmatpush1.msra.mxu0 0.0
  %3087 = vmatprep.subr.mxu0 0.0
  %3088 = vmatpush1.msra.mxu0 0.0
  %3089 = vmatprep.subr.mxu0 0.0
  %3090 = vmatpush1.msra.mxu0 0.0
  %3091 = vmatprep.subr.mxu0 0.0
  %3092 = vmatpush1.msra.mxu0 0.0
  %3093 = vmatprep.subr.mxu0 0.0
  %3094 = vmatpush1.msra.mxu0 0.0
  %3095 = vmatprep.subr.mxu0 0.0
  %3096 = vmatpush1.msra.mxu0 0.0
  %3097 = vmatprep.subr.mxu0 0.0
  %3098 = vmatpush1.msra.mxu0 0.0
  %3099 = vmatprep.subr.mxu0 0.0
  %3100 = vmatpush1.msra.mxu0 0.0
  %3101 = vmatprep.subr.mxu0 0.0
  %3102 = vmatpush1.msra.mxu0 0.0
  %3103 = vmatprep.subr.mxu0 0.0
  %3104 = vmatpush1.msra.mxu0 0.0
  %3105 = vmatprep.subr.mxu0 0.0
  %3106 = vmatpush1.msra.mxu0 0.0
  %3107 = vmatprep.subr.mxu0 0.0
  %3108 = vmatpush1.msra.mxu0 0.0
  %3109 = vmatprep.subr.mxu0 0.0
  %3110 = vmatpush1.msra.mxu0 0.0
  %3111 = vmatprep.subr.mxu0 0.0
  %3112 = vmatpush1.msra.mxu0 0.0
  %3113 = vmatprep.subr.mxu0 0.0
  %3114 = vmatpush1.msra.mxu0 0.0
  %3115 = vmatprep.subr.mxu0 0.0
  %3116 = vmatpush1.msra.mxu0 0.0
  %3117 = vmatprep.subr.mxu0 0.0
  %3118 = vmatpush1.msra.mxu0 0.0
  %3119 = vmatprep.subr.mxu0 0.0
  %3120 = vmatpush1.msra.mxu0 0.0
  %3121 = vmatprep.subr.mxu0 0.0
  %3122 = vmatpush1.msra.mxu0 0.0
  %3123 = vmatprep.mubr.f32.mxu0 0.0
  %3124 = vmatmul.mubr.f32.gmra.mrb[0].mxu0 %v3057
  %v3125 = vpop.f32.mrb[0].mxu0
  %v3126 = vadd.f32 0.0, %v3125
  %v3127 = vpop.f32.mrb[0].mxu0
  %3128 = vdwg.mxu0
  %v3129 = vadd.f32 %v2869, %v3126
  %v3130 = vxor.u32 %v3129, 2147483648
  %v3131 = vmul.f32 %v3130, 1.442695
  %v3132 = vpow.pop %v3131
  %v3133 = vadd.f32 %v3132, 1.0
  %v3134 = vrcp.pop %v3133
  %v3135 = vmul.f32 1.0, %v3134
  %v3136 = vadd.f32 %v3126, %v3036
  %3138 = vrot.lane.b32.xlu0 %v3136, 64
  %v3139 = vpop.permute.xlu0 %3138
  %v3141 = vmul.f32 %v3135, %v3139
  %v3142 = vadd.f32 %v2950, %v3141
  %v3143 = vtanh.pop %v3142
  %v3144 = vsub.f32 1.0, %v3135
  %3146 = vrot.lane.b32.xlu0 %v3143, 32
  %v3147 = vpop.permute.xlu0 %3146
  %v3149 = vmul.f32 %v3144, %v3147
  %v3150 = vmul.f32 %v3135, %v3053
  %v3151 = vadd.f32 %v3149, %v3150
  %v3153 = vlaneseq
  %v3154 = vshrl.u32 %v3153, 7
  %v3155 = vsub.s32 0, %v3154
  %v3156 = vrot.slane %v150, %v3155
  %3159 = vrot.lane.b32.xlu0 %v3151, 96
  %v3160 = vpop.permute.xlu0 %3159
  %v3161 = vsel %vm406, %v3160, 0
  %3163 = vmatprep.subr.mxu0 0.0
  %3164 = vmatpush1.msra.mxu0 %v146
  %3165 = vmatprep.subr.mxu0 0.0
  %3166 = vmatpush1.msra.mxu0 %v147
  %3167 = vmatprep.subr.mxu0 0.0
  %3168 = vmatpush1.msra.mxu0 %v148
  %3169 = vmatprep.subr.mxu0 0.0
  %3170 = vmatpush1.msra.mxu0 %v149
  %3171 = vmatprep.subr.mxu0 0.0
  %3172 = vmatpush1.msra.mxu0 0.0
  %3173 = vmatprep.subr.mxu0 0.0
  %3174 = vmatpush1.msra.mxu0 0.0
  %3175 = vmatprep.subr.mxu0 0.0
  %3176 = vmatpush1.msra.mxu0 0.0
  %3177 = vmatprep.subr.mxu0 0.0
  %3178 = vmatpush1.msra.mxu0 0.0
  %3179 = vmatprep.subr.mxu0 0.0
  %3180 = vmatpush1.msra.mxu0 0.0
  %3181 = vmatprep.subr.mxu0 0.0
  %3182 = vmatpush1.msra.mxu0 0.0
  %3183 = vmatprep.subr.mxu0 0.0
  %3184 = vmatpush1.msra.mxu0 0.0
  %3185 = vmatprep.subr.mxu0 0.0
  %3186 = vmatpush1.msra.mxu0 0.0
  %3187 = vmatprep.subr.mxu0 0.0
  %3188 = vmatpush1.msra.mxu0 0.0
  %3189 = vmatprep.subr.mxu0 0.0
  %3190 = vmatpush1.msra.mxu0 0.0
  %3191 = vmatprep.subr.mxu0 0.0
  %3192 = vmatpush1.msra.mxu0 0.0
  %3193 = vmatprep.subr.mxu0 0.0
  %3194 = vmatpush1.msra.mxu0 0.0
  %3195 = vmatprep.subr.mxu0 0.0
  %3196 = vmatpush1.msra.mxu0 0.0
  %3197 = vmatprep.subr.mxu0 0.0
  %3198 = vmatpush1.msra.mxu0 0.0
  %3199 = vmatprep.subr.mxu0 0.0
  %3200 = vmatpush1.msra.mxu0 0.0
  %3201 = vmatprep.subr.mxu0 0.0
  %3202 = vmatpush1.msra.mxu0 0.0
  %3203 = vmatprep.subr.mxu0 0.0
  %3204 = vmatpush1.msra.mxu0 0.0
  %3205 = vmatprep.subr.mxu0 0.0
  %3206 = vmatpush1.msra.mxu0 0.0
  %3207 = vmatprep.subr.mxu0 0.0
  %3208 = vmatpush1.msra.mxu0 0.0
  %3209 = vmatprep.subr.mxu0 0.0
  %3210 = vmatpush1.msra.mxu0 0.0
  %3211 = vmatprep.subr.mxu0 0.0
  %3212 = vmatpush1.msra.mxu0 0.0
  %3213 = vmatprep.subr.mxu0 0.0
  %3214 = vmatpush1.msra.mxu0 0.0
  %3215 = vmatprep.subr.mxu0 0.0
  %3216 = vmatpush1.msra.mxu0 0.0
  %3217 = vmatprep.subr.mxu0 0.0
  %3218 = vmatpush1.msra.mxu0 0.0
  %3219 = vmatprep.subr.mxu0 0.0
  %3220 = vmatpush1.msra.mxu0 0.0
  %3221 = vmatprep.subr.mxu0 0.0
  %3222 = vmatpush1.msra.mxu0 0.0
  %3223 = vmatprep.subr.mxu0 0.0
  %3224 = vmatpush1.msra.mxu0 0.0
  %3225 = vmatprep.subr.mxu0 0.0
  %3226 = vmatpush1.msra.mxu0 0.0
  %3227 = vmatprep.mubr.f32.mxu0 0.0
  %3228 = vmatmul.mubr.f32.gmra.mrb[0].mxu0 %v3161
  %v3229 = vpop.f32.mrb[0].mxu0
  %v3230 = vadd.f32 %v3156, %v3229
  %v3231 = vpop.f32.mrb[0].mxu0
  %3232 = vdwg.mxu0
  %3233 = vst [vmem:[%s28] sm:$0xff] %v3230
  // Predicated region
  $region114: #{sum_rnn_forward.1} parent=0 // pred_check
    _
  $region115: #{sum_rnn_forward.1} parent=0 // pred_check_branch
    %3235 = sbr.rel (0) target = $region117
  $region116: #{sum_rnn_forward.1} parent=0 // pred_region
    _
  $region117: #{sum_rnn_forward.1} parent=0 // pred_fallthru
    _
  // Predicated region
  $region118: #{sum_rnn_forward.1} parent=0 // pred_check
    _
  $region119: #{sum_rnn_forward.1} parent=0 // pred_check_branch
    %3237 = sbr.rel (0) target = $region121
  $region120: #{sum_rnn_forward.1} parent=0 // pred_region
    _
  $region121: #{sum_rnn_forward.1} parent=0 // pred_fallthru
    _

</llo_original>
